<compile_context>
chip_gen: v7x
topology: tpu7x:2x2x1
jax: 0.10.0
libtpu: 0.0.40
codegen_flags: <defaults>
</compile_context>

<pallas_src>
import numpy as np
import jax
import jax.numpy as jnp
from jax.experimental import pallas as pl
from jax.experimental.pallas import tpu as pltpu


HID = 128          # fc1 hidden width, zero-padded 50 -> 128 lanes
MAX_TILE_B = 128   # VMEM-safe f32 tile across v5e/v6e/v7x


# ------------------------------ Pallas kernel -------------------------------

def _model_diri_kernel(x_ref, t1e_ref, t1o_ref, b1_ref, t2e_ref, t2o_ref, b2_ref,
                       w3_ref, b3_ref, w4_ref, b4_ref, o_ref):
    """Fused forward pass for a tile of TB images.

    x_ref  : (TB, 28, 28)  input images (C=1 squeezed)
    t1e/o  : (140, 120)    conv1 banded mats (even / odd output columns);
                           K = tap_row*28 + col, N = pooled_w*10 + cout
    b1_ref : (1, 120)      conv1 bias tiled over pooled_w
    t2e/o  : (600, 80)     conv2 banded mats; K = tap_row*120 + w*10 + cin,
                           N = pooled_w*20 + cout
    b2_ref : (1, 80)       conv2 bias tiled over pooled_w
    w3_ref : (4, 80, HID)  fc1 weight split per pooled row h, lanes padded
    b3_ref : (1, HID)
    w4_ref : (HID, 10)     fc2 weight (pre-transposed, K padded with zeros)
    b4_ref : (1, 10)
    o_ref  : (TB, 10)
    """
    tb = x_ref.shape[0]
    f32 = jnp.float32

    # ---- conv1 (5x5, 1 -> 10): taps folded into K=140, even/odd W columns ----
    lhs1 = jnp.concatenate([x_ref[:, i:i + 24, :] for i in range(5)], axis=2)
    lhs1 = lhs1.reshape(tb * 24, 140)                       # rows = (b, h_out)
    c1e = jnp.dot(lhs1, t1e_ref[...], preferred_element_type=f32)
    c1o = jnp.dot(lhs1, t1o_ref[...], preferred_element_type=f32)
    # 2x2 max-pool: W-pool is a single max (even vs odd), H-pool over row pairs.
    yw1 = jnp.maximum(c1e, c1o).reshape(tb, 12, 2, 120)
    z1 = jnp.maximum(jnp.max(yw1, axis=2) + b1_ref[...], 0.0)   # (tb, 12, 120)

    # ---- conv2 (5x5, 10 -> 20): taps folded into K=600, even/odd W columns ----
    # TODO(synk): nn.Dropout2d treated as identity (eval mode).
    lhs2 = jnp.concatenate([z1[:, i:i + 8, :] for i in range(5)], axis=2)
    lhs2 = lhs2.reshape(tb * 8, 600)
    c2e = jnp.dot(lhs2, t2e_ref[...], preferred_element_type=f32)
    c2o = jnp.dot(lhs2, t2o_ref[...], preferred_element_type=f32)
    yw2 = jnp.maximum(c2e, c2o).reshape(tb, 4, 2, 80)
    z2 = jnp.maximum(jnp.max(yw2, axis=2) + b2_ref[...], 0.0)   # (tb, 4, 80)

    # ---- fc1 + relu: per-row blocks, no 320-lane flatten ----
    h = jnp.dot(z2[:, 0, :], w3_ref[0], preferred_element_type=f32) + b3_ref[...]
    for r in range(1, 4):
        h = h + jnp.dot(z2[:, r, :], w3_ref[r], preferred_element_type=f32)
    h = jnp.maximum(h, 0.0)                                     # (tb, HID)
    # TODO(synk): F.dropout treated as identity (eval mode).

    # ---- fc2 + clamp + exp ----
    out = jnp.dot(h, w4_ref[...], preferred_element_type=f32) + b4_ref[...]
    o_ref[...] = jnp.exp(jnp.clip(out, -10.0, 10.0)).astype(o_ref.dtype)


# --------------------------- one-time weight prep ----------------------------

def prepare_params(p):
    """Host-side, one-time repack of PyTorch-layout params into kernel layout."""
    w1 = np.asarray(p["conv1_w"], np.float32)    # (10, 1, 5, 5)
    b1 = np.asarray(p["conv1_b"], np.float32)    # (10,)
    w2 = np.asarray(p["conv2_w"], np.float32)    # (20, 10, 5, 5)
    b2 = np.asarray(p["conv2_b"], np.float32)    # (20,)
    fc1 = np.asarray(p["fc1_w"], np.float32)     # (50, 320), k = c*16 + h*4 + w
    fc1b = np.asarray(p["fc1_b"], np.float32)    # (50,)
    fc2 = np.asarray(p["fc2_w"], np.float32)     # (10, 50)
    fc2b = np.asarray(p["fc2_b"], np.float32)    # (10,)

    # conv1 banded matrices (taps folded into K), even / odd output columns:
    #   t1e[i*28 + (2t+j),   t*10 + co] = w1[co, 0, i, j]
    #   t1o[i*28 + (2t+1+j), t*10 + co] = w1[co, 0, i, j]
    t1e = np.zeros((140, 120), np.float32)
    t1o = np.zeros((140, 120), np.float32)
    for i in range(5):
        for t in range(12):
            for j in range(5):
                t1e[i * 28 + 2 * t + j,     t * 10:(t + 1) * 10] = w1[:, 0, i, j]
                t1o[i * 28 + 2 * t + 1 + j, t * 10:(t + 1) * 10] = w1[:, 0, i, j]

    # conv2 banded matrices:
    #   t2e[i*120 + (2t+j)*10 + ci,   t*20 + co] = w2[co, ci, i, j]
    #   t2o[i*120 + (2t+1+j)*10 + ci, t*20 + co] = w2[co, ci, i, j]
    t2e = np.zeros((600, 80), np.float32)
    t2o = np.zeros((600, 80), np.float32)
    for i in range(5):
        for t in range(4):
            for j in range(5):
                for ci in range(10):
                    t2e[i * 120 + (2 * t + j) * 10 + ci,
                        t * 20:(t + 1) * 20] = w2[:, ci, i, j]
                    t2o[i * 120 + (2 * t + 1 + j) * 10 + ci,
                        t * 20:(t + 1) * 20] = w2[:, ci, i, j]

    # fc1: one (80, HID) block per pooled row h, row index = w*20 + c (matching
    # the kernel's z2 lane order), hidden width zero-padded 50 -> HID.
    w3 = np.zeros((4, 80, HID), np.float32)
    fc1_r = fc1.reshape(50, 20, 4, 4)            # (n, c, h, w)
    for h in range(4):
        w3[h, :, :50] = fc1_r[:, :, h, :].transpose(2, 1, 0).reshape(80, 50)
    b3 = np.zeros((1, HID), np.float32)
    b3[0, :50] = fc1b

    # fc2 pre-transposed, K padded to HID with zero rows (inert: h is 0 there).
    w4 = np.zeros((HID, 10), np.float32)
    w4[:50, :] = fc2.T

    return {
        "t1e": jnp.asarray(t1e), "t1o": jnp.asarray(t1o),
        "b1": jnp.asarray(np.tile(b1, 12)[None, :]),     # (1, 120)
        "t2e": jnp.asarray(t2e), "t2o": jnp.asarray(t2o),
        "b2": jnp.asarray(np.tile(b2, 4)[None, :]),      # (1, 80)
        "w3": jnp.asarray(w3), "b3": jnp.asarray(b3),
        "w4": jnp.asarray(w4), "b4": jnp.asarray(fc2b[None, :]),
    }


# --------------------------------- wrapper -----------------------------------

def _pick_tile_b(batch):
    """Tile batch so there are >=2 grid steps when possible (v7x megacore),
    tile is a sublane multiple of 8, and f32 intermediates stay well inside a
    64 MiB (v7x) VMEM budget (<= ~15 MiB live at TILE_B=128)."""
    half = (batch + 1) // 2
    return max(8, min(MAX_TILE_B, ((half + 7) // 8) * 8))


@jax.jit
def model_diri_forward(kparams, x_nchw):
    """Forward pass of model_diri. x_nchw: (B, 1, 28, 28) -> (B, 10)."""
    b = x_nchw.shape[0]
    tile_b = _pick_tile_b(b)                       # static (shape-derived)
    x = x_nchw.reshape(b, 28, 28).astype(jnp.float32)
    bp = pl.cdiv(b, tile_b) * tile_b
    if bp != b:                                    # pad batch to a tile multiple
        x = jnp.pad(x, ((0, bp - b), (0, 0), (0, 0)))

    out = pl.pallas_call(
        _model_diri_kernel,
        out_shape=jax.ShapeDtypeStruct((bp, 10), jnp.float32),
        grid=(bp // tile_b,),
        in_specs=[
            pl.BlockSpec((tile_b, 28, 28), lambda i: (i, 0, 0)),  # batch-tiled
            pl.BlockSpec((140, 120), lambda i: (0, 0)),           # weights stay
            pl.BlockSpec((140, 120), lambda i: (0, 0)),           # VMEM-resident
            pl.BlockSpec((1, 120), lambda i: (0, 0)),
            pl.BlockSpec((600, 80), lambda i: (0, 0)),
            pl.BlockSpec((600, 80), lambda i: (0, 0)),
            pl.BlockSpec((1, 80), lambda i: (0, 0)),
            pl.BlockSpec((4, 80, HID), lambda i: (0, 0, 0)),
            pl.BlockSpec((1, HID), lambda i: (0, 0)),
            pl.BlockSpec((HID, 10), lambda i: (0, 0)),
            pl.BlockSpec((1, 10), lambda i: (0, 0)),
        ],
        out_specs=pl.BlockSpec((tile_b, 10), lambda i: (i, 0)),
        compiler_params=pltpu.CompilerParams(
            dimension_semantics=("parallel",),
            vmem_limit_bytes=48 * 1024 * 1024),    # > v5e's 16 MiB default,
    )(x, kparams["t1e"], kparams["t1o"], kparams["b1"],   # < v7x's 64 MiB phys
      kparams["t2e"], kparams["t2o"], kparams["b2"],
      kparams["w3"], kparams["b3"], kparams["w4"], kparams["b4"])
    return out[:b]


# ------------------------------ init & reference -----------------------------

def init_params(key):
    """Deterministic PyTorch-default-style init (uniform +/- 1/sqrt(fan_in))."""
    ks = jax.random.split(key, 8)

    def u(k, shape, fan_in):
        bound = 1.0 / jnp.sqrt(jnp.float32(fan_in))
        return jax.random.uniform(k, shape, jnp.float32, -bound, bound)

    return {
        "conv1_w": u(ks[0], (10, 1, 5, 5), 1 * 5 * 5),
        "conv1_b": u(ks[1], (10,), 1 * 5 * 5),
        "conv2_w": u(ks[2], (20, 10, 5, 5), 10 * 5 * 5),
        "conv2_b": u(ks[3], (20,), 10 * 5 * 5),
        "fc1_w":   u(ks[4], (50, 320), 320),
        "fc1_b":   u(ks[5], (50,), 320),
        "fc2_w":   u(ks[6], (10, 50), 50),
        "fc2_b":   u(ks[7], (10,), 50),
    }


def model_diri_reference(params, x_nchw):
    """Plain-XLA reference of the PyTorch forward (eval mode)."""
    hi = jax.lax.Precision.HIGHEST
    y = jax.lax.conv_general_dilated(
        x_nchw.astype(jnp.float32), params["conv1_w"], (1, 1), "VALID",
        dimension_numbers=("NCHW", "OIHW", "NCHW"), precision=hi)
    y = y + params["conv1_b"][None, :, None, None]
    y = jax.lax.reduce_window(y, -jnp.inf, jax.lax.max,
                              (1, 1, 2, 2), (1, 1, 2, 2), "VALID")
    y = jnp.maximum(y, 0.0)
    y = jax.lax.conv_general_dilated(
        y, params["conv2_w"], (1, 1), "VALID",
        dimension_numbers=("NCHW", "OIHW", "NCHW"), precision=hi)
    y = y + params["conv2_b"][None, :, None, None]
    y = jax.lax.reduce_window(y, -jnp.inf, jax.lax.max,
                              (1, 1, 2, 2), (1, 1, 2, 2), "VALID")
    y = jnp.maximum(y, 0.0)
    y = y.reshape(y.shape[0], 320)
    y = jnp.maximum(jnp.dot(y, params["fc1_w"].T, precision=hi) + params["fc1_b"], 0.0)
    y = jnp.dot(y, params["fc2_w"].T, precision=hi) + params["fc2_b"]
    return jnp.exp(jnp.clip(y, -10.0, 10.0))


# ----------------------------------- main ------------------------------------

if __name__ == "__main__":
    key = jax.random.PRNGKey(0)
    pkey, xkey = jax.random.split(key)
    params = init_params(pkey)
    kparams = prepare_params(params)          # one-time host-side weight repack

    # Small batch (28x28 single-channel input is required by the 320 flatten).
    x = jax.random.normal(xkey, (2, 1, 28, 28), jnp.float32)
    out = jax.block_until_ready(model_diri_forward(kparams, x))
    assert out.shape == (2, 10), out.shape
    assert out.dtype == jnp.float32
    assert bool(jnp.all(out > 0.0))           # exp(...) must be positive
    assert bool(jnp.all(jnp.isfinite(out)))
    ref = model_diri_reference(params, x)
    assert bool(jnp.allclose(out, ref, rtol=1e-2, atol=1e-5)), (out, ref)

    # Larger, non-tile-multiple batch: exercises the multi-step grid + padding.
    x_big = jax.random.normal(jax.random.PRNGKey(1), (200, 1, 28, 28), jnp.float32)
    out_big = jax.block_until_ready(model_diri_forward(kparams, x_big))
    ref_big = model_diri_reference(params, x_big)
    assert out_big.shape == (200, 10), out_big.shape
    assert bool(jnp.all(jnp.isfinite(out_big)))
    assert bool(jnp.allclose(out_big, ref_big, rtol=1e-2, atol=1e-5))

    print("KERNEL_OK")
</pallas_src>

<mosaic_0001>
module attributes {stable_mosaic.version = 11 : i64} {
  func.func @_model_diri_kernel(%arg0: i32, %arg1: memref<8x28x28xf32, #tpu.memory_space<vmem>>, %arg2: memref<140x120xf32, #tpu.memory_space<vmem>>, %arg3: memref<140x120xf32, #tpu.memory_space<vmem>>, %arg4: memref<1x120xf32, #tpu.memory_space<vmem>>, %arg5: memref<600x80xf32, #tpu.memory_space<vmem>>, %arg6: memref<600x80xf32, #tpu.memory_space<vmem>>, %arg7: memref<1x80xf32, #tpu.memory_space<vmem>>, %arg8: memref<4x80x128xf32, #tpu.memory_space<vmem>>, %arg9: memref<1x128xf32, #tpu.memory_space<vmem>>, %arg10: memref<128x10xf32, #tpu.memory_space<vmem>>, %arg11: memref<1x10xf32, #tpu.memory_space<vmem>>, %arg12: memref<8x10xf32, #tpu.memory_space<vmem>>) attributes {dimension_semantics = [#tpu.dimension_semantics<parallel>], iteration_bounds = array<i64: 1>, scalar_prefetch = 0 : i64, scratch_operands = 0 : i64, tpu.core_type = #tpu.core_type<tc>, window_params = [{transform_indices = @transform_0, window_bounds = array<i64: 8, 28, 28>}, {pipeline_mode = #tpu.pipeline_mode<synchronous>, transform_indices = @transform_1, window_bounds = array<i64: 140, 120>}, {pipeline_mode = #tpu.pipeline_mode<synchronous>, transform_indices = @transform_2, window_bounds = array<i64: 140, 120>}, {pipeline_mode = #tpu.pipeline_mode<synchronous>, transform_indices = @transform_3, window_bounds = array<i64: 1, 120>}, {pipeline_mode = #tpu.pipeline_mode<synchronous>, transform_indices = @transform_4, window_bounds = array<i64: 600, 80>}, {pipeline_mode = #tpu.pipeline_mode<synchronous>, transform_indices = @transform_5, window_bounds = array<i64: 600, 80>}, {pipeline_mode = #tpu.pipeline_mode<synchronous>, transform_indices = @transform_6, window_bounds = array<i64: 1, 80>}, {pipeline_mode = #tpu.pipeline_mode<synchronous>, transform_indices = @transform_7, window_bounds = array<i64: 4, 80, 128>}, {pipeline_mode = #tpu.pipeline_mode<synchronous>, transform_indices = @transform_8, window_bounds = array<i64: 1, 128>}, {pipeline_mode = #tpu.pipeline_mode<synchronous>, transform_indices = @transform_9, window_bounds = array<i64: 128, 10>}, {pipeline_mode = #tpu.pipeline_mode<synchronous>, transform_indices = @transform_10, window_bounds = array<i64: 1, 10>}, {transform_indices = @transform_11, window_bounds = array<i64: 8, 10>}]} {
    %c0 = arith.constant 0 : index
    %c0_0 = arith.constant 0 : index
    %c0_1 = arith.constant 0 : index
    %0 = vector.load %arg1[%c0, %c0_0, %c0_1] : memref<8x28x28xf32, #tpu.memory_space<vmem>>, vector<8x24x28xf32>
    %c0_2 = arith.constant 0 : index
    %c1 = arith.constant 1 : index
    %c0_3 = arith.constant 0 : index
    %1 = vector.load %arg1[%c0_2, %c1, %c0_3] : memref<8x28x28xf32, #tpu.memory_space<vmem>>, vector<8x24x28xf32>
    %c0_4 = arith.constant 0 : index
    %c2 = arith.constant 2 : index
    %c0_5 = arith.constant 0 : index
    %2 = vector.load %arg1[%c0_4, %c2, %c0_5] : memref<8x28x28xf32, #tpu.memory_space<vmem>>, vector<8x24x28xf32>
    %c0_6 = arith.constant 0 : index
    %c3 = arith.constant 3 : index
    %c0_7 = arith.constant 0 : index
    %3 = vector.load %arg1[%c0_6, %c3, %c0_7] : memref<8x28x28xf32, #tpu.memory_space<vmem>>, vector<8x24x28xf32>
    %c0_8 = arith.constant 0 : index
    %c4 = arith.constant 4 : index
    %c0_9 = arith.constant 0 : index
    %4 = vector.load %arg1[%c0_8, %c4, %c0_9] : memref<8x28x28xf32, #tpu.memory_space<vmem>>, vector<8x24x28xf32>
    %5 = tpu.concatenate %0, %1, %2, %3, %4 in 2 : vector<8x24x28xf32>, vector<8x24x28xf32>, vector<8x24x28xf32>, vector<8x24x28xf32>, vector<8x24x28xf32> -> vector<8x24x140xf32>
    %6 = vector.shape_cast %5 : vector<8x24x140xf32> to vector<192x140xf32>
    %c0_10 = arith.constant 0 : index
    %c0_11 = arith.constant 0 : index
    %7 = vector.load %arg2[%c0_10, %c0_11] : memref<140x120xf32, #tpu.memory_space<vmem>>, vector<140x120xf32>
    %cst = arith.constant dense<0.000000e+00> : vector<192x120xf32>
    %8 = tpu.matmul %6, %7, %cst {dimension_numbers = #tpu.dot_dimension_numbers<[1], [0], [0], [1], [0, 0, 1, 1], [], []>} : vector<192x140xf32>, vector<140x120xf32>, vector<192x120xf32> -> vector<192x120xf32>
    %c0_12 = arith.constant 0 : index
    %c0_13 = arith.constant 0 : index
    %9 = vector.load %arg3[%c0_12, %c0_13] : memref<140x120xf32, #tpu.memory_space<vmem>>, vector<140x120xf32>
    %cst_14 = arith.constant dense<0.000000e+00> : vector<192x120xf32>
    %10 = tpu.matmul %6, %9, %cst_14 {dimension_numbers = #tpu.dot_dimension_numbers<[1], [0], [0], [1], [0, 0, 1, 1], [], []>} : vector<192x140xf32>, vector<140x120xf32>, vector<192x120xf32> -> vector<192x120xf32>
    %11 = arith.maximumf %8, %10 : vector<192x120xf32>
    %12 = vector.shape_cast %11 : vector<192x120xf32> to vector<8x12x2x120xf32>
    %cst_15 = arith.constant dense<0xFF800000> : vector<8x12x120xf32>
    %13 = vector.multi_reduction <maximumf>, %12, %cst_15 [2] : vector<8x12x2x120xf32> to vector<8x12x120xf32>
    %c0_16 = arith.constant 0 : index
    %c0_17 = arith.constant 0 : index
    %14 = vector.load %arg4[%c0_16, %c0_17] : memref<1x120xf32, #tpu.memory_space<vmem>>, vector<1x120xf32>
    %15 = vector.shape_cast %14 : vector<1x120xf32> to vector<1x1x120xf32>
    %16 = vector.broadcast %15 : vector<1x1x120xf32> to vector<8x12x120xf32>
    %17 = arith.addf %13, %16 : vector<8x12x120xf32>
    %cst_18 = arith.constant 0.000000e+00 : f32
    %18 = vector.broadcast %cst_18 : f32 to vector<8x12x120xf32>
    %19 = arith.maximumf %17, %18 : vector<8x12x120xf32>
    %20 = vector.extract_strided_slice %19 {offsets = [0, 0, 0], sizes = [8, 8, 120], strides = [1, 1, 1]} : vector<8x12x120xf32> to vector<8x8x120xf32>
    %21 = vector.extract_strided_slice %19 {offsets = [0, 1, 0], sizes = [8, 8, 120], strides = [1, 1, 1]} : vector<8x12x120xf32> to vector<8x8x120xf32>
    %22 = vector.extract_strided_slice %19 {offsets = [0, 2, 0], sizes = [8, 8, 120], strides = [1, 1, 1]} : vector<8x12x120xf32> to vector<8x8x120xf32>
    %23 = vector.extract_strided_slice %19 {offsets = [0, 3, 0], sizes = [8, 8, 120], strides = [1, 1, 1]} : vector<8x12x120xf32> to vector<8x8x120xf32>
    %24 = vector.extract_strided_slice %19 {offsets = [0, 4, 0], sizes = [8, 8, 120], strides = [1, 1, 1]} : vector<8x12x120xf32> to vector<8x8x120xf32>
    %25 = tpu.concatenate %20, %21, %22, %23, %24 in 2 : vector<8x8x120xf32>, vector<8x8x120xf32>, vector<8x8x120xf32>, vector<8x8x120xf32>, vector<8x8x120xf32> -> vector<8x8x600xf32>
    %26 = vector.shape_cast %25 : vector<8x8x600xf32> to vector<64x600xf32>
    %c0_19 = arith.constant 0 : index
    %c0_20 = arith.constant 0 : index
    %27 = vector.load %arg5[%c0_19, %c0_20] : memref<600x80xf32, #tpu.memory_space<vmem>>, vector<600x80xf32>
    %cst_21 = arith.constant dense<0.000000e+00> : vector<64x80xf32>
    %28 = tpu.matmul %26, %27, %cst_21 {dimension_numbers = #tpu.dot_dimension_numbers<[1], [0], [0], [1], [0, 0, 1, 1], [], []>} : vector<64x600xf32>, vector<600x80xf32>, vector<64x80xf32> -> vector<64x80xf32>
    %c0_22 = arith.constant 0 : index
    %c0_23 = arith.constant 0 : index
    %29 = vector.load %arg6[%c0_22, %c0_23] : memref<600x80xf32, #tpu.memory_space<vmem>>, vector<600x80xf32>
    %cst_24 = arith.constant dense<0.000000e+00> : vector<64x80xf32>
    %30 = tpu.matmul %26, %29, %cst_24 {dimension_numbers = #tpu.dot_dimension_numbers<[1], [0], [0], [1], [0, 0, 1, 1], [], []>} : vector<64x600xf32>, vector<600x80xf32>, vector<64x80xf32> -> vector<64x80xf32>
    %31 = arith.maximumf %28, %30 : vector<64x80xf32>
    %32 = vector.shape_cast %31 : vector<64x80xf32> to vector<8x4x2x80xf32>
    %cst_25 = arith.constant dense<0xFF800000> : vector<8x4x80xf32>
    %33 = vector.multi_reduction <maximumf>, %32, %cst_25 [2] : vector<8x4x2x80xf32> to vector<8x4x80xf32>
    %c0_26 = arith.constant 0 : index
    %c0_27 = arith.constant 0 : index
    %34 = vector.load %arg7[%c0_26, %c0_27] : memref<1x80xf32, #tpu.memory_space<vmem>>, vector<1x80xf32>
    %35 = vector.shape_cast %34 : vector<1x80xf32> to vector<1x1x80xf32>
    %36 = vector.broadcast %35 : vector<1x1x80xf32> to vector<8x4x80xf32>
    %37 = arith.addf %33, %36 : vector<8x4x80xf32>
    %cst_28 = arith.constant 0.000000e+00 : f32
    %38 = vector.broadcast %cst_28 : f32 to vector<8x4x80xf32>
    %39 = arith.maximumf %37, %38 : vector<8x4x80xf32>
    %40 = vector.extract_strided_slice %39 {offsets = [0, 0, 0], sizes = [8, 1, 80], strides = [1, 1, 1]} : vector<8x4x80xf32> to vector<8x1x80xf32>
    %41 = vector.shape_cast %40 : vector<8x1x80xf32> to vector<8x80xf32>
    %c0_29 = arith.constant 0 : index
    %c0_30 = arith.constant 0 : index
    %c0_31 = arith.constant 0 : index
    %42 = vector.load %arg8[%c0_29, %c0_30, %c0_31] : memref<4x80x128xf32, #tpu.memory_space<vmem>>, vector<1x80x128xf32>
    %43 = vector.shape_cast %42 : vector<1x80x128xf32> to vector<80x128xf32>
    %cst_32 = arith.constant dense<0.000000e+00> : vector<8x128xf32>
    %44 = tpu.matmul %41, %43, %cst_32 {dimension_numbers = #tpu.dot_dimension_numbers<[1], [0], [0], [1], [0, 0, 1, 1], [], []>} : vector<8x80xf32>, vector<80x128xf32>, vector<8x128xf32> -> vector<8x128xf32>
    %c0_33 = arith.constant 0 : index
    %c0_34 = arith.constant 0 : index
    %45 = vector.load %arg9[%c0_33, %c0_34] : memref<1x128xf32, #tpu.memory_space<vmem>>, vector<1x128xf32>
    %46 = vector.broadcast %45 : vector<1x128xf32> to vector<8x128xf32>
    %47 = arith.addf %44, %46 : vector<8x128xf32>
    %48 = vector.extract_strided_slice %39 {offsets = [0, 1, 0], sizes = [8, 1, 80], strides = [1, 1, 1]} : vector<8x4x80xf32> to vector<8x1x80xf32>
    %49 = vector.shape_cast %48 : vector<8x1x80xf32> to vector<8x80xf32>
    %c1_35 = arith.constant 1 : index
    %c0_36 = arith.constant 0 : index
    %c0_37 = arith.constant 0 : index
    %50 = vector.load %arg8[%c1_35, %c0_36, %c0_37] : memref<4x80x128xf32, #tpu.memory_space<vmem>>, vector<1x80x128xf32>
    %51 = vector.shape_cast %50 : vector<1x80x128xf32> to vector<80x128xf32>
    %cst_38 = arith.constant dense<0.000000e+00> : vector<8x128xf32>
    %52 = tpu.matmul %49, %51, %cst_38 {dimension_numbers = #tpu.dot_dimension_numbers<[1], [0], [0], [1], [0, 0, 1, 1], [], []>} : vector<8x80xf32>, vector<80x128xf32>, vector<8x128xf32> -> vector<8x128xf32>
    %53 = arith.addf %47, %52 : vector<8x128xf32>
    %54 = vector.extract_strided_slice %39 {offsets = [0, 2, 0], sizes = [8, 1, 80], strides = [1, 1, 1]} : vector<8x4x80xf32> to vector<8x1x80xf32>
    %55 = vector.shape_cast %54 : vector<8x1x80xf32> to vector<8x80xf32>
    %c2_39 = arith.constant 2 : index
    %c0_40 = arith.constant 0 : index
    %c0_41 = arith.constant 0 : index
    %56 = vector.load %arg8[%c2_39, %c0_40, %c0_41] : memref<4x80x128xf32, #tpu.memory_space<vmem>>, vector<1x80x128xf32>
    %57 = vector.shape_cast %56 : vector<1x80x128xf32> to vector<80x128xf32>
    %cst_42 = arith.constant dense<0.000000e+00> : vector<8x128xf32>
    %58 = tpu.matmul %55, %57, %cst_42 {dimension_numbers = #tpu.dot_dimension_numbers<[1], [0], [0], [1], [0, 0, 1, 1], [], []>} : vector<8x80xf32>, vector<80x128xf32>, vector<8x128xf32> -> vector<8x128xf32>
    %59 = arith.addf %53, %58 : vector<8x128xf32>
    %60 = vector.extract_strided_slice %39 {offsets = [0, 3, 0], sizes = [8, 1, 80], strides = [1, 1, 1]} : vector<8x4x80xf32> to vector<8x1x80xf32>
    %61 = vector.shape_cast %60 : vector<8x1x80xf32> to vector<8x80xf32>
    %c3_43 = arith.constant 3 : index
    %c0_44 = arith.constant 0 : index
    %c0_45 = arith.constant 0 : index
    %62 = vector.load %arg8[%c3_43, %c0_44, %c0_45] : memref<4x80x128xf32, #tpu.memory_space<vmem>>, vector<1x80x128xf32>
    %63 = vector.shape_cast %62 : vector<1x80x128xf32> to vector<80x128xf32>
    %cst_46 = arith.constant dense<0.000000e+00> : vector<8x128xf32>
    %64 = tpu.matmul %61, %63, %cst_46 {dimension_numbers = #tpu.dot_dimension_numbers<[1], [0], [0], [1], [0, 0, 1, 1], [], []>} : vector<8x80xf32>, vector<80x128xf32>, vector<8x128xf32> -> vector<8x128xf32>
    %65 = arith.addf %59, %64 : vector<8x128xf32>
    %cst_47 = arith.constant 0.000000e+00 : f32
    %66 = vector.broadcast %cst_47 : f32 to vector<8x128xf32>
    %67 = arith.maximumf %65, %66 : vector<8x128xf32>
    %c0_48 = arith.constant 0 : index
    %c0_49 = arith.constant 0 : index
    %68 = vector.load %arg10[%c0_48, %c0_49] : memref<128x10xf32, #tpu.memory_space<vmem>>, vector<128x10xf32>
    %cst_50 = arith.constant dense<0.000000e+00> : vector<8x10xf32>
    %69 = tpu.matmul %67, %68, %cst_50 {dimension_numbers = #tpu.dot_dimension_numbers<[1], [0], [0], [1], [0, 0, 1, 1], [], []>} : vector<8x128xf32>, vector<128x10xf32>, vector<8x10xf32> -> vector<8x10xf32>
    %c0_51 = arith.constant 0 : index
    %c0_52 = arith.constant 0 : index
    %70 = vector.load %arg11[%c0_51, %c0_52] : memref<1x10xf32, #tpu.memory_space<vmem>>, vector<1x10xf32>
    %71 = vector.broadcast %70 : vector<1x10xf32> to vector<8x10xf32>
    %72 = arith.addf %69, %71 : vector<8x10xf32>
    %cst_53 = arith.constant -1.000000e+01 : f32
    %cst_54 = arith.constant 1.000000e+01 : f32
    %73 = vector.broadcast %cst_53 : f32 to vector<8x10xf32>
    %74 = arith.maximumf %73, %72 : vector<8x10xf32>
    %75 = vector.broadcast %cst_54 : f32 to vector<8x10xf32>
    %76 = arith.minimumf %75, %74 : vector<8x10xf32>
    %77 = math.exp %76 : vector<8x10xf32>
    %c0_55 = arith.constant 0 : index
    %c0_56 = arith.constant 0 : index
    %78 = vector.load %arg12[%c0_55, %c0_56] : memref<8x10xf32, #tpu.memory_space<vmem>>, vector<8x10xf32>
    tpu.vector_store %arg12[%c0_55, %c0_56], %77 {strides = array<i32>} : memref<8x10xf32, #tpu.memory_space<vmem>>, vector<8x10xf32>,
    return
  }
  func.func @transform_0(%arg0: i32) -> (i32, i32, i32) {
    %c0_i32 = arith.constant 0 : i32
    %c0_i32_0 = arith.constant 0 : i32
    %c0_i32_1 = arith.constant 0 : i32
    return %arg0, %c0_i32, %c0_i32_0 : i32, i32, i32
  }
  func.func @transform_1(%arg0: i32) -> (i32, i32) {
    %c0_i32 = arith.constant 0 : i32
    %c0_i32_0 = arith.constant 0 : i32
    %c0_i32_1 = arith.constant 0 : i32
    return %c0_i32, %c0_i32_0 : i32, i32
  }
  func.func @transform_2(%arg0: i32) -> (i32, i32) {
    %c0_i32 = arith.constant 0 : i32
    %c0_i32_0 = arith.constant 0 : i32
    %c0_i32_1 = arith.constant 0 : i32
    return %c0_i32, %c0_i32_0 : i32, i32
  }
  func.func @transform_3(%arg0: i32) -> (i32, i32) {
    %c0_i32 = arith.constant 0 : i32
    %c0_i32_0 = arith.constant 0 : i32
    %c0_i32_1 = arith.constant 0 : i32
    return %c0_i32, %c0_i32_0 : i32, i32
  }
  func.func @transform_4(%arg0: i32) -> (i32, i32) {
    %c0_i32 = arith.constant 0 : i32
    %c0_i32_0 = arith.constant 0 : i32
    %c0_i32_1 = arith.constant 0 : i32
    return %c0_i32, %c0_i32_0 : i32, i32
  }
  func.func @transform_5(%arg0: i32) -> (i32, i32) {
    %c0_i32 = arith.constant 0 : i32
    %c0_i32_0 = arith.constant 0 : i32
    %c0_i32_1 = arith.constant 0 : i32
    return %c0_i32, %c0_i32_0 : i32, i32
  }
  func.func @transform_6(%arg0: i32) -> (i32, i32) {
    %c0_i32 = arith.constant 0 : i32
    %c0_i32_0 = arith.constant 0 : i32
    %c0_i32_1 = arith.constant 0 : i32
    return %c0_i32, %c0_i32_0 : i32, i32
  }
  func.func @transform_7(%arg0: i32) -> (i32, i32, i32) {
    %c0_i32 = arith.constant 0 : i32
    %c0_i32_0 = arith.constant 0 : i32
    %c0_i32_1 = arith.constant 0 : i32
    %c0_i32_2 = arith.constant 0 : i32
    return %c0_i32, %c0_i32_0, %c0_i32_1 : i32, i32, i32
  }
  func.func @transform_8(%arg0: i32) -> (i32, i32) {
    %c0_i32 = arith.constant 0 : i32
    %c0_i32_0 = arith.constant 0 : i32
    %c0_i32_1 = arith.constant 0 : i32
    return %c0_i32, %c0_i32_0 : i32, i32
  }
  func.func @transform_9(%arg0: i32) -> (i32, i32) {
    %c0_i32 = arith.constant 0 : i32
    %c0_i32_0 = arith.constant 0 : i32
    %c0_i32_1 = arith.constant 0 : i32
    return %c0_i32, %c0_i32_0 : i32, i32
  }
  func.func @transform_10(%arg0: i32) -> (i32, i32) {
    %c0_i32 = arith.constant 0 : i32
    %c0_i32_0 = arith.constant 0 : i32
    %c0_i32_1 = arith.constant 0 : i32
    return %c0_i32, %c0_i32_0 : i32, i32
  }
  func.func @transform_11(%arg0: i32) -> (i32, i32) {
    %c0_i32 = arith.constant 0 : i32
    %c0_i32_0 = arith.constant 0 : i32
    return %arg0, %c0_i32 : i32, i32
  }
}

</mosaic_0001>

<llo_original>
// kernel: model_diri_forward.1
$region0: #{model_diri_forward.1}
  #allocation0 [shape = 'u32[]', space=smem, size = 0x4, offset = 0x4, fixed_abs, tag = 'smem constant byte address 0x4 - core index']
  #allocation1 [shape = 'u32[144,128]{1,0:T(1,128)}', space=vmem, size = 0x12000, scoped, tag = 'internal scratch']
  %s0 = inlined_call_operand.vmem [shape: f32[8,28,28], index: 0, kind: input, shape index: {}]
  %s1 = inlined_call_operand.vmem [shape: f32[140,120], index: 1, kind: input, shape index: {}]
  %s2 = inlined_call_operand.vmem [shape: f32[140,120], index: 2, kind: input, shape index: {}]
  %s3 = inlined_call_operand.vmem [shape: f32[1,120], index: 3, kind: input, shape index: {}]
  %s4 = inlined_call_operand.vmem [shape: f32[600,80], index: 4, kind: input, shape index: {}]
  %s5 = inlined_call_operand.vmem [shape: f32[600,80], index: 5, kind: input, shape index: {}]
  %s6 = inlined_call_operand.vmem [shape: f32[1,80], index: 6, kind: input, shape index: {}]
  %s7 = inlined_call_operand.vmem [shape: f32[4,80,128], index: 7, kind: input, shape index: {}]
  %s8 = inlined_call_operand.vmem [shape: f32[1,128], index: 8, kind: input, shape index: {}]
  %s9 = inlined_call_operand.vmem [shape: f32[128,10], index: 9, kind: input, shape index: {}]
  %s10 = inlined_call_operand.vmem [shape: f32[1,10], index: 10, kind: input, shape index: {}]
  %s11 = inlined_call_operand.vmem [shape: f32[8,10], index: 11, kind: output, shape index: {}]
  %s12 = sld [smem:[#allocation0]]
  $region54: #{model_diri_forward.1} parent=0
    _
  %s14 = ssub.s32 1, %s12
  %s15 = scalar_select 0, %s14, %s12
  // Predicated region
  $region2: #{model_diri_forward.1} parent=0 // pred_check
    _
  $region3: #{model_diri_forward.1} parent=0 // pred_check_branch
    %17 = sbr.rel (0) target = $region5
  $region4: #{model_diri_forward.1} parent=0 // pred_region
    _
  $region5: #{model_diri_forward.1} parent=0 // pred_fallthru
    _
  // Predicated region
  $region6: #{model_diri_forward.1} parent=0 // pred_check
    _
  $region7: #{model_diri_forward.1} parent=0 // pred_check_branch
    %19 = sbr.rel (0) target = $region9
  $region8: #{model_diri_forward.1} parent=0 // pred_region
    _
  $region9: #{model_diri_forward.1} parent=0 // pred_fallthru
    _
  // Predicated region
  $region10: #{model_diri_forward.1} parent=0 // pred_check
    _
  $region11: #{model_diri_forward.1} parent=0 // pred_check_branch
    %21 = sbr.rel (0) target = $region13
  $region12: #{model_diri_forward.1} parent=0 // pred_region
    _
  $region13: #{model_diri_forward.1} parent=0 // pred_fallthru
    _
  // Predicated region
  $region14: #{model_diri_forward.1} parent=0 // pred_check
    _
  $region15: #{model_diri_forward.1} parent=0 // pred_check_branch
    %23 = sbr.rel (0) target = $region17
  $region16: #{model_diri_forward.1} parent=0 // pred_region
    _
  $region17: #{model_diri_forward.1} parent=0 // pred_fallthru
    _
  // Predicated region
  $region18: #{model_diri_forward.1} parent=0 // pred_check
    _
  $region19: #{model_diri_forward.1} parent=0 // pred_check_branch
    %25 = sbr.rel (0) target = $region21
  $region20: #{model_diri_forward.1} parent=0 // pred_region
    _
  $region21: #{model_diri_forward.1} parent=0 // pred_fallthru
    _
  // Predicated region
  $region22: #{model_diri_forward.1} parent=0 // pred_check
    _
  $region23: #{model_diri_forward.1} parent=0 // pred_check_branch
    %27 = sbr.rel (0) target = $region25
  $region24: #{model_diri_forward.1} parent=0 // pred_region
    _
  $region25: #{model_diri_forward.1} parent=0 // pred_fallthru
    _
  // Predicated region
  $region26: #{model_diri_forward.1} parent=0 // pred_check
    _
  $region27: #{model_diri_forward.1} parent=0 // pred_check_branch
    %29 = sbr.rel (0) target = $region29
  $region28: #{model_diri_forward.1} parent=0 // pred_region
    _
  $region29: #{model_diri_forward.1} parent=0 // pred_fallthru
    _
  // Predicated region
  $region30: #{model_diri_forward.1} parent=0 // pred_check
    _
  $region31: #{model_diri_forward.1} parent=0 // pred_check_branch
    %31 = sbr.rel (0) target = $region33
  $region32: #{model_diri_forward.1} parent=0 // pred_region
    _
  $region33: #{model_diri_forward.1} parent=0 // pred_fallthru
    _
  // Predicated region
  $region34: #{model_diri_forward.1} parent=0 // pred_check
    _
  $region35: #{model_diri_forward.1} parent=0 // pred_check_branch
    %33 = sbr.rel (0) target = $region37
  $region36: #{model_diri_forward.1} parent=0 // pred_region
    _
  $region37: #{model_diri_forward.1} parent=0 // pred_fallthru
    _
  // Predicated region
  $region38: #{model_diri_forward.1} parent=0 // pred_check
    _
  $region39: #{model_diri_forward.1} parent=0 // pred_check_branch
    %35 = sbr.rel (0) target = $region41
  $region40: #{model_diri_forward.1} parent=0 // pred_region
    _
  $region41: #{model_diri_forward.1} parent=0 // pred_fallthru
    _
  // Predicated region
  $region42: #{model_diri_forward.1} parent=0 // pred_check
    _
  $region43: #{model_diri_forward.1} parent=0 // pred_check_branch
    %37 = sbr.rel (0) target = $region45
  $region44: #{model_diri_forward.1} parent=0 // pred_region
    _
  $region45: #{model_diri_forward.1} parent=0 // pred_fallthru
    _
  %v38 = vld [vmem:[%s0] sm:$0xff]
  %v39 = vld [vmem:[%s0 + $0x8] sm:$0xff]
  %v40 = vld [vmem:[%s0 + $0x10] sm:$0xff]
  %v41 = vld [vmem:[%s0 + $0x20] sm:$0xff]
  %v42 = vld [vmem:[%s0 + $0x28] sm:$0xff]
  %v43 = vld [vmem:[%s0 + $0x30] sm:$0xff]
  %v44 = vld [vmem:[%s0 + $0x40] sm:$0xff]
  %v45 = vld [vmem:[%s0 + $0x48] sm:$0xff]
  %v46 = vld [vmem:[%s0 + $0x50] sm:$0xff]
  %v47 = vld [vmem:[%s0 + $0x60] sm:$0xff]
  %v48 = vld [vmem:[%s0 + $0x68] sm:$0xff]
  %v49 = vld [vmem:[%s0 + $0x70] sm:$0xff]
  %v50 = vld [vmem:[%s0 + $0x80] sm:$0xff]
  %v51 = vld [vmem:[%s0 + $0x88] sm:$0xff]
  %v52 = vld [vmem:[%s0 + $0x90] sm:$0xff]
  %v53 = vld [vmem:[%s0 + $0xa0] sm:$0xff]
  %v54 = vld [vmem:[%s0 + $0xa8] sm:$0xff]
  %v55 = vld [vmem:[%s0 + $0xb0] sm:$0xff]
  %v56 = vld [vmem:[%s0 + $0xc0] sm:$0xff]
  %v57 = vld [vmem:[%s0 + $0xc8] sm:$0xff]
  %v58 = vld [vmem:[%s0 + $0xd0] sm:$0xff]
  %v59 = vld [vmem:[%s0 + $0xe0] sm:$0xff]
  %v60 = vld [vmem:[%s0 + $0xe8] sm:$0xff]
  %v61 = vld [vmem:[%s0 + $0xf0] sm:$0xff]
  %v62 = vld [vmem:[%s0 + $0x1] sm:$0xff]
  %v63 = vld [vmem:[%s0 + $0x9] sm:$0xff]
  %v64 = vld [vmem:[%s0 + $0x11] sm:$0xff]
  %v65 = vld [vmem:[%s0 + $0x21] sm:$0xff]
  %v66 = vld [vmem:[%s0 + $0x29] sm:$0xff]
  %v67 = vld [vmem:[%s0 + $0x31] sm:$0xff]
  %v68 = vld [vmem:[%s0 + $0x41] sm:$0xff]
  %v69 = vld [vmem:[%s0 + $0x49] sm:$0xff]
  %v70 = vld [vmem:[%s0 + $0x51] sm:$0xff]
  %v71 = vld [vmem:[%s0 + $0x61] sm:$0xff]
  %v72 = vld [vmem:[%s0 + $0x69] sm:$0xff]
  %v73 = vld [vmem:[%s0 + $0x71] sm:$0xff]
  %v74 = vld [vmem:[%s0 + $0x81] sm:$0xff]
  %v75 = vld [vmem:[%s0 + $0x89] sm:$0xff]
  %v76 = vld [vmem:[%s0 + $0x91] sm:$0xff]
  %v77 = vld [vmem:[%s0 + $0xa1] sm:$0xff]
  %v78 = vld [vmem:[%s0 + $0xa9] sm:$0xff]
  %v79 = vld [vmem:[%s0 + $0xb1] sm:$0xff]
  %v80 = vld [vmem:[%s0 + $0xc1] sm:$0xff]
  %v81 = vld [vmem:[%s0 + $0xc9] sm:$0xff]
  %v82 = vld [vmem:[%s0 + $0xd1] sm:$0xff]
  %v83 = vld [vmem:[%s0 + $0xe1] sm:$0xff]
  %v84 = vld [vmem:[%s0 + $0xe9] sm:$0xff]
  %v85 = vld [vmem:[%s0 + $0xf1] sm:$0xff]
  %v86 = vld [vmem:[%s0 + $0x2] sm:$0xff]
  %v87 = vld [vmem:[%s0 + $0xa] sm:$0xff]
  %v88 = vld [vmem:[%s0 + $0x12] sm:$0xff]
  %v89 = vld [vmem:[%s0 + $0x22] sm:$0xff]
  %v90 = vld [vmem:[%s0 + $0x2a] sm:$0xff]
  %v91 = vld [vmem:[%s0 + $0x32] sm:$0xff]
  %v92 = vld [vmem:[%s0 + $0x42] sm:$0xff]
  %v93 = vld [vmem:[%s0 + $0x4a] sm:$0xff]
  %v94 = vld [vmem:[%s0 + $0x52] sm:$0xff]
  %v95 = vld [vmem:[%s0 + $0x62] sm:$0xff]
  %v96 = vld [vmem:[%s0 + $0x6a] sm:$0xff]
  %v97 = vld [vmem:[%s0 + $0x72] sm:$0xff]
  %v98 = vld [vmem:[%s0 + $0x82] sm:$0xff]
  %v99 = vld [vmem:[%s0 + $0x8a] sm:$0xff]
  %v100 = vld [vmem:[%s0 + $0x92] sm:$0xff]
  %v101 = vld [vmem:[%s0 + $0xa2] sm:$0xff]
  %v102 = vld [vmem:[%s0 + $0xaa] sm:$0xff]
  %v103 = vld [vmem:[%s0 + $0xb2] sm:$0xff]
  %v104 = vld [vmem:[%s0 + $0xc2] sm:$0xff]
  %v105 = vld [vmem:[%s0 + $0xca] sm:$0xff]
  %v106 = vld [vmem:[%s0 + $0xd2] sm:$0xff]
  %v107 = vld [vmem:[%s0 + $0xe2] sm:$0xff]
  %v108 = vld [vmem:[%s0 + $0xea] sm:$0xff]
  %v109 = vld [vmem:[%s0 + $0xf2] sm:$0xff]
  %v110 = vld [vmem:[%s0 + $0x3] sm:$0xff]
  %v111 = vld [vmem:[%s0 + $0xb] sm:$0xff]
  %v112 = vld [vmem:[%s0 + $0x13] sm:$0xff]
  %v113 = vld [vmem:[%s0 + $0x23] sm:$0xff]
  %v114 = vld [vmem:[%s0 + $0x2b] sm:$0xff]
  %v115 = vld [vmem:[%s0 + $0x33] sm:$0xff]
  %v116 = vld [vmem:[%s0 + $0x43] sm:$0xff]
  %v117 = vld [vmem:[%s0 + $0x4b] sm:$0xff]
  %v118 = vld [vmem:[%s0 + $0x53] sm:$0xff]
  %v119 = vld [vmem:[%s0 + $0x63] sm:$0xff]
  %v120 = vld [vmem:[%s0 + $0x6b] sm:$0xff]
  %v121 = vld [vmem:[%s0 + $0x73] sm:$0xff]
  %v122 = vld [vmem:[%s0 + $0x83] sm:$0xff]
  %v123 = vld [vmem:[%s0 + $0x8b] sm:$0xff]
  %v124 = vld [vmem:[%s0 + $0x93] sm:$0xff]
  %v125 = vld [vmem:[%s0 + $0xa3] sm:$0xff]
  %v126 = vld [vmem:[%s0 + $0xab] sm:$0xff]
  %v127 = vld [vmem:[%s0 + $0xb3] sm:$0xff]
  %v128 = vld [vmem:[%s0 + $0xc3] sm:$0xff]
  %v129 = vld [vmem:[%s0 + $0xcb] sm:$0xff]
  %v130 = vld [vmem:[%s0 + $0xd3] sm:$0xff]
  %v131 = vld [vmem:[%s0 + $0xe3] sm:$0xff]
  %v132 = vld [vmem:[%s0 + $0xeb] sm:$0xff]
  %v133 = vld [vmem:[%s0 + $0xf3] sm:$0xff]
  %v134 = vld [vmem:[%s0 + $0x4] sm:$0xff]
  %v135 = vld [vmem:[%s0 + $0xc] sm:$0xff]
  %v136 = vld [vmem:[%s0 + $0x14] sm:$0xff]
  %v137 = vld [vmem:[%s0 + $0x24] sm:$0xff]
  %v138 = vld [vmem:[%s0 + $0x2c] sm:$0xff]
  %v139 = vld [vmem:[%s0 + $0x34] sm:$0xff]
  %v140 = vld [vmem:[%s0 + $0x44] sm:$0xff]
  %v141 = vld [vmem:[%s0 + $0x4c] sm:$0xff]
  %v142 = vld [vmem:[%s0 + $0x54] sm:$0xff]
  %v143 = vld [vmem:[%s0 + $0x64] sm:$0xff]
  %v144 = vld [vmem:[%s0 + $0x6c] sm:$0xff]
  %v145 = vld [vmem:[%s0 + $0x74] sm:$0xff]
  %v146 = vld [vmem:[%s0 + $0x84] sm:$0xff]
  %v147 = vld [vmem:[%s0 + $0x8c] sm:$0xff]
  %v148 = vld [vmem:[%s0 + $0x94] sm:$0xff]
  %v149 = vld [vmem:[%s0 + $0xa4] sm:$0xff]
  %v150 = vld [vmem:[%s0 + $0xac] sm:$0xff]
  %v151 = vld [vmem:[%s0 + $0xb4] sm:$0xff]
  %v152 = vld [vmem:[%s0 + $0xc4] sm:$0xff]
  %v153 = vld [vmem:[%s0 + $0xcc] sm:$0xff]
  %v154 = vld [vmem:[%s0 + $0xd4] sm:$0xff]
  %v155 = vld [vmem:[%s0 + $0xe4] sm:$0xff]
  %v156 = vld [vmem:[%s0 + $0xec] sm:$0xff]
  %v157 = vld [vmem:[%s0 + $0xf4] sm:$0xff]
  %182 = vrot.lane.b32.xlu0 %v62, 28
  %v183 = vpop.permute.xlu0 %182
  %184 = vrot.lane.b32.xlu0 %v63, 28
  %v185 = vpop.permute.xlu0 %184
  %186 = vrot.lane.b32.xlu0 %v64, 28
  %v187 = vpop.permute.xlu0 %186
  %188 = vrot.lane.b32.xlu0 %v65, 28
  %v189 = vpop.permute.xlu0 %188
  %190 = vrot.lane.b32.xlu0 %v66, 28
  %v191 = vpop.permute.xlu0 %190
  %192 = vrot.lane.b32.xlu0 %v67, 28
  %v193 = vpop.permute.xlu0 %192
  %194 = vrot.lane.b32.xlu0 %v68, 28
  %v195 = vpop.permute.xlu0 %194
  %196 = vrot.lane.b32.xlu0 %v69, 28
  %v197 = vpop.permute.xlu0 %196
  %198 = vrot.lane.b32.xlu0 %v70, 28
  %v199 = vpop.permute.xlu0 %198
  %200 = vrot.lane.b32.xlu0 %v71, 28
  %v201 = vpop.permute.xlu0 %200
  %202 = vrot.lane.b32.xlu0 %v72, 28
  %v203 = vpop.permute.xlu0 %202
  %204 = vrot.lane.b32.xlu0 %v73, 28
  %v205 = vpop.permute.xlu0 %204
  %206 = vrot.lane.b32.xlu0 %v74, 28
  %v207 = vpop.permute.xlu0 %206
  %208 = vrot.lane.b32.xlu0 %v75, 28
  %v209 = vpop.permute.xlu0 %208
  %210 = vrot.lane.b32.xlu0 %v76, 28
  %v211 = vpop.permute.xlu0 %210
  %212 = vrot.lane.b32.xlu0 %v77, 28
  %v213 = vpop.permute.xlu0 %212
  %214 = vrot.lane.b32.xlu0 %v78, 28
  %v215 = vpop.permute.xlu0 %214
  %216 = vrot.lane.b32.xlu0 %v79, 28
  %v217 = vpop.permute.xlu0 %216
  %218 = vrot.lane.b32.xlu0 %v80, 28
  %v219 = vpop.permute.xlu0 %218
  %220 = vrot.lane.b32.xlu0 %v81, 28
  %v221 = vpop.permute.xlu0 %220
  %222 = vrot.lane.b32.xlu0 %v82, 28
  %v223 = vpop.permute.xlu0 %222
  %224 = vrot.lane.b32.xlu0 %v83, 28
  %v225 = vpop.permute.xlu0 %224
  %226 = vrot.lane.b32.xlu0 %v84, 28
  %v227 = vpop.permute.xlu0 %226
  %228 = vrot.lane.b32.xlu0 %v85, 28
  %v229 = vpop.permute.xlu0 %228
  %278 = vrot.lane.b32.xlu0 %v86, 56
  %v279 = vpop.permute.xlu0 %278
  %280 = vrot.lane.b32.xlu0 %v87, 56
  %v281 = vpop.permute.xlu0 %280
  %282 = vrot.lane.b32.xlu0 %v88, 56
  %v283 = vpop.permute.xlu0 %282
  %284 = vrot.lane.b32.xlu0 %v89, 56
  %v285 = vpop.permute.xlu0 %284
  %286 = vrot.lane.b32.xlu0 %v90, 56
  %v287 = vpop.permute.xlu0 %286
  %288 = vrot.lane.b32.xlu0 %v91, 56
  %v289 = vpop.permute.xlu0 %288
  %290 = vrot.lane.b32.xlu0 %v92, 56
  %v291 = vpop.permute.xlu0 %290
  %292 = vrot.lane.b32.xlu0 %v93, 56
  %v293 = vpop.permute.xlu0 %292
  %294 = vrot.lane.b32.xlu0 %v94, 56
  %v295 = vpop.permute.xlu0 %294
  %296 = vrot.lane.b32.xlu0 %v95, 56
  %v297 = vpop.permute.xlu0 %296
  %298 = vrot.lane.b32.xlu0 %v96, 56
  %v299 = vpop.permute.xlu0 %298
  %300 = vrot.lane.b32.xlu0 %v97, 56
  %v301 = vpop.permute.xlu0 %300
  %302 = vrot.lane.b32.xlu0 %v98, 56
  %v303 = vpop.permute.xlu0 %302
  %304 = vrot.lane.b32.xlu0 %v99, 56
  %v305 = vpop.permute.xlu0 %304
  %306 = vrot.lane.b32.xlu0 %v100, 56
  %v307 = vpop.permute.xlu0 %306
  %308 = vrot.lane.b32.xlu0 %v101, 56
  %v309 = vpop.permute.xlu0 %308
  %310 = vrot.lane.b32.xlu0 %v102, 56
  %v311 = vpop.permute.xlu0 %310
  %312 = vrot.lane.b32.xlu0 %v103, 56
  %v313 = vpop.permute.xlu0 %312
  %314 = vrot.lane.b32.xlu0 %v104, 56
  %v315 = vpop.permute.xlu0 %314
  %316 = vrot.lane.b32.xlu0 %v105, 56
  %v317 = vpop.permute.xlu0 %316
  %318 = vrot.lane.b32.xlu0 %v106, 56
  %v319 = vpop.permute.xlu0 %318
  %320 = vrot.lane.b32.xlu0 %v107, 56
  %v321 = vpop.permute.xlu0 %320
  %322 = vrot.lane.b32.xlu0 %v108, 56
  %v323 = vpop.permute.xlu0 %322
  %324 = vrot.lane.b32.xlu0 %v109, 56
  %v325 = vpop.permute.xlu0 %324
  %374 = vrot.lane.b32.xlu0 %v110, 84
  %v375 = vpop.permute.xlu0 %374
  %376 = vrot.lane.b32.xlu0 %v111, 84
  %v377 = vpop.permute.xlu0 %376
  %378 = vrot.lane.b32.xlu0 %v112, 84
  %v379 = vpop.permute.xlu0 %378
  %380 = vrot.lane.b32.xlu0 %v113, 84
  %v381 = vpop.permute.xlu0 %380
  %382 = vrot.lane.b32.xlu0 %v114, 84
  %v383 = vpop.permute.xlu0 %382
  %384 = vrot.lane.b32.xlu0 %v115, 84
  %v385 = vpop.permute.xlu0 %384
  %386 = vrot.lane.b32.xlu0 %v116, 84
  %v387 = vpop.permute.xlu0 %386
  %388 = vrot.lane.b32.xlu0 %v117, 84
  %v389 = vpop.permute.xlu0 %388
  %390 = vrot.lane.b32.xlu0 %v118, 84
  %v391 = vpop.permute.xlu0 %390
  %392 = vrot.lane.b32.xlu0 %v119, 84
  %v393 = vpop.permute.xlu0 %392
  %394 = vrot.lane.b32.xlu0 %v120, 84
  %v395 = vpop.permute.xlu0 %394
  %396 = vrot.lane.b32.xlu0 %v121, 84
  %v397 = vpop.permute.xlu0 %396
  %398 = vrot.lane.b32.xlu0 %v122, 84
  %v399 = vpop.permute.xlu0 %398
  %400 = vrot.lane.b32.xlu0 %v123, 84
  %v401 = vpop.permute.xlu0 %400
  %402 = vrot.lane.b32.xlu0 %v124, 84
  %v403 = vpop.permute.xlu0 %402
  %404 = vrot.lane.b32.xlu0 %v125, 84
  %v405 = vpop.permute.xlu0 %404
  %406 = vrot.lane.b32.xlu0 %v126, 84
  %v407 = vpop.permute.xlu0 %406
  %408 = vrot.lane.b32.xlu0 %v127, 84
  %v409 = vpop.permute.xlu0 %408
  %410 = vrot.lane.b32.xlu0 %v128, 84
  %v411 = vpop.permute.xlu0 %410
  %412 = vrot.lane.b32.xlu0 %v129, 84
  %v413 = vpop.permute.xlu0 %412
  %414 = vrot.lane.b32.xlu0 %v130, 84
  %v415 = vpop.permute.xlu0 %414
  %416 = vrot.lane.b32.xlu0 %v131, 84
  %v417 = vpop.permute.xlu0 %416
  %418 = vrot.lane.b32.xlu0 %v132, 84
  %v419 = vpop.permute.xlu0 %418
  %420 = vrot.lane.b32.xlu0 %v133, 84
  %v421 = vpop.permute.xlu0 %420
  %470 = vrot.lane.b32.xlu0 %v134, 112
  %v471 = vpop.permute.xlu0 %470
  %472 = vrot.lane.b32.xlu0 %v135, 112
  %v473 = vpop.permute.xlu0 %472
  %474 = vrot.lane.b32.xlu0 %v136, 112
  %v475 = vpop.permute.xlu0 %474
  %476 = vrot.lane.b32.xlu0 %v137, 112
  %v477 = vpop.permute.xlu0 %476
  %478 = vrot.lane.b32.xlu0 %v138, 112
  %v479 = vpop.permute.xlu0 %478
  %480 = vrot.lane.b32.xlu0 %v139, 112
  %v481 = vpop.permute.xlu0 %480
  %482 = vrot.lane.b32.xlu0 %v140, 112
  %v483 = vpop.permute.xlu0 %482
  %484 = vrot.lane.b32.xlu0 %v141, 112
  %v485 = vpop.permute.xlu0 %484
  %486 = vrot.lane.b32.xlu0 %v142, 112
  %v487 = vpop.permute.xlu0 %486
  %488 = vrot.lane.b32.xlu0 %v143, 112
  %v489 = vpop.permute.xlu0 %488
  %490 = vrot.lane.b32.xlu0 %v144, 112
  %v491 = vpop.permute.xlu0 %490
  %492 = vrot.lane.b32.xlu0 %v145, 112
  %v493 = vpop.permute.xlu0 %492
  %494 = vrot.lane.b32.xlu0 %v146, 112
  %v495 = vpop.permute.xlu0 %494
  %496 = vrot.lane.b32.xlu0 %v147, 112
  %v497 = vpop.permute.xlu0 %496
  %498 = vrot.lane.b32.xlu0 %v148, 112
  %v499 = vpop.permute.xlu0 %498
  %500 = vrot.lane.b32.xlu0 %v149, 112
  %v501 = vpop.permute.xlu0 %500
  %502 = vrot.lane.b32.xlu0 %v150, 112
  %v503 = vpop.permute.xlu0 %502
  %504 = vrot.lane.b32.xlu0 %v151, 112
  %v505 = vpop.permute.xlu0 %504
  %506 = vrot.lane.b32.xlu0 %v152, 112
  %v507 = vpop.permute.xlu0 %506
  %508 = vrot.lane.b32.xlu0 %v153, 112
  %v509 = vpop.permute.xlu0 %508
  %510 = vrot.lane.b32.xlu0 %v154, 112
  %v511 = vpop.permute.xlu0 %510
  %512 = vrot.lane.b32.xlu0 %v155, 112
  %v513 = vpop.permute.xlu0 %512
  %514 = vrot.lane.b32.xlu0 %v156, 112
  %v515 = vpop.permute.xlu0 %514
  %516 = vrot.lane.b32.xlu0 %v157, 112
  %v517 = vpop.permute.xlu0 %516
  %vm542 = vcmask 228352
  %v543 = vsel %vm542, %v38, %v183
  %v544 = vsel %vm542, %v39, %v185
  %v545 = vsel %vm542, %v40, %v187
  %v546 = vsel %vm542, %v41, %v189
  %v547 = vsel %vm542, %v42, %v191
  %v548 = vsel %vm542, %v43, %v193
  %v549 = vsel %vm542, %v44, %v195
  %v550 = vsel %vm542, %v45, %v197
  %v551 = vsel %vm542, %v46, %v199
  %v552 = vsel %vm542, %v47, %v201
  %v553 = vsel %vm542, %v48, %v203
  %v554 = vsel %vm542, %v49, %v205
  %v555 = vsel %vm542, %v50, %v207
  %v556 = vsel %vm542, %v51, %v209
  %v557 = vsel %vm542, %v52, %v211
  %v558 = vsel %vm542, %v53, %v213
  %v559 = vsel %vm542, %v54, %v215
  %v560 = vsel %vm542, %v55, %v217
  %v561 = vsel %vm542, %v56, %v219
  %v562 = vsel %vm542, %v57, %v221
  %v563 = vsel %vm542, %v58, %v223
  %v564 = vsel %vm542, %v59, %v225
  %v565 = vsel %vm542, %v60, %v227
  %v566 = vsel %vm542, %v61, %v229
  %vm567 = vcmask 457728
  %v568 = vsel %vm567, %v543, %v279
  %v569 = vsel %vm567, %v544, %v281
  %v570 = vsel %vm567, %v545, %v283
  %v571 = vsel %vm567, %v546, %v285
  %v572 = vsel %vm567, %v547, %v287
  %v573 = vsel %vm567, %v548, %v289
  %v574 = vsel %vm567, %v549, %v291
  %v575 = vsel %vm567, %v550, %v293
  %v576 = vsel %vm567, %v551, %v295
  %v577 = vsel %vm567, %v552, %v297
  %v578 = vsel %vm567, %v553, %v299
  %v579 = vsel %vm567, %v554, %v301
  %v580 = vsel %vm567, %v555, %v303
  %v581 = vsel %vm567, %v556, %v305
  %v582 = vsel %vm567, %v557, %v307
  %v583 = vsel %vm567, %v558, %v309
  %v584 = vsel %vm567, %v559, %v311
  %v585 = vsel %vm567, %v560, %v313
  %v586 = vsel %vm567, %v561, %v315
  %v587 = vsel %vm567, %v562, %v317
  %v588 = vsel %vm567, %v563, %v319
  %v589 = vsel %vm567, %v564, %v321
  %v590 = vsel %vm567, %v565, %v323
  %v591 = vsel %vm567, %v566, %v325
  %vm592 = vcmask 687104
  %v593 = vsel %vm592, %v568, %v375
  %v594 = vsel %vm592, %v569, %v377
  %v595 = vsel %vm592, %v570, %v379
  %v596 = vsel %vm592, %v571, %v381
  %v597 = vsel %vm592, %v572, %v383
  %v598 = vsel %vm592, %v573, %v385
  %v599 = vsel %vm592, %v574, %v387
  %v600 = vsel %vm592, %v575, %v389
  %v601 = vsel %vm592, %v576, %v391
  %v602 = vsel %vm592, %v577, %v393
  %v603 = vsel %vm592, %v578, %v395
  %v604 = vsel %vm592, %v579, %v397
  %v605 = vsel %vm592, %v580, %v399
  %v606 = vsel %vm592, %v581, %v401
  %v607 = vsel %vm592, %v582, %v403
  %v608 = vsel %vm592, %v583, %v405
  %v609 = vsel %vm592, %v584, %v407
  %v610 = vsel %vm592, %v585, %v409
  %v611 = vsel %vm592, %v586, %v411
  %v612 = vsel %vm592, %v587, %v413
  %v613 = vsel %vm592, %v588, %v415
  %v614 = vsel %vm592, %v589, %v417
  %v615 = vsel %vm592, %v590, %v419
  %v616 = vsel %vm592, %v591, %v421
  %vm617 = vcmask 916480
  %v618 = vsel %vm617, %v593, %v471
  %v619 = vsel %vm617, %v594, %v473
  %v620 = vsel %vm617, %v595, %v475
  %v621 = vsel %vm617, %v596, %v477
  %v622 = vsel %vm617, %v597, %v479
  %v623 = vsel %vm617, %v598, %v481
  %v624 = vsel %vm617, %v599, %v483
  %v625 = vsel %vm617, %v600, %v485
  %v626 = vsel %vm617, %v601, %v487
  %v627 = vsel %vm617, %v602, %v489
  %v628 = vsel %vm617, %v603, %v491
  %v629 = vsel %vm617, %v604, %v493
  %v630 = vsel %vm617, %v605, %v495
  %v631 = vsel %vm617, %v606, %v497
  %v632 = vsel %vm617, %v607, %v499
  %v633 = vsel %vm617, %v608, %v501
  %v634 = vsel %vm617, %v609, %v503
  %v635 = vsel %vm617, %v610, %v505
  %v636 = vsel %vm617, %v611, %v507
  %v637 = vsel %vm617, %v612, %v509
  %v638 = vsel %vm617, %v613, %v511
  %v639 = vsel %vm617, %v614, %v513
  %v640 = vsel %vm617, %v615, %v515
  %v641 = vsel %vm617, %v616, %v517
  %v642 = vld [vmem:[%s1] sm:$0xff]
  %v643 = vld [vmem:[%s1 + $0x8] sm:$0xff]
  %v644 = vld [vmem:[%s1 + $0x10] sm:$0xff]
  %v645 = vld [vmem:[%s1 + $0x18] sm:$0xff]
  %v646 = vld [vmem:[%s1 + $0x20] sm:$0xff]
  %v647 = vld [vmem:[%s1 + $0x28] sm:$0xff]
  %v648 = vld [vmem:[%s1 + $0x30] sm:$0xff]
  %v649 = vld [vmem:[%s1 + $0x38] sm:$0xff]
  %v650 = vld [vmem:[%s1 + $0x40] sm:$0xff]
  %v651 = vld [vmem:[%s1 + $0x48] sm:$0xff]
  %v652 = vld [vmem:[%s1 + $0x50] sm:$0xff]
  %v653 = vld [vmem:[%s1 + $0x58] sm:$0xff]
  %v654 = vld [vmem:[%s1 + $0x60] sm:$0xff]
  %v655 = vld [vmem:[%s1 + $0x68] sm:$0xff]
  %v656 = vld [vmem:[%s1 + $0x70] sm:$0xff]
  %v657 = vld [vmem:[%s1 + $0x78] sm:$0xff]
  %v658 = vld [vmem:[%s1 + $0x80] sm:$0xff]
  %v659 = vld [vmem:[%s1 + $0x88] sm:$0xf]
  %vm660 = vcmask 97280
  %v661 = vsel %vm660, %v471, 0
  %v663 = vsel %vm660, %v473, 0
  %v665 = vsel %vm660, %v475, 0
  %v667 = vsel %vm660, %v477, 0
  %v669 = vsel %vm660, %v479, 0
  %v671 = vsel %vm660, %v481, 0
  %v673 = vsel %vm660, %v483, 0
  %v675 = vsel %vm660, %v485, 0
  %v677 = vsel %vm660, %v487, 0
  %v679 = vsel %vm660, %v489, 0
  %v681 = vsel %vm660, %v491, 0
  %v683 = vsel %vm660, %v493, 0
  %v685 = vsel %vm660, %v495, 0
  %v687 = vsel %vm660, %v497, 0
  %v689 = vsel %vm660, %v499, 0
  %v691 = vsel %vm660, %v501, 0
  %v693 = vsel %vm660, %v503, 0
  %v695 = vsel %vm660, %v505, 0
  %v697 = vsel %vm660, %v507, 0
  %v699 = vsel %vm660, %v509, 0
  %v701 = vsel %vm660, %v511, 0
  %v703 = vsel %vm660, %v513, 0
  %v705 = vsel %vm660, %v515, 0
  %v707 = vsel %vm660, %v517, 0
  %vm709 = vcmask 1043456
  %v711 = vsel %vm709, %v659, 0
  %713 = vmatprep.subr.mxu0 0.0
  %714 = vmatpush1.msra.mxu0 %v642
  %715 = vmatprep.subr.mxu0 0.0
  %716 = vmatpush1.msra.mxu0 %v643
  %717 = vmatprep.subr.mxu0 0.0
  %718 = vmatpush1.msra.mxu0 %v644
  %719 = vmatprep.subr.mxu0 0.0
  %720 = vmatpush1.msra.mxu0 %v645
  %721 = vmatprep.subr.mxu0 0.0
  %722 = vmatpush1.msra.mxu0 %v646
  %723 = vmatprep.subr.mxu0 0.0
  %724 = vmatpush1.msra.mxu0 %v647
  %725 = vmatprep.subr.mxu0 0.0
  %726 = vmatpush1.msra.mxu0 %v648
  %727 = vmatprep.subr.mxu0 0.0
  %728 = vmatpush1.msra.mxu0 %v649
  %729 = vmatprep.subr.mxu0 0.0
  %730 = vmatpush1.msra.mxu0 %v650
  %731 = vmatprep.subr.mxu0 0.0
  %732 = vmatpush1.msra.mxu0 %v651
  %733 = vmatprep.subr.mxu0 0.0
  %734 = vmatpush1.msra.mxu0 %v652
  %735 = vmatprep.subr.mxu0 0.0
  %736 = vmatpush1.msra.mxu0 %v653
  %737 = vmatprep.subr.mxu0 0.0
  %738 = vmatpush1.msra.mxu0 %v654
  %739 = vmatprep.subr.mxu0 0.0
  %740 = vmatpush1.msra.mxu0 %v655
  %741 = vmatprep.subr.mxu0 0.0
  %742 = vmatpush1.msra.mxu0 %v656
  %743 = vmatprep.subr.mxu0 0.0
  %744 = vmatpush1.msra.mxu0 %v657
  %745 = vmatprep.subr.mxu0 0.0
  %746 = vmatpush1.msra.mxu0 %v658
  %747 = vmatprep.subr.mxu0 0.0
  %748 = vmatpush1.msra.mxu0 %v711
  %749 = vmatprep.subr.mxu0 0.0
  %750 = vmatpush1.msra.mxu0 0.0
  %751 = vmatprep.subr.mxu0 0.0
  %752 = vmatpush1.msra.mxu0 0.0
  %753 = vmatprep.subr.mxu0 0.0
  %754 = vmatpush1.msra.mxu0 0.0
  %755 = vmatprep.subr.mxu0 0.0
  %756 = vmatpush1.msra.mxu0 0.0
  %757 = vmatprep.subr.mxu0 0.0
  %758 = vmatpush1.msra.mxu0 0.0
  %759 = vmatprep.subr.mxu0 0.0
  %760 = vmatpush1.msra.mxu0 0.0
  %761 = vmatprep.subr.mxu0 0.0
  %762 = vmatpush1.msra.mxu0 0.0
  %763 = vmatprep.subr.mxu0 0.0
  %764 = vmatpush1.msra.mxu0 0.0
  %765 = vmatprep.subr.mxu0 0.0
  %766 = vmatpush1.msra.mxu0 0.0
  %767 = vmatprep.subr.mxu0 0.0
  %768 = vmatpush1.msra.mxu0 0.0
  %769 = vmatprep.subr.mxu0 0.0
  %770 = vmatpush1.msra.mxu0 0.0
  %771 = vmatprep.subr.mxu0 0.0
  %772 = vmatpush1.msra.mxu0 0.0
  %773 = vmatprep.subr.mxu0 0.0
  %774 = vmatpush1.msra.mxu0 0.0
  %775 = vmatprep.subr.mxu0 0.0
  %776 = vmatpush1.msra.mxu0 0.0
  %777 = vmatprep.mubr.f32.mxu0 %v661
  %778 = vmatmul.mubr.f32.gmra.mrb[0].mxu0 %v618
  %v779 = vpop.f32.mrb[0].mxu0
  %v780 = vadd.f32 0.0, %v779
  %v781 = vpop.f32.mrb[0].mxu0
  %782 = vmatprep.mubr.f32.mxu0 %v663
  %783 = vmatmul.mubr.f32.gmra.mrb[0].mxu0 %v619
  %v784 = vpop.f32.mrb[0].mxu0
  %v785 = vadd.f32 0.0, %v784
  %v786 = vpop.f32.mrb[0].mxu0
  %787 = vmatprep.mubr.f32.mxu0 %v665
  %788 = vmatmul.mubr.f32.gmra.mrb[0].mxu0 %v620
  %v789 = vpop.f32.mrb[0].mxu0
  %v790 = vadd.f32 0.0, %v789
  %v791 = vpop.f32.mrb[0].mxu0
  %792 = vmatprep.mubr.f32.mxu0 %v667
  %793 = vmatmul.mubr.f32.gmra.mrb[0].mxu0 %v621
  %v794 = vpop.f32.mrb[0].mxu0
  %v795 = vadd.f32 0.0, %v794
  %v796 = vpop.f32.mrb[0].mxu0
  %797 = vmatprep.mubr.f32.mxu0 %v669
  %798 = vmatmul.mubr.f32.gmra.mrb[0].mxu0 %v622
  %v799 = vpop.f32.mrb[0].mxu0
  %v800 = vadd.f32 0.0, %v799
  %v801 = vpop.f32.mrb[0].mxu0
  %802 = vmatprep.mubr.f32.mxu0 %v671
  %803 = vmatmul.mubr.f32.gmra.mrb[0].mxu0 %v623
  %v804 = vpop.f32.mrb[0].mxu0
  %v805 = vadd.f32 0.0, %v804
  %v806 = vpop.f32.mrb[0].mxu0
  %807 = vmatprep.mubr.f32.mxu0 %v673
  %808 = vmatmul.mubr.f32.gmra.mrb[0].mxu0 %v624
  %v809 = vpop.f32.mrb[0].mxu0
  %v810 = vadd.f32 0.0, %v809
  %v811 = vpop.f32.mrb[0].mxu0
  %812 = vmatprep.mubr.f32.mxu0 %v675
  %813 = vmatmul.mubr.f32.gmra.mrb[0].mxu0 %v625
  %v814 = vpop.f32.mrb[0].mxu0
  %v815 = vadd.f32 0.0, %v814
  %v816 = vpop.f32.mrb[0].mxu0
  %817 = vmatprep.mubr.f32.mxu0 %v677
  %818 = vmatmul.mubr.f32.gmra.mrb[0].mxu0 %v626
  %v819 = vpop.f32.mrb[0].mxu0
  %v820 = vadd.f32 0.0, %v819
  %v821 = vpop.f32.mrb[0].mxu0
  %822 = vmatprep.mubr.f32.mxu0 %v679
  %823 = vmatmul.mubr.f32.gmra.mrb[0].mxu0 %v627
  %v824 = vpop.f32.mrb[0].mxu0
  %v825 = vadd.f32 0.0, %v824
  %v826 = vpop.f32.mrb[0].mxu0
  %827 = vmatprep.mubr.f32.mxu0 %v681
  %828 = vmatmul.mubr.f32.gmra.mrb[0].mxu0 %v628
  %v829 = vpop.f32.mrb[0].mxu0
  %v830 = vadd.f32 0.0, %v829
  %v831 = vpop.f32.mrb[0].mxu0
  %832 = vmatprep.mubr.f32.mxu0 %v683
  %833 = vmatmul.mubr.f32.gmra.mrb[0].mxu0 %v629
  %v834 = vpop.f32.mrb[0].mxu0
  %v835 = vadd.f32 0.0, %v834
  %v836 = vpop.f32.mrb[0].mxu0
  %837 = vmatprep.mubr.f32.mxu0 %v685
  %838 = vmatmul.mubr.f32.gmra.mrb[0].mxu0 %v630
  %v839 = vpop.f32.mrb[0].mxu0
  %v840 = vadd.f32 0.0, %v839
  %v841 = vpop.f32.mrb[0].mxu0
  %842 = vmatprep.mubr.f32.mxu0 %v687
  %843 = vmatmul.mubr.f32.gmra.mrb[0].mxu0 %v631
  %v844 = vpop.f32.mrb[0].mxu0
  %v845 = vadd.f32 0.0, %v844
  %v846 = vpop.f32.mrb[0].mxu0
  %847 = vmatprep.mubr.f32.mxu0 %v689
  %848 = vmatmul.mubr.f32.gmra.mrb[0].mxu0 %v632
  %v849 = vpop.f32.mrb[0].mxu0
  %v850 = vadd.f32 0.0, %v849
  %v851 = vpop.f32.mrb[0].mxu0
  %852 = vmatprep.mubr.f32.mxu0 %v691
  %853 = vmatmul.mubr.f32.gmra.mrb[0].mxu0 %v633
  %v854 = vpop.f32.mrb[0].mxu0
  %v855 = vadd.f32 0.0, %v854
  %v856 = vpop.f32.mrb[0].mxu0
  %857 = vmatprep.mubr.f32.mxu0 %v693
  %858 = vmatmul.mubr.f32.gmra.mrb[0].mxu0 %v634
  %v859 = vpop.f32.mrb[0].mxu0
  %v860 = vadd.f32 0.0, %v859
  %v861 = vpop.f32.mrb[0].mxu0
  %862 = vmatprep.mubr.f32.mxu0 %v695
  %863 = vmatmul.mubr.f32.gmra.mrb[0].mxu0 %v635
  %v864 = vpop.f32.mrb[0].mxu0
  %v865 = vadd.f32 0.0, %v864
  %v866 = vpop.f32.mrb[0].mxu0
  %867 = vmatprep.mubr.f32.mxu0 %v697
  %868 = vmatmul.mubr.f32.gmra.mrb[0].mxu0 %v636
  %v869 = vpop.f32.mrb[0].mxu0
  %v870 = vadd.f32 0.0, %v869
  %v871 = vpop.f32.mrb[0].mxu0
  %872 = vmatprep.mubr.f32.mxu0 %v699
  %873 = vmatmul.mubr.f32.gmra.mrb[0].mxu0 %v637
  %v874 = vpop.f32.mrb[0].mxu0
  %v875 = vadd.f32 0.0, %v874
  %v876 = vpop.f32.mrb[0].mxu0
  %877 = vmatprep.mubr.f32.mxu0 %v701
  %878 = vmatmul.mubr.f32.gmra.mrb[0].mxu0 %v638
  %v879 = vpop.f32.mrb[0].mxu0
  %v880 = vadd.f32 0.0, %v879
  %v881 = vpop.f32.mrb[0].mxu0
  %882 = vmatprep.mubr.f32.mxu0 %v703
  %883 = vmatmul.mubr.f32.gmra.mrb[0].mxu0 %v639
  %v884 = vpop.f32.mrb[0].mxu0
  %v885 = vadd.f32 0.0, %v884
  %v886 = vpop.f32.mrb[0].mxu0
  %887 = vmatprep.mubr.f32.mxu0 %v705
  %888 = vmatmul.mubr.f32.gmra.mrb[0].mxu0 %v640
  %v889 = vpop.f32.mrb[0].mxu0
  %v890 = vadd.f32 0.0, %v889
  %v891 = vpop.f32.mrb[0].mxu0
  %892 = vmatprep.mubr.f32.mxu0 %v707
  %893 = vmatmul.mubr.f32.gmra.mrb[0].mxu0 %v641
  %v894 = vpop.f32.mrb[0].mxu0
  %v895 = vadd.f32 0.0, %v894
  %v896 = vpop.f32.mrb[0].mxu0
  %897 = vdwg.mxu0
  %v898 = vld [vmem:[%s2] sm:$0xff]
  %v899 = vld [vmem:[%s2 + $0x8] sm:$0xff]
  %v900 = vld [vmem:[%s2 + $0x10] sm:$0xff]
  %v901 = vld [vmem:[%s2 + $0x18] sm:$0xff]
  %v902 = vld [vmem:[%s2 + $0x20] sm:$0xff]
  %v903 = vld [vmem:[%s2 + $0x28] sm:$0xff]
  %v904 = vld [vmem:[%s2 + $0x30] sm:$0xff]
  %v905 = vld [vmem:[%s2 + $0x38] sm:$0xff]
  %v906 = vld [vmem:[%s2 + $0x40] sm:$0xff]
  %v907 = vld [vmem:[%s2 + $0x48] sm:$0xff]
  %v908 = vld [vmem:[%s2 + $0x50] sm:$0xff]
  %v909 = vld [vmem:[%s2 + $0x58] sm:$0xff]
  %v910 = vld [vmem:[%s2 + $0x60] sm:$0xff]
  %v911 = vld [vmem:[%s2 + $0x68] sm:$0xff]
  %v912 = vld [vmem:[%s2 + $0x70] sm:$0xff]
  %v913 = vld [vmem:[%s2 + $0x78] sm:$0xff]
  %v914 = vld [vmem:[%s2 + $0x80] sm:$0xff]
  %v915 = vld [vmem:[%s2 + $0x88] sm:$0xf]
  %v917 = vsel %vm709, %v915, 0
  %919 = vmatprep.subr.mxu0 0.0
  %920 = vmatpush1.msra.mxu0 %v898
  %921 = vmatprep.subr.mxu0 0.0
  %922 = vmatpush1.msra.mxu0 %v899
  %923 = vmatprep.subr.mxu0 0.0
  %924 = vmatpush1.msra.mxu0 %v900
  %925 = vmatprep.subr.mxu0 0.0
  %926 = vmatpush1.msra.mxu0 %v901
  %927 = vmatprep.subr.mxu0 0.0
  %928 = vmatpush1.msra.mxu0 %v902
  %929 = vmatprep.subr.mxu0 0.0
  %930 = vmatpush1.msra.mxu0 %v903
  %931 = vmatprep.subr.mxu0 0.0
  %932 = vmatpush1.msra.mxu0 %v904
  %933 = vmatprep.subr.mxu0 0.0
  %934 = vmatpush1.msra.mxu0 %v905
  %935 = vmatprep.subr.mxu0 0.0
  %936 = vmatpush1.msra.mxu0 %v906
  %937 = vmatprep.subr.mxu0 0.0
  %938 = vmatpush1.msra.mxu0 %v907
  %939 = vmatprep.subr.mxu0 0.0
  %940 = vmatpush1.msra.mxu0 %v908
  %941 = vmatprep.subr.mxu0 0.0
  %942 = vmatpush1.msra.mxu0 %v909
  %943 = vmatprep.subr.mxu0 0.0
  %944 = vmatpush1.msra.mxu0 %v910
  %945 = vmatprep.subr.mxu0 0.0
  %946 = vmatpush1.msra.mxu0 %v911
  %947 = vmatprep.subr.mxu0 0.0
  %948 = vmatpush1.msra.mxu0 %v912
  %949 = vmatprep.subr.mxu0 0.0
  %950 = vmatpush1.msra.mxu0 %v913
  %951 = vmatprep.subr.mxu0 0.0
  %952 = vmatpush1.msra.mxu0 %v914
  %953 = vmatprep.subr.mxu0 0.0
  %954 = vmatpush1.msra.mxu0 %v917
  %955 = vmatprep.subr.mxu0 0.0
  %956 = vmatpush1.msra.mxu0 0.0
  %957 = vmatprep.subr.mxu0 0.0
  %958 = vmatpush1.msra.mxu0 0.0
  %959 = vmatprep.subr.mxu0 0.0
  %960 = vmatpush1.msra.mxu0 0.0
  %961 = vmatprep.subr.mxu0 0.0
  %962 = vmatpush1.msra.mxu0 0.0
  %963 = vmatprep.subr.mxu0 0.0
  %964 = vmatpush1.msra.mxu0 0.0
  %965 = vmatprep.subr.mxu0 0.0
  %966 = vmatpush1.msra.mxu0 0.0
  %967 = vmatprep.subr.mxu0 0.0
  %968 = vmatpush1.msra.mxu0 0.0
  %969 = vmatprep.subr.mxu0 0.0
  %970 = vmatpush1.msra.mxu0 0.0
  %971 = vmatprep.subr.mxu0 0.0
  %972 = vmatpush1.msra.mxu0 0.0
  %973 = vmatprep.subr.mxu0 0.0
  %974 = vmatpush1.msra.mxu0 0.0
  %975 = vmatprep.subr.mxu0 0.0
  %976 = vmatpush1.msra.mxu0 0.0
  %977 = vmatprep.subr.mxu0 0.0
  %978 = vmatpush1.msra.mxu0 0.0
  %979 = vmatprep.subr.mxu0 0.0
  %980 = vmatpush1.msra.mxu0 0.0
  %981 = vmatprep.subr.mxu0 0.0
  %982 = vmatpush1.msra.mxu0 0.0
  %983 = vmatprep.mubr.f32.mxu0 %v661
  %984 = vmatmul.mubr.f32.gmra.mrb[0].mxu0 %v618
  %v985 = vpop.f32.mrb[0].mxu0
  %v986 = vadd.f32 0.0, %v985
  %v987 = vpop.f32.mrb[0].mxu0
  %988 = vmatprep.mubr.f32.mxu0 %v663
  %989 = vmatmul.mubr.f32.gmra.mrb[0].mxu0 %v619
  %v990 = vpop.f32.mrb[0].mxu0
  %v991 = vadd.f32 0.0, %v990
  %v992 = vpop.f32.mrb[0].mxu0
  %993 = vmatprep.mubr.f32.mxu0 %v665
  %994 = vmatmul.mubr.f32.gmra.mrb[0].mxu0 %v620
  %v995 = vpop.f32.mrb[0].mxu0
  %v996 = vadd.f32 0.0, %v995
  %v997 = vpop.f32.mrb[0].mxu0
  %998 = vmatprep.mubr.f32.mxu0 %v667
  %999 = vmatmul.mubr.f32.gmra.mrb[0].mxu0 %v621
  %v1000 = vpop.f32.mrb[0].mxu0
  %v1001 = vadd.f32 0.0, %v1000
  %v1002 = vpop.f32.mrb[0].mxu0
  %1003 = vmatprep.mubr.f32.mxu0 %v669
  %1004 = vmatmul.mubr.f32.gmra.mrb[0].mxu0 %v622
  %v1005 = vpop.f32.mrb[0].mxu0
  %v1006 = vadd.f32 0.0, %v1005
  %v1007 = vpop.f32.mrb[0].mxu0
  %1008 = vmatprep.mubr.f32.mxu0 %v671
  %1009 = vmatmul.mubr.f32.gmra.mrb[0].mxu0 %v623
  %v1010 = vpop.f32.mrb[0].mxu0
  %v1011 = vadd.f32 0.0, %v1010
  %v1012 = vpop.f32.mrb[0].mxu0
  %1013 = vmatprep.mubr.f32.mxu0 %v673
  %1014 = vmatmul.mubr.f32.gmra.mrb[0].mxu0 %v624
  %v1015 = vpop.f32.mrb[0].mxu0
  %v1016 = vadd.f32 0.0, %v1015
  %v1017 = vpop.f32.mrb[0].mxu0
  %1018 = vmatprep.mubr.f32.mxu0 %v675
  %1019 = vmatmul.mubr.f32.gmra.mrb[0].mxu0 %v625
  %v1020 = vpop.f32.mrb[0].mxu0
  %v1021 = vadd.f32 0.0, %v1020
  %v1022 = vpop.f32.mrb[0].mxu0
  %1023 = vmatprep.mubr.f32.mxu0 %v677
  %1024 = vmatmul.mubr.f32.gmra.mrb[0].mxu0 %v626
  %v1025 = vpop.f32.mrb[0].mxu0
  %v1026 = vadd.f32 0.0, %v1025
  %v1027 = vpop.f32.mrb[0].mxu0
  %1028 = vmatprep.mubr.f32.mxu0 %v679
  %1029 = vmatmul.mubr.f32.gmra.mrb[0].mxu0 %v627
  %v1030 = vpop.f32.mrb[0].mxu0
  %v1031 = vadd.f32 0.0, %v1030
  %v1032 = vpop.f32.mrb[0].mxu0
  %1033 = vmatprep.mubr.f32.mxu0 %v681
  %1034 = vmatmul.mubr.f32.gmra.mrb[0].mxu0 %v628
  %v1035 = vpop.f32.mrb[0].mxu0
  %v1036 = vadd.f32 0.0, %v1035
  %v1037 = vpop.f32.mrb[0].mxu0
  %1038 = vmatprep.mubr.f32.mxu0 %v683
  %1039 = vmatmul.mubr.f32.gmra.mrb[0].mxu0 %v629
  %v1040 = vpop.f32.mrb[0].mxu0
  %v1041 = vadd.f32 0.0, %v1040
  %v1042 = vpop.f32.mrb[0].mxu0
  %1043 = vmatprep.mubr.f32.mxu0 %v685
  %1044 = vmatmul.mubr.f32.gmra.mrb[0].mxu0 %v630
  %v1045 = vpop.f32.mrb[0].mxu0
  %v1046 = vadd.f32 0.0, %v1045
  %v1047 = vpop.f32.mrb[0].mxu0
  %1048 = vmatprep.mubr.f32.mxu0 %v687
  %1049 = vmatmul.mubr.f32.gmra.mrb[0].mxu0 %v631
  %v1050 = vpop.f32.mrb[0].mxu0
  %v1051 = vadd.f32 0.0, %v1050
  %v1052 = vpop.f32.mrb[0].mxu0
  %1053 = vmatprep.mubr.f32.mxu0 %v689
  %1054 = vmatmul.mubr.f32.gmra.mrb[0].mxu0 %v632
  %v1055 = vpop.f32.mrb[0].mxu0
  %v1056 = vadd.f32 0.0, %v1055
  %v1057 = vpop.f32.mrb[0].mxu0
  %1058 = vmatprep.mubr.f32.mxu0 %v691
  %1059 = vmatmul.mubr.f32.gmra.mrb[0].mxu0 %v633
  %v1060 = vpop.f32.mrb[0].mxu0
  %v1061 = vadd.f32 0.0, %v1060
  %v1062 = vpop.f32.mrb[0].mxu0
  %1063 = vmatprep.mubr.f32.mxu0 %v693
  %1064 = vmatmul.mubr.f32.gmra.mrb[0].mxu0 %v634
  %v1065 = vpop.f32.mrb[0].mxu0
  %v1066 = vadd.f32 0.0, %v1065
  %v1067 = vpop.f32.mrb[0].mxu0
  %1068 = vmatprep.mubr.f32.mxu0 %v695
  %1069 = vmatmul.mubr.f32.gmra.mrb[0].mxu0 %v635
  %v1070 = vpop.f32.mrb[0].mxu0
  %v1071 = vadd.f32 0.0, %v1070
  %v1072 = vpop.f32.mrb[0].mxu0
  %1073 = vmatprep.mubr.f32.mxu0 %v697
  %1074 = vmatmul.mubr.f32.gmra.mrb[0].mxu0 %v636
  %v1075 = vpop.f32.mrb[0].mxu0
  %v1076 = vadd.f32 0.0, %v1075
  %v1077 = vpop.f32.mrb[0].mxu0
  %1078 = vmatprep.mubr.f32.mxu0 %v699
  %1079 = vmatmul.mubr.f32.gmra.mrb[0].mxu0 %v637
  %v1080 = vpop.f32.mrb[0].mxu0
  %v1081 = vadd.f32 0.0, %v1080
  %v1082 = vpop.f32.mrb[0].mxu0
  %1083 = vmatprep.mubr.f32.mxu0 %v701
  %1084 = vmatmul.mubr.f32.gmra.mrb[0].mxu0 %v638
  %v1085 = vpop.f32.mrb[0].mxu0
  %v1086 = vadd.f32 0.0, %v1085
  %v1087 = vpop.f32.mrb[0].mxu0
  %1088 = vmatprep.mubr.f32.mxu0 %v703
  %1089 = vmatmul.mubr.f32.gmra.mrb[0].mxu0 %v639
  %v1090 = vpop.f32.mrb[0].mxu0
  %v1091 = vadd.f32 0.0, %v1090
  %v1092 = vpop.f32.mrb[0].mxu0
  %1093 = vmatprep.mubr.f32.mxu0 %v705
  %1094 = vmatmul.mubr.f32.gmra.mrb[0].mxu0 %v640
  %v1095 = vpop.f32.mrb[0].mxu0
  %v1096 = vadd.f32 0.0, %v1095
  %v1097 = vpop.f32.mrb[0].mxu0
  %1098 = vmatprep.mubr.f32.mxu0 %v707
  %1099 = vmatmul.mubr.f32.gmra.mrb[0].mxu0 %v641
  %v1100 = vpop.f32.mrb[0].mxu0
  %v1101 = vadd.f32 0.0, %v1100
  %v1102 = vpop.f32.mrb[0].mxu0
  %1103 = vdwg.mxu0
  %v1104 = vmax.f32 %v780, %v986
  %v1105 = vmax.f32 %v785, %v991
  %v1106 = vmax.f32 %v790, %v996
  %v1107 = vmax.f32 %v795, %v1001
  %v1108 = vmax.f32 %v800, %v1006
  %v1109 = vmax.f32 %v805, %v1011
  %v1110 = vmax.f32 %v810, %v1016
  %v1111 = vmax.f32 %v815, %v1021
  %v1112 = vmax.f32 %v820, %v1026
  %v1113 = vmax.f32 %v825, %v1031
  %v1114 = vmax.f32 %v830, %v1036
  %v1115 = vmax.f32 %v835, %v1041
  %v1116 = vmax.f32 %v840, %v1046
  %v1117 = vmax.f32 %v845, %v1051
  %v1118 = vmax.f32 %v850, %v1056
  %v1119 = vmax.f32 %v855, %v1061
  %v1120 = vmax.f32 %v860, %v1066
  %v1121 = vmax.f32 %v865, %v1071
  %v1122 = vmax.f32 %v870, %v1076
  %v1123 = vmax.f32 %v875, %v1081
  %v1124 = vmax.f32 %v880, %v1086
  %v1125 = vmax.f32 %v885, %v1091
  %v1126 = vmax.f32 %v890, %v1096
  %v1127 = vmax.f32 %v895, %v1101
  %v1152 = vcombine.high %v1104, %v1104
  %v1154 = vunpack.c.l.s4 1983009808
  %v1155 = vunpack.c.0.s8 %v1154
  %v1156 = vlaneseq
  %v1157 = vshrl.u32 %v1156, 7
  %v1158 = vsub.s32 %v1155, %v1157
  %v1159 = vrot.slane %v1104, %v1158
  %v1161 = vunpack.c.l.s4 1983009808
  %v1162 = vunpack.c.0.s8 %v1161
  %v1163 = vlaneseq
  %v1164 = vshrl.u32 %v1163, 7
  %v1165 = vsub.s32 %v1162, %v1164
  %v1166 = vrot.slane %v1152, %v1165
  %v1167 = vcombine.high %v1159, %v1159
  %v1168 = vcombine.high %v1166, %v1166
  %v1169 = vcombine.high %v1105, %v1105
  %v1171 = vunpack.c.l.s4 1983009808
  %v1172 = vunpack.c.0.s8 %v1171
  %v1173 = vlaneseq
  %v1174 = vshrl.u32 %v1173, 7
  %v1175 = vsub.s32 %v1172, %v1174
  %v1176 = vrot.slane %v1105, %v1175
  %v1178 = vunpack.c.l.s4 1983009808
  %v1179 = vunpack.c.0.s8 %v1178
  %v1180 = vlaneseq
  %v1181 = vshrl.u32 %v1180, 7
  %v1182 = vsub.s32 %v1179, %v1181
  %v1183 = vrot.slane %v1169, %v1182
  %v1184 = vcombine.high %v1176, %v1176
  %v1185 = vcombine.high %v1183, %v1183
  %v1186 = vcombine.high %v1106, %v1106
  %v1188 = vunpack.c.l.s4 1983009808
  %v1189 = vunpack.c.0.s8 %v1188
  %v1190 = vlaneseq
  %v1191 = vshrl.u32 %v1190, 7
  %v1192 = vsub.s32 %v1189, %v1191
  %v1193 = vrot.slane %v1106, %v1192
  %v1195 = vunpack.c.l.s4 1983009808
  %v1196 = vunpack.c.0.s8 %v1195
  %v1197 = vlaneseq
  %v1198 = vshrl.u32 %v1197, 7
  %v1199 = vsub.s32 %v1196, %v1198
  %v1200 = vrot.slane %v1186, %v1199
  %v1201 = vcombine.high %v1193, %v1193
  %v1202 = vcombine.high %v1200, %v1200
  %v1203 = vcombine.high %v1107, %v1107
  %v1205 = vunpack.c.l.s4 1983009808
  %v1206 = vunpack.c.0.s8 %v1205
  %v1207 = vlaneseq
  %v1208 = vshrl.u32 %v1207, 7
  %v1209 = vsub.s32 %v1206, %v1208
  %v1210 = vrot.slane %v1107, %v1209
  %v1212 = vunpack.c.l.s4 1983009808
  %v1213 = vunpack.c.0.s8 %v1212
  %v1214 = vlaneseq
  %v1215 = vshrl.u32 %v1214, 7
  %v1216 = vsub.s32 %v1213, %v1215
  %v1217 = vrot.slane %v1203, %v1216
  %v1218 = vcombine.high %v1210, %v1210
  %v1219 = vcombine.high %v1217, %v1217
  %v1220 = vcombine.high %v1108, %v1108
  %v1222 = vunpack.c.l.s4 1983009808
  %v1223 = vunpack.c.0.s8 %v1222
  %v1224 = vlaneseq
  %v1225 = vshrl.u32 %v1224, 7
  %v1226 = vsub.s32 %v1223, %v1225
  %v1227 = vrot.slane %v1108, %v1226
  %v1229 = vunpack.c.l.s4 1983009808
  %v1230 = vunpack.c.0.s8 %v1229
  %v1231 = vlaneseq
  %v1232 = vshrl.u32 %v1231, 7
  %v1233 = vsub.s32 %v1230, %v1232
  %v1234 = vrot.slane %v1220, %v1233
  %v1235 = vcombine.high %v1227, %v1227
  %v1236 = vcombine.high %v1234, %v1234
  %v1237 = vcombine.high %v1109, %v1109
  %v1239 = vunpack.c.l.s4 1983009808
  %v1240 = vunpack.c.0.s8 %v1239
  %v1241 = vlaneseq
  %v1242 = vshrl.u32 %v1241, 7
  %v1243 = vsub.s32 %v1240, %v1242
  %v1244 = vrot.slane %v1109, %v1243
  %v1246 = vunpack.c.l.s4 1983009808
  %v1247 = vunpack.c.0.s8 %v1246
  %v1248 = vlaneseq
  %v1249 = vshrl.u32 %v1248, 7
  %v1250 = vsub.s32 %v1247, %v1249
  %v1251 = vrot.slane %v1237, %v1250
  %v1252 = vcombine.high %v1244, %v1244
  %v1253 = vcombine.high %v1251, %v1251
  %v1254 = vcombine.high %v1110, %v1110
  %v1256 = vunpack.c.l.s4 1983009808
  %v1257 = vunpack.c.0.s8 %v1256
  %v1258 = vlaneseq
  %v1259 = vshrl.u32 %v1258, 7
  %v1260 = vsub.s32 %v1257, %v1259
  %v1261 = vrot.slane %v1110, %v1260
  %v1263 = vunpack.c.l.s4 1983009808
  %v1264 = vunpack.c.0.s8 %v1263
  %v1265 = vlaneseq
  %v1266 = vshrl.u32 %v1265, 7
  %v1267 = vsub.s32 %v1264, %v1266
  %v1268 = vrot.slane %v1254, %v1267
  %v1269 = vcombine.high %v1261, %v1261
  %v1270 = vcombine.high %v1268, %v1268
  %v1271 = vcombine.high %v1111, %v1111
  %v1273 = vunpack.c.l.s4 1983009808
  %v1274 = vunpack.c.0.s8 %v1273
  %v1275 = vlaneseq
  %v1276 = vshrl.u32 %v1275, 7
  %v1277 = vsub.s32 %v1274, %v1276
  %v1278 = vrot.slane %v1111, %v1277
  %v1280 = vunpack.c.l.s4 1983009808
  %v1281 = vunpack.c.0.s8 %v1280
  %v1282 = vlaneseq
  %v1283 = vshrl.u32 %v1282, 7
  %v1284 = vsub.s32 %v1281, %v1283
  %v1285 = vrot.slane %v1271, %v1284
  %v1286 = vcombine.high %v1278, %v1278
  %v1287 = vcombine.high %v1285, %v1285
  %v1288 = vcombine.high %v1112, %v1112
  %v1290 = vunpack.c.l.s4 1983009808
  %v1291 = vunpack.c.0.s8 %v1290
  %v1292 = vlaneseq
  %v1293 = vshrl.u32 %v1292, 7
  %v1294 = vsub.s32 %v1291, %v1293
  %v1295 = vrot.slane %v1112, %v1294
  %v1297 = vunpack.c.l.s4 1983009808
  %v1298 = vunpack.c.0.s8 %v1297
  %v1299 = vlaneseq
  %v1300 = vshrl.u32 %v1299, 7
  %v1301 = vsub.s32 %v1298, %v1300
  %v1302 = vrot.slane %v1288, %v1301
  %v1303 = vcombine.high %v1295, %v1295
  %v1304 = vcombine.high %v1302, %v1302
  %v1305 = vcombine.high %v1113, %v1113
  %v1307 = vunpack.c.l.s4 1983009808
  %v1308 = vunpack.c.0.s8 %v1307
  %v1309 = vlaneseq
  %v1310 = vshrl.u32 %v1309, 7
  %v1311 = vsub.s32 %v1308, %v1310
  %v1312 = vrot.slane %v1113, %v1311
  %v1314 = vunpack.c.l.s4 1983009808
  %v1315 = vunpack.c.0.s8 %v1314
  %v1316 = vlaneseq
  %v1317 = vshrl.u32 %v1316, 7
  %v1318 = vsub.s32 %v1315, %v1317
  %v1319 = vrot.slane %v1305, %v1318
  %v1320 = vcombine.high %v1312, %v1312
  %v1321 = vcombine.high %v1319, %v1319
  %v1322 = vcombine.high %v1114, %v1114
  %v1324 = vunpack.c.l.s4 1983009808
  %v1325 = vunpack.c.0.s8 %v1324
  %v1326 = vlaneseq
  %v1327 = vshrl.u32 %v1326, 7
  %v1328 = vsub.s32 %v1325, %v1327
  %v1329 = vrot.slane %v1114, %v1328
  %v1331 = vunpack.c.l.s4 1983009808
  %v1332 = vunpack.c.0.s8 %v1331
  %v1333 = vlaneseq
  %v1334 = vshrl.u32 %v1333, 7
  %v1335 = vsub.s32 %v1332, %v1334
  %v1336 = vrot.slane %v1322, %v1335
  %v1337 = vcombine.high %v1329, %v1329
  %v1338 = vcombine.high %v1336, %v1336
  %v1339 = vcombine.high %v1115, %v1115
  %v1341 = vunpack.c.l.s4 1983009808
  %v1342 = vunpack.c.0.s8 %v1341
  %v1343 = vlaneseq
  %v1344 = vshrl.u32 %v1343, 7
  %v1345 = vsub.s32 %v1342, %v1344
  %v1346 = vrot.slane %v1115, %v1345
  %v1348 = vunpack.c.l.s4 1983009808
  %v1349 = vunpack.c.0.s8 %v1348
  %v1350 = vlaneseq
  %v1351 = vshrl.u32 %v1350, 7
  %v1352 = vsub.s32 %v1349, %v1351
  %v1353 = vrot.slane %v1339, %v1352
  %v1354 = vcombine.high %v1346, %v1346
  %v1355 = vcombine.high %v1353, %v1353
  %v1356 = vcombine.high %v1116, %v1116
  %v1358 = vunpack.c.l.s4 1983009808
  %v1359 = vunpack.c.0.s8 %v1358
  %v1360 = vlaneseq
  %v1361 = vshrl.u32 %v1360, 7
  %v1362 = vsub.s32 %v1359, %v1361
  %v1363 = vrot.slane %v1116, %v1362
  %v1365 = vunpack.c.l.s4 1983009808
  %v1366 = vunpack.c.0.s8 %v1365
  %v1367 = vlaneseq
  %v1368 = vshrl.u32 %v1367, 7
  %v1369 = vsub.s32 %v1366, %v1368
  %v1370 = vrot.slane %v1356, %v1369
  %v1371 = vcombine.high %v1363, %v1363
  %v1372 = vcombine.high %v1370, %v1370
  %v1373 = vcombine.high %v1117, %v1117
  %v1375 = vunpack.c.l.s4 1983009808
  %v1376 = vunpack.c.0.s8 %v1375
  %v1377 = vlaneseq
  %v1378 = vshrl.u32 %v1377, 7
  %v1379 = vsub.s32 %v1376, %v1378
  %v1380 = vrot.slane %v1117, %v1379
  %v1382 = vunpack.c.l.s4 1983009808
  %v1383 = vunpack.c.0.s8 %v1382
  %v1384 = vlaneseq
  %v1385 = vshrl.u32 %v1384, 7
  %v1386 = vsub.s32 %v1383, %v1385
  %v1387 = vrot.slane %v1373, %v1386
  %v1388 = vcombine.high %v1380, %v1380
  %v1389 = vcombine.high %v1387, %v1387
  %v1390 = vcombine.high %v1118, %v1118
  %v1392 = vunpack.c.l.s4 1983009808
  %v1393 = vunpack.c.0.s8 %v1392
  %v1394 = vlaneseq
  %v1395 = vshrl.u32 %v1394, 7
  %v1396 = vsub.s32 %v1393, %v1395
  %v1397 = vrot.slane %v1118, %v1396
  %v1399 = vunpack.c.l.s4 1983009808
  %v1400 = vunpack.c.0.s8 %v1399
  %v1401 = vlaneseq
  %v1402 = vshrl.u32 %v1401, 7
  %v1403 = vsub.s32 %v1400, %v1402
  %v1404 = vrot.slane %v1390, %v1403
  %v1405 = vcombine.high %v1397, %v1397
  %v1406 = vcombine.high %v1404, %v1404
  %v1407 = vcombine.high %v1119, %v1119
  %v1409 = vunpack.c.l.s4 1983009808
  %v1410 = vunpack.c.0.s8 %v1409
  %v1411 = vlaneseq
  %v1412 = vshrl.u32 %v1411, 7
  %v1413 = vsub.s32 %v1410, %v1412
  %v1414 = vrot.slane %v1119, %v1413
  %v1416 = vunpack.c.l.s4 1983009808
  %v1417 = vunpack.c.0.s8 %v1416
  %v1418 = vlaneseq
  %v1419 = vshrl.u32 %v1418, 7
  %v1420 = vsub.s32 %v1417, %v1419
  %v1421 = vrot.slane %v1407, %v1420
  %v1422 = vcombine.high %v1414, %v1414
  %v1423 = vcombine.high %v1421, %v1421
  %v1424 = vcombine.high %v1120, %v1120
  %v1426 = vunpack.c.l.s4 1983009808
  %v1427 = vunpack.c.0.s8 %v1426
  %v1428 = vlaneseq
  %v1429 = vshrl.u32 %v1428, 7
  %v1430 = vsub.s32 %v1427, %v1429
  %v1431 = vrot.slane %v1120, %v1430
  %v1433 = vunpack.c.l.s4 1983009808
  %v1434 = vunpack.c.0.s8 %v1433
  %v1435 = vlaneseq
  %v1436 = vshrl.u32 %v1435, 7
  %v1437 = vsub.s32 %v1434, %v1436
  %v1438 = vrot.slane %v1424, %v1437
  %v1439 = vcombine.high %v1431, %v1431
  %v1440 = vcombine.high %v1438, %v1438
  %v1441 = vcombine.high %v1121, %v1121
  %v1443 = vunpack.c.l.s4 1983009808
  %v1444 = vunpack.c.0.s8 %v1443
  %v1445 = vlaneseq
  %v1446 = vshrl.u32 %v1445, 7
  %v1447 = vsub.s32 %v1444, %v1446
  %v1448 = vrot.slane %v1121, %v1447
  %v1450 = vunpack.c.l.s4 1983009808
  %v1451 = vunpack.c.0.s8 %v1450
  %v1452 = vlaneseq
  %v1453 = vshrl.u32 %v1452, 7
  %v1454 = vsub.s32 %v1451, %v1453
  %v1455 = vrot.slane %v1441, %v1454
  %v1456 = vcombine.high %v1448, %v1448
  %v1457 = vcombine.high %v1455, %v1455
  %v1458 = vcombine.high %v1122, %v1122
  %v1460 = vunpack.c.l.s4 1983009808
  %v1461 = vunpack.c.0.s8 %v1460
  %v1462 = vlaneseq
  %v1463 = vshrl.u32 %v1462, 7
  %v1464 = vsub.s32 %v1461, %v1463
  %v1465 = vrot.slane %v1122, %v1464
  %v1467 = vunpack.c.l.s4 1983009808
  %v1468 = vunpack.c.0.s8 %v1467
  %v1469 = vlaneseq
  %v1470 = vshrl.u32 %v1469, 7
  %v1471 = vsub.s32 %v1468, %v1470
  %v1472 = vrot.slane %v1458, %v1471
  %v1473 = vcombine.high %v1465, %v1465
  %v1474 = vcombine.high %v1472, %v1472
  %v1475 = vcombine.high %v1123, %v1123
  %v1477 = vunpack.c.l.s4 1983009808
  %v1478 = vunpack.c.0.s8 %v1477
  %v1479 = vlaneseq
  %v1480 = vshrl.u32 %v1479, 7
  %v1481 = vsub.s32 %v1478, %v1480
  %v1482 = vrot.slane %v1123, %v1481
  %v1484 = vunpack.c.l.s4 1983009808
  %v1485 = vunpack.c.0.s8 %v1484
  %v1486 = vlaneseq
  %v1487 = vshrl.u32 %v1486, 7
  %v1488 = vsub.s32 %v1485, %v1487
  %v1489 = vrot.slane %v1475, %v1488
  %v1490 = vcombine.high %v1482, %v1482
  %v1491 = vcombine.high %v1489, %v1489
  %v1492 = vcombine.high %v1124, %v1124
  %v1494 = vunpack.c.l.s4 1983009808
  %v1495 = vunpack.c.0.s8 %v1494
  %v1496 = vlaneseq
  %v1497 = vshrl.u32 %v1496, 7
  %v1498 = vsub.s32 %v1495, %v1497
  %v1499 = vrot.slane %v1124, %v1498
  %v1501 = vunpack.c.l.s4 1983009808
  %v1502 = vunpack.c.0.s8 %v1501
  %v1503 = vlaneseq
  %v1504 = vshrl.u32 %v1503, 7
  %v1505 = vsub.s32 %v1502, %v1504
  %v1506 = vrot.slane %v1492, %v1505
  %v1507 = vcombine.high %v1499, %v1499
  %v1508 = vcombine.high %v1506, %v1506
  %v1509 = vcombine.high %v1125, %v1125
  %v1511 = vunpack.c.l.s4 1983009808
  %v1512 = vunpack.c.0.s8 %v1511
  %v1513 = vlaneseq
  %v1514 = vshrl.u32 %v1513, 7
  %v1515 = vsub.s32 %v1512, %v1514
  %v1516 = vrot.slane %v1125, %v1515
  %v1518 = vunpack.c.l.s4 1983009808
  %v1519 = vunpack.c.0.s8 %v1518
  %v1520 = vlaneseq
  %v1521 = vshrl.u32 %v1520, 7
  %v1522 = vsub.s32 %v1519, %v1521
  %v1523 = vrot.slane %v1509, %v1522
  %v1524 = vcombine.high %v1516, %v1516
  %v1525 = vcombine.high %v1523, %v1523
  %v1526 = vcombine.high %v1126, %v1126
  %v1528 = vunpack.c.l.s4 1983009808
  %v1529 = vunpack.c.0.s8 %v1528
  %v1530 = vlaneseq
  %v1531 = vshrl.u32 %v1530, 7
  %v1532 = vsub.s32 %v1529, %v1531
  %v1533 = vrot.slane %v1126, %v1532
  %v1535 = vunpack.c.l.s4 1983009808
  %v1536 = vunpack.c.0.s8 %v1535
  %v1537 = vlaneseq
  %v1538 = vshrl.u32 %v1537, 7
  %v1539 = vsub.s32 %v1536, %v1538
  %v1540 = vrot.slane %v1526, %v1539
  %v1541 = vcombine.high %v1533, %v1533
  %v1542 = vcombine.high %v1540, %v1540
  %v1543 = vcombine.high %v1127, %v1127
  %v1545 = vunpack.c.l.s4 1983009808
  %v1546 = vunpack.c.0.s8 %v1545
  %v1547 = vlaneseq
  %v1548 = vshrl.u32 %v1547, 7
  %v1549 = vsub.s32 %v1546, %v1548
  %v1550 = vrot.slane %v1127, %v1549
  %v1552 = vunpack.c.l.s4 1983009808
  %v1553 = vunpack.c.0.s8 %v1552
  %v1554 = vlaneseq
  %v1555 = vshrl.u32 %v1554, 7
  %v1556 = vsub.s32 %v1553, %v1555
  %v1557 = vrot.slane %v1543, %v1556
  %v1558 = vcombine.high %v1550, %v1550
  %v1559 = vcombine.high %v1557, %v1557
  %vm1656 = vcmask 975872
  %v1657 = vsel %vm1656, %v1159, -inf
  %v1658 = vrot.slane %v1657, 4
  %v1659 = vmax.f32 %v1657, %v1658
  %v1660 = vrot.slane %v1659, 2
  %v1661 = vmax.f32 %v1659, %v1660
  %v1662 = vrot.slane %v1661, 1
  %v1663 = vmax.f32 %v1661, %v1662
  %v1664 = vsel %vm1656, %v1167, -inf
  %v1665 = vrot.slane %v1664, 4
  %v1666 = vmax.f32 %v1664, %v1665
  %v1667 = vrot.slane %v1666, 2
  %v1668 = vmax.f32 %v1666, %v1667
  %v1669 = vrot.slane %v1668, 1
  %v1670 = vmax.f32 %v1668, %v1669
  %v1671 = vsel %vm1656, %v1166, -inf
  %v1672 = vrot.slane %v1671, 4
  %v1673 = vmax.f32 %v1671, %v1672
  %v1674 = vrot.slane %v1673, 2
  %v1675 = vmax.f32 %v1673, %v1674
  %v1676 = vrot.slane %v1675, 1
  %v1677 = vmax.f32 %v1675, %v1676
  %v1678 = vsel %vm1656, %v1168, -inf
  %v1679 = vrot.slane %v1678, 4
  %v1680 = vmax.f32 %v1678, %v1679
  %v1681 = vrot.slane %v1680, 2
  %v1682 = vmax.f32 %v1680, %v1681
  %v1683 = vrot.slane %v1682, 1
  %v1684 = vmax.f32 %v1682, %v1683
  %v1685 = vsel %vm1656, %v1176, -inf
  %v1686 = vrot.slane %v1685, 4
  %v1687 = vmax.f32 %v1685, %v1686
  %v1688 = vrot.slane %v1687, 2
  %v1689 = vmax.f32 %v1687, %v1688
  %v1690 = vrot.slane %v1689, 1
  %v1691 = vmax.f32 %v1689, %v1690
  %v1692 = vsel %vm1656, %v1184, -inf
  %v1693 = vrot.slane %v1692, 4
  %v1694 = vmax.f32 %v1692, %v1693
  %v1695 = vrot.slane %v1694, 2
  %v1696 = vmax.f32 %v1694, %v1695
  %v1697 = vrot.slane %v1696, 1
  %v1698 = vmax.f32 %v1696, %v1697
  %v1699 = vsel %vm1656, %v1183, -inf
  %v1700 = vrot.slane %v1699, 4
  %v1701 = vmax.f32 %v1699, %v1700
  %v1702 = vrot.slane %v1701, 2
  %v1703 = vmax.f32 %v1701, %v1702
  %v1704 = vrot.slane %v1703, 1
  %v1705 = vmax.f32 %v1703, %v1704
  %v1706 = vsel %vm1656, %v1185, -inf
  %v1707 = vrot.slane %v1706, 4
  %v1708 = vmax.f32 %v1706, %v1707
  %v1709 = vrot.slane %v1708, 2
  %v1710 = vmax.f32 %v1708, %v1709
  %v1711 = vrot.slane %v1710, 1
  %v1712 = vmax.f32 %v1710, %v1711
  %v1713 = vsel %vm1656, %v1193, -inf
  %v1714 = vrot.slane %v1713, 4
  %v1715 = vmax.f32 %v1713, %v1714
  %v1716 = vrot.slane %v1715, 2
  %v1717 = vmax.f32 %v1715, %v1716
  %v1718 = vrot.slane %v1717, 1
  %v1719 = vmax.f32 %v1717, %v1718
  %v1720 = vsel %vm1656, %v1201, -inf
  %v1721 = vrot.slane %v1720, 4
  %v1722 = vmax.f32 %v1720, %v1721
  %v1723 = vrot.slane %v1722, 2
  %v1724 = vmax.f32 %v1722, %v1723
  %v1725 = vrot.slane %v1724, 1
  %v1726 = vmax.f32 %v1724, %v1725
  %v1727 = vsel %vm1656, %v1200, -inf
  %v1728 = vrot.slane %v1727, 4
  %v1729 = vmax.f32 %v1727, %v1728
  %v1730 = vrot.slane %v1729, 2
  %v1731 = vmax.f32 %v1729, %v1730
  %v1732 = vrot.slane %v1731, 1
  %v1733 = vmax.f32 %v1731, %v1732
  %v1734 = vsel %vm1656, %v1202, -inf
  %v1735 = vrot.slane %v1734, 4
  %v1736 = vmax.f32 %v1734, %v1735
  %v1737 = vrot.slane %v1736, 2
  %v1738 = vmax.f32 %v1736, %v1737
  %v1739 = vrot.slane %v1738, 1
  %v1740 = vmax.f32 %v1738, %v1739
  %v1741 = vsel %vm1656, %v1210, -inf
  %v1742 = vrot.slane %v1741, 4
  %v1743 = vmax.f32 %v1741, %v1742
  %v1744 = vrot.slane %v1743, 2
  %v1745 = vmax.f32 %v1743, %v1744
  %v1746 = vrot.slane %v1745, 1
  %v1747 = vmax.f32 %v1745, %v1746
  %v1748 = vsel %vm1656, %v1218, -inf
  %v1749 = vrot.slane %v1748, 4
  %v1750 = vmax.f32 %v1748, %v1749
  %v1751 = vrot.slane %v1750, 2
  %v1752 = vmax.f32 %v1750, %v1751
  %v1753 = vrot.slane %v1752, 1
  %v1754 = vmax.f32 %v1752, %v1753
  %v1755 = vsel %vm1656, %v1217, -inf
  %v1756 = vrot.slane %v1755, 4
  %v1757 = vmax.f32 %v1755, %v1756
  %v1758 = vrot.slane %v1757, 2
  %v1759 = vmax.f32 %v1757, %v1758
  %v1760 = vrot.slane %v1759, 1
  %v1761 = vmax.f32 %v1759, %v1760
  %v1762 = vsel %vm1656, %v1219, -inf
  %v1763 = vrot.slane %v1762, 4
  %v1764 = vmax.f32 %v1762, %v1763
  %v1765 = vrot.slane %v1764, 2
  %v1766 = vmax.f32 %v1764, %v1765
  %v1767 = vrot.slane %v1766, 1
  %v1768 = vmax.f32 %v1766, %v1767
  %v1769 = vsel %vm1656, %v1227, -inf
  %v1770 = vrot.slane %v1769, 4
  %v1771 = vmax.f32 %v1769, %v1770
  %v1772 = vrot.slane %v1771, 2
  %v1773 = vmax.f32 %v1771, %v1772
  %v1774 = vrot.slane %v1773, 1
  %v1775 = vmax.f32 %v1773, %v1774
  %v1776 = vsel %vm1656, %v1235, -inf
  %v1777 = vrot.slane %v1776, 4
  %v1778 = vmax.f32 %v1776, %v1777
  %v1779 = vrot.slane %v1778, 2
  %v1780 = vmax.f32 %v1778, %v1779
  %v1781 = vrot.slane %v1780, 1
  %v1782 = vmax.f32 %v1780, %v1781
  %v1783 = vsel %vm1656, %v1234, -inf
  %v1784 = vrot.slane %v1783, 4
  %v1785 = vmax.f32 %v1783, %v1784
  %v1786 = vrot.slane %v1785, 2
  %v1787 = vmax.f32 %v1785, %v1786
  %v1788 = vrot.slane %v1787, 1
  %v1789 = vmax.f32 %v1787, %v1788
  %v1790 = vsel %vm1656, %v1236, -inf
  %v1791 = vrot.slane %v1790, 4
  %v1792 = vmax.f32 %v1790, %v1791
  %v1793 = vrot.slane %v1792, 2
  %v1794 = vmax.f32 %v1792, %v1793
  %v1795 = vrot.slane %v1794, 1
  %v1796 = vmax.f32 %v1794, %v1795
  %v1797 = vsel %vm1656, %v1244, -inf
  %v1798 = vrot.slane %v1797, 4
  %v1799 = vmax.f32 %v1797, %v1798
  %v1800 = vrot.slane %v1799, 2
  %v1801 = vmax.f32 %v1799, %v1800
  %v1802 = vrot.slane %v1801, 1
  %v1803 = vmax.f32 %v1801, %v1802
  %v1804 = vsel %vm1656, %v1252, -inf
  %v1805 = vrot.slane %v1804, 4
  %v1806 = vmax.f32 %v1804, %v1805
  %v1807 = vrot.slane %v1806, 2
  %v1808 = vmax.f32 %v1806, %v1807
  %v1809 = vrot.slane %v1808, 1
  %v1810 = vmax.f32 %v1808, %v1809
  %v1811 = vsel %vm1656, %v1251, -inf
  %v1812 = vrot.slane %v1811, 4
  %v1813 = vmax.f32 %v1811, %v1812
  %v1814 = vrot.slane %v1813, 2
  %v1815 = vmax.f32 %v1813, %v1814
  %v1816 = vrot.slane %v1815, 1
  %v1817 = vmax.f32 %v1815, %v1816
  %v1818 = vsel %vm1656, %v1253, -inf
  %v1819 = vrot.slane %v1818, 4
  %v1820 = vmax.f32 %v1818, %v1819
  %v1821 = vrot.slane %v1820, 2
  %v1822 = vmax.f32 %v1820, %v1821
  %v1823 = vrot.slane %v1822, 1
  %v1824 = vmax.f32 %v1822, %v1823
  %v1825 = vsel %vm1656, %v1261, -inf
  %v1826 = vrot.slane %v1825, 4
  %v1827 = vmax.f32 %v1825, %v1826
  %v1828 = vrot.slane %v1827, 2
  %v1829 = vmax.f32 %v1827, %v1828
  %v1830 = vrot.slane %v1829, 1
  %v1831 = vmax.f32 %v1829, %v1830
  %v1832 = vsel %vm1656, %v1269, -inf
  %v1833 = vrot.slane %v1832, 4
  %v1834 = vmax.f32 %v1832, %v1833
  %v1835 = vrot.slane %v1834, 2
  %v1836 = vmax.f32 %v1834, %v1835
  %v1837 = vrot.slane %v1836, 1
  %v1838 = vmax.f32 %v1836, %v1837
  %v1839 = vsel %vm1656, %v1268, -inf
  %v1840 = vrot.slane %v1839, 4
  %v1841 = vmax.f32 %v1839, %v1840
  %v1842 = vrot.slane %v1841, 2
  %v1843 = vmax.f32 %v1841, %v1842
  %v1844 = vrot.slane %v1843, 1
  %v1845 = vmax.f32 %v1843, %v1844
  %v1846 = vsel %vm1656, %v1270, -inf
  %v1847 = vrot.slane %v1846, 4
  %v1848 = vmax.f32 %v1846, %v1847
  %v1849 = vrot.slane %v1848, 2
  %v1850 = vmax.f32 %v1848, %v1849
  %v1851 = vrot.slane %v1850, 1
  %v1852 = vmax.f32 %v1850, %v1851
  %v1853 = vsel %vm1656, %v1278, -inf
  %v1854 = vrot.slane %v1853, 4
  %v1855 = vmax.f32 %v1853, %v1854
  %v1856 = vrot.slane %v1855, 2
  %v1857 = vmax.f32 %v1855, %v1856
  %v1858 = vrot.slane %v1857, 1
  %v1859 = vmax.f32 %v1857, %v1858
  %v1860 = vsel %vm1656, %v1286, -inf
  %v1861 = vrot.slane %v1860, 4
  %v1862 = vmax.f32 %v1860, %v1861
  %v1863 = vrot.slane %v1862, 2
  %v1864 = vmax.f32 %v1862, %v1863
  %v1865 = vrot.slane %v1864, 1
  %v1866 = vmax.f32 %v1864, %v1865
  %v1867 = vsel %vm1656, %v1285, -inf
  %v1868 = vrot.slane %v1867, 4
  %v1869 = vmax.f32 %v1867, %v1868
  %v1870 = vrot.slane %v1869, 2
  %v1871 = vmax.f32 %v1869, %v1870
  %v1872 = vrot.slane %v1871, 1
  %v1873 = vmax.f32 %v1871, %v1872
  %v1874 = vsel %vm1656, %v1287, -inf
  %v1875 = vrot.slane %v1874, 4
  %v1876 = vmax.f32 %v1874, %v1875
  %v1877 = vrot.slane %v1876, 2
  %v1878 = vmax.f32 %v1876, %v1877
  %v1879 = vrot.slane %v1878, 1
  %v1880 = vmax.f32 %v1878, %v1879
  %v1881 = vsel %vm1656, %v1295, -inf
  %v1882 = vrot.slane %v1881, 4
  %v1883 = vmax.f32 %v1881, %v1882
  %v1884 = vrot.slane %v1883, 2
  %v1885 = vmax.f32 %v1883, %v1884
  %v1886 = vrot.slane %v1885, 1
  %v1887 = vmax.f32 %v1885, %v1886
  %v1888 = vsel %vm1656, %v1303, -inf
  %v1889 = vrot.slane %v1888, 4
  %v1890 = vmax.f32 %v1888, %v1889
  %v1891 = vrot.slane %v1890, 2
  %v1892 = vmax.f32 %v1890, %v1891
  %v1893 = vrot.slane %v1892, 1
  %v1894 = vmax.f32 %v1892, %v1893
  %v1895 = vsel %vm1656, %v1302, -inf
  %v1896 = vrot.slane %v1895, 4
  %v1897 = vmax.f32 %v1895, %v1896
  %v1898 = vrot.slane %v1897, 2
  %v1899 = vmax.f32 %v1897, %v1898
  %v1900 = vrot.slane %v1899, 1
  %v1901 = vmax.f32 %v1899, %v1900
  %v1902 = vsel %vm1656, %v1304, -inf
  %v1903 = vrot.slane %v1902, 4
  %v1904 = vmax.f32 %v1902, %v1903
  %v1905 = vrot.slane %v1904, 2
  %v1906 = vmax.f32 %v1904, %v1905
  %v1907 = vrot.slane %v1906, 1
  %v1908 = vmax.f32 %v1906, %v1907
  %v1909 = vsel %vm1656, %v1312, -inf
  %v1910 = vrot.slane %v1909, 4
  %v1911 = vmax.f32 %v1909, %v1910
  %v1912 = vrot.slane %v1911, 2
  %v1913 = vmax.f32 %v1911, %v1912
  %v1914 = vrot.slane %v1913, 1
  %v1915 = vmax.f32 %v1913, %v1914
  %v1916 = vsel %vm1656, %v1320, -inf
  %v1917 = vrot.slane %v1916, 4
  %v1918 = vmax.f32 %v1916, %v1917
  %v1919 = vrot.slane %v1918, 2
  %v1920 = vmax.f32 %v1918, %v1919
  %v1921 = vrot.slane %v1920, 1
  %v1922 = vmax.f32 %v1920, %v1921
  %v1923 = vsel %vm1656, %v1319, -inf
  %v1924 = vrot.slane %v1923, 4
  %v1925 = vmax.f32 %v1923, %v1924
  %v1926 = vrot.slane %v1925, 2
  %v1927 = vmax.f32 %v1925, %v1926
  %v1928 = vrot.slane %v1927, 1
  %v1929 = vmax.f32 %v1927, %v1928
  %v1930 = vsel %vm1656, %v1321, -inf
  %v1931 = vrot.slane %v1930, 4
  %v1932 = vmax.f32 %v1930, %v1931
  %v1933 = vrot.slane %v1932, 2
  %v1934 = vmax.f32 %v1932, %v1933
  %v1935 = vrot.slane %v1934, 1
  %v1936 = vmax.f32 %v1934, %v1935
  %v1937 = vsel %vm1656, %v1329, -inf
  %v1938 = vrot.slane %v1937, 4
  %v1939 = vmax.f32 %v1937, %v1938
  %v1940 = vrot.slane %v1939, 2
  %v1941 = vmax.f32 %v1939, %v1940
  %v1942 = vrot.slane %v1941, 1
  %v1943 = vmax.f32 %v1941, %v1942
  %v1944 = vsel %vm1656, %v1337, -inf
  %v1945 = vrot.slane %v1944, 4
  %v1946 = vmax.f32 %v1944, %v1945
  %v1947 = vrot.slane %v1946, 2
  %v1948 = vmax.f32 %v1946, %v1947
  %v1949 = vrot.slane %v1948, 1
  %v1950 = vmax.f32 %v1948, %v1949
  %v1951 = vsel %vm1656, %v1336, -inf
  %v1952 = vrot.slane %v1951, 4
  %v1953 = vmax.f32 %v1951, %v1952
  %v1954 = vrot.slane %v1953, 2
  %v1955 = vmax.f32 %v1953, %v1954
  %v1956 = vrot.slane %v1955, 1
  %v1957 = vmax.f32 %v1955, %v1956
  %v1958 = vsel %vm1656, %v1338, -inf
  %v1959 = vrot.slane %v1958, 4
  %v1960 = vmax.f32 %v1958, %v1959
  %v1961 = vrot.slane %v1960, 2
  %v1962 = vmax.f32 %v1960, %v1961
  %v1963 = vrot.slane %v1962, 1
  %v1964 = vmax.f32 %v1962, %v1963
  %v1965 = vsel %vm1656, %v1346, -inf
  %v1966 = vrot.slane %v1965, 4
  %v1967 = vmax.f32 %v1965, %v1966
  %v1968 = vrot.slane %v1967, 2
  %v1969 = vmax.f32 %v1967, %v1968
  %v1970 = vrot.slane %v1969, 1
  %v1971 = vmax.f32 %v1969, %v1970
  %v1972 = vsel %vm1656, %v1354, -inf
  %v1973 = vrot.slane %v1972, 4
  %v1974 = vmax.f32 %v1972, %v1973
  %v1975 = vrot.slane %v1974, 2
  %v1976 = vmax.f32 %v1974, %v1975
  %v1977 = vrot.slane %v1976, 1
  %v1978 = vmax.f32 %v1976, %v1977
  %v1979 = vsel %vm1656, %v1353, -inf
  %v1980 = vrot.slane %v1979, 4
  %v1981 = vmax.f32 %v1979, %v1980
  %v1982 = vrot.slane %v1981, 2
  %v1983 = vmax.f32 %v1981, %v1982
  %v1984 = vrot.slane %v1983, 1
  %v1985 = vmax.f32 %v1983, %v1984
  %v1986 = vsel %vm1656, %v1355, -inf
  %v1987 = vrot.slane %v1986, 4
  %v1988 = vmax.f32 %v1986, %v1987
  %v1989 = vrot.slane %v1988, 2
  %v1990 = vmax.f32 %v1988, %v1989
  %v1991 = vrot.slane %v1990, 1
  %v1992 = vmax.f32 %v1990, %v1991
  %v1993 = vsel %vm1656, %v1363, -inf
  %v1994 = vrot.slane %v1993, 4
  %v1995 = vmax.f32 %v1993, %v1994
  %v1996 = vrot.slane %v1995, 2
  %v1997 = vmax.f32 %v1995, %v1996
  %v1998 = vrot.slane %v1997, 1
  %v1999 = vmax.f32 %v1997, %v1998
  %v2000 = vsel %vm1656, %v1371, -inf
  %v2001 = vrot.slane %v2000, 4
  %v2002 = vmax.f32 %v2000, %v2001
  %v2003 = vrot.slane %v2002, 2
  %v2004 = vmax.f32 %v2002, %v2003
  %v2005 = vrot.slane %v2004, 1
  %v2006 = vmax.f32 %v2004, %v2005
  %v2007 = vsel %vm1656, %v1370, -inf
  %v2008 = vrot.slane %v2007, 4
  %v2009 = vmax.f32 %v2007, %v2008
  %v2010 = vrot.slane %v2009, 2
  %v2011 = vmax.f32 %v2009, %v2010
  %v2012 = vrot.slane %v2011, 1
  %v2013 = vmax.f32 %v2011, %v2012
  %v2014 = vsel %vm1656, %v1372, -inf
  %v2015 = vrot.slane %v2014, 4
  %v2016 = vmax.f32 %v2014, %v2015
  %v2017 = vrot.slane %v2016, 2
  %v2018 = vmax.f32 %v2016, %v2017
  %v2019 = vrot.slane %v2018, 1
  %v2020 = vmax.f32 %v2018, %v2019
  %v2021 = vsel %vm1656, %v1380, -inf
  %v2022 = vrot.slane %v2021, 4
  %v2023 = vmax.f32 %v2021, %v2022
  %v2024 = vrot.slane %v2023, 2
  %v2025 = vmax.f32 %v2023, %v2024
  %v2026 = vrot.slane %v2025, 1
  %v2027 = vmax.f32 %v2025, %v2026
  %v2028 = vsel %vm1656, %v1388, -inf
  %v2029 = vrot.slane %v2028, 4
  %v2030 = vmax.f32 %v2028, %v2029
  %v2031 = vrot.slane %v2030, 2
  %v2032 = vmax.f32 %v2030, %v2031
  %v2033 = vrot.slane %v2032, 1
  %v2034 = vmax.f32 %v2032, %v2033
  %v2035 = vsel %vm1656, %v1387, -inf
  %v2036 = vrot.slane %v2035, 4
  %v2037 = vmax.f32 %v2035, %v2036
  %v2038 = vrot.slane %v2037, 2
  %v2039 = vmax.f32 %v2037, %v2038
  %v2040 = vrot.slane %v2039, 1
  %v2041 = vmax.f32 %v2039, %v2040
  %v2042 = vsel %vm1656, %v1389, -inf
  %v2043 = vrot.slane %v2042, 4
  %v2044 = vmax.f32 %v2042, %v2043
  %v2045 = vrot.slane %v2044, 2
  %v2046 = vmax.f32 %v2044, %v2045
  %v2047 = vrot.slane %v2046, 1
  %v2048 = vmax.f32 %v2046, %v2047
  %v2049 = vsel %vm1656, %v1397, -inf
  %v2050 = vrot.slane %v2049, 4
  %v2051 = vmax.f32 %v2049, %v2050
  %v2052 = vrot.slane %v2051, 2
  %v2053 = vmax.f32 %v2051, %v2052
  %v2054 = vrot.slane %v2053, 1
  %v2055 = vmax.f32 %v2053, %v2054
  %v2056 = vsel %vm1656, %v1405, -inf
  %v2057 = vrot.slane %v2056, 4
  %v2058 = vmax.f32 %v2056, %v2057
  %v2059 = vrot.slane %v2058, 2
  %v2060 = vmax.f32 %v2058, %v2059
  %v2061 = vrot.slane %v2060, 1
  %v2062 = vmax.f32 %v2060, %v2061
  %v2063 = vsel %vm1656, %v1404, -inf
  %v2064 = vrot.slane %v2063, 4
  %v2065 = vmax.f32 %v2063, %v2064
  %v2066 = vrot.slane %v2065, 2
  %v2067 = vmax.f32 %v2065, %v2066
  %v2068 = vrot.slane %v2067, 1
  %v2069 = vmax.f32 %v2067, %v2068
  %v2070 = vsel %vm1656, %v1406, -inf
  %v2071 = vrot.slane %v2070, 4
  %v2072 = vmax.f32 %v2070, %v2071
  %v2073 = vrot.slane %v2072, 2
  %v2074 = vmax.f32 %v2072, %v2073
  %v2075 = vrot.slane %v2074, 1
  %v2076 = vmax.f32 %v2074, %v2075
  %v2077 = vsel %vm1656, %v1414, -inf
  %v2078 = vrot.slane %v2077, 4
  %v2079 = vmax.f32 %v2077, %v2078
  %v2080 = vrot.slane %v2079, 2
  %v2081 = vmax.f32 %v2079, %v2080
  %v2082 = vrot.slane %v2081, 1
  %v2083 = vmax.f32 %v2081, %v2082
  %v2084 = vsel %vm1656, %v1422, -inf
  %v2085 = vrot.slane %v2084, 4
  %v2086 = vmax.f32 %v2084, %v2085
  %v2087 = vrot.slane %v2086, 2
  %v2088 = vmax.f32 %v2086, %v2087
  %v2089 = vrot.slane %v2088, 1
  %v2090 = vmax.f32 %v2088, %v2089
  %v2091 = vsel %vm1656, %v1421, -inf
  %v2092 = vrot.slane %v2091, 4
  %v2093 = vmax.f32 %v2091, %v2092
  %v2094 = vrot.slane %v2093, 2
  %v2095 = vmax.f32 %v2093, %v2094
  %v2096 = vrot.slane %v2095, 1
  %v2097 = vmax.f32 %v2095, %v2096
  %v2098 = vsel %vm1656, %v1423, -inf
  %v2099 = vrot.slane %v2098, 4
  %v2100 = vmax.f32 %v2098, %v2099
  %v2101 = vrot.slane %v2100, 2
  %v2102 = vmax.f32 %v2100, %v2101
  %v2103 = vrot.slane %v2102, 1
  %v2104 = vmax.f32 %v2102, %v2103
  %v2105 = vsel %vm1656, %v1431, -inf
  %v2106 = vrot.slane %v2105, 4
  %v2107 = vmax.f32 %v2105, %v2106
  %v2108 = vrot.slane %v2107, 2
  %v2109 = vmax.f32 %v2107, %v2108
  %v2110 = vrot.slane %v2109, 1
  %v2111 = vmax.f32 %v2109, %v2110
  %v2112 = vsel %vm1656, %v1439, -inf
  %v2113 = vrot.slane %v2112, 4
  %v2114 = vmax.f32 %v2112, %v2113
  %v2115 = vrot.slane %v2114, 2
  %v2116 = vmax.f32 %v2114, %v2115
  %v2117 = vrot.slane %v2116, 1
  %v2118 = vmax.f32 %v2116, %v2117
  %v2119 = vsel %vm1656, %v1438, -inf
  %v2120 = vrot.slane %v2119, 4
  %v2121 = vmax.f32 %v2119, %v2120
  %v2122 = vrot.slane %v2121, 2
  %v2123 = vmax.f32 %v2121, %v2122
  %v2124 = vrot.slane %v2123, 1
  %v2125 = vmax.f32 %v2123, %v2124
  %v2126 = vsel %vm1656, %v1440, -inf
  %v2127 = vrot.slane %v2126, 4
  %v2128 = vmax.f32 %v2126, %v2127
  %v2129 = vrot.slane %v2128, 2
  %v2130 = vmax.f32 %v2128, %v2129
  %v2131 = vrot.slane %v2130, 1
  %v2132 = vmax.f32 %v2130, %v2131
  %v2133 = vsel %vm1656, %v1448, -inf
  %v2134 = vrot.slane %v2133, 4
  %v2135 = vmax.f32 %v2133, %v2134
  %v2136 = vrot.slane %v2135, 2
  %v2137 = vmax.f32 %v2135, %v2136
  %v2138 = vrot.slane %v2137, 1
  %v2139 = vmax.f32 %v2137, %v2138
  %v2140 = vsel %vm1656, %v1456, -inf
  %v2141 = vrot.slane %v2140, 4
  %v2142 = vmax.f32 %v2140, %v2141
  %v2143 = vrot.slane %v2142, 2
  %v2144 = vmax.f32 %v2142, %v2143
  %v2145 = vrot.slane %v2144, 1
  %v2146 = vmax.f32 %v2144, %v2145
  %v2147 = vsel %vm1656, %v1455, -inf
  %v2148 = vrot.slane %v2147, 4
  %v2149 = vmax.f32 %v2147, %v2148
  %v2150 = vrot.slane %v2149, 2
  %v2151 = vmax.f32 %v2149, %v2150
  %v2152 = vrot.slane %v2151, 1
  %v2153 = vmax.f32 %v2151, %v2152
  %v2154 = vsel %vm1656, %v1457, -inf
  %v2155 = vrot.slane %v2154, 4
  %v2156 = vmax.f32 %v2154, %v2155
  %v2157 = vrot.slane %v2156, 2
  %v2158 = vmax.f32 %v2156, %v2157
  %v2159 = vrot.slane %v2158, 1
  %v2160 = vmax.f32 %v2158, %v2159
  %v2161 = vsel %vm1656, %v1465, -inf
  %v2162 = vrot.slane %v2161, 4
  %v2163 = vmax.f32 %v2161, %v2162
  %v2164 = vrot.slane %v2163, 2
  %v2165 = vmax.f32 %v2163, %v2164
  %v2166 = vrot.slane %v2165, 1
  %v2167 = vmax.f32 %v2165, %v2166
  %v2168 = vsel %vm1656, %v1473, -inf
  %v2169 = vrot.slane %v2168, 4
  %v2170 = vmax.f32 %v2168, %v2169
  %v2171 = vrot.slane %v2170, 2
  %v2172 = vmax.f32 %v2170, %v2171
  %v2173 = vrot.slane %v2172, 1
  %v2174 = vmax.f32 %v2172, %v2173
  %v2175 = vsel %vm1656, %v1472, -inf
  %v2176 = vrot.slane %v2175, 4
  %v2177 = vmax.f32 %v2175, %v2176
  %v2178 = vrot.slane %v2177, 2
  %v2179 = vmax.f32 %v2177, %v2178
  %v2180 = vrot.slane %v2179, 1
  %v2181 = vmax.f32 %v2179, %v2180
  %v2182 = vsel %vm1656, %v1474, -inf
  %v2183 = vrot.slane %v2182, 4
  %v2184 = vmax.f32 %v2182, %v2183
  %v2185 = vrot.slane %v2184, 2
  %v2186 = vmax.f32 %v2184, %v2185
  %v2187 = vrot.slane %v2186, 1
  %v2188 = vmax.f32 %v2186, %v2187
  %v2189 = vsel %vm1656, %v1482, -inf
  %v2190 = vrot.slane %v2189, 4
  %v2191 = vmax.f32 %v2189, %v2190
  %v2192 = vrot.slane %v2191, 2
  %v2193 = vmax.f32 %v2191, %v2192
  %v2194 = vrot.slane %v2193, 1
  %v2195 = vmax.f32 %v2193, %v2194
  %v2196 = vsel %vm1656, %v1490, -inf
  %v2197 = vrot.slane %v2196, 4
  %v2198 = vmax.f32 %v2196, %v2197
  %v2199 = vrot.slane %v2198, 2
  %v2200 = vmax.f32 %v2198, %v2199
  %v2201 = vrot.slane %v2200, 1
  %v2202 = vmax.f32 %v2200, %v2201
  %v2203 = vsel %vm1656, %v1489, -inf
  %v2204 = vrot.slane %v2203, 4
  %v2205 = vmax.f32 %v2203, %v2204
  %v2206 = vrot.slane %v2205, 2
  %v2207 = vmax.f32 %v2205, %v2206
  %v2208 = vrot.slane %v2207, 1
  %v2209 = vmax.f32 %v2207, %v2208
  %v2210 = vsel %vm1656, %v1491, -inf
  %v2211 = vrot.slane %v2210, 4
  %v2212 = vmax.f32 %v2210, %v2211
  %v2213 = vrot.slane %v2212, 2
  %v2214 = vmax.f32 %v2212, %v2213
  %v2215 = vrot.slane %v2214, 1
  %v2216 = vmax.f32 %v2214, %v2215
  %v2217 = vsel %vm1656, %v1499, -inf
  %v2218 = vrot.slane %v2217, 4
  %v2219 = vmax.f32 %v2217, %v2218
  %v2220 = vrot.slane %v2219, 2
  %v2221 = vmax.f32 %v2219, %v2220
  %v2222 = vrot.slane %v2221, 1
  %v2223 = vmax.f32 %v2221, %v2222
  %v2224 = vsel %vm1656, %v1507, -inf
  %v2225 = vrot.slane %v2224, 4
  %v2226 = vmax.f32 %v2224, %v2225
  %v2227 = vrot.slane %v2226, 2
  %v2228 = vmax.f32 %v2226, %v2227
  %v2229 = vrot.slane %v2228, 1
  %v2230 = vmax.f32 %v2228, %v2229
  %v2231 = vsel %vm1656, %v1506, -inf
  %v2232 = vrot.slane %v2231, 4
  %v2233 = vmax.f32 %v2231, %v2232
  %v2234 = vrot.slane %v2233, 2
  %v2235 = vmax.f32 %v2233, %v2234
  %v2236 = vrot.slane %v2235, 1
  %v2237 = vmax.f32 %v2235, %v2236
  %v2238 = vsel %vm1656, %v1508, -inf
  %v2239 = vrot.slane %v2238, 4
  %v2240 = vmax.f32 %v2238, %v2239
  %v2241 = vrot.slane %v2240, 2
  %v2242 = vmax.f32 %v2240, %v2241
  %v2243 = vrot.slane %v2242, 1
  %v2244 = vmax.f32 %v2242, %v2243
  %v2245 = vsel %vm1656, %v1516, -inf
  %v2246 = vrot.slane %v2245, 4
  %v2247 = vmax.f32 %v2245, %v2246
  %v2248 = vrot.slane %v2247, 2
  %v2249 = vmax.f32 %v2247, %v2248
  %v2250 = vrot.slane %v2249, 1
  %v2251 = vmax.f32 %v2249, %v2250
  %v2252 = vsel %vm1656, %v1524, -inf
  %v2253 = vrot.slane %v2252, 4
  %v2254 = vmax.f32 %v2252, %v2253
  %v2255 = vrot.slane %v2254, 2
  %v2256 = vmax.f32 %v2254, %v2255
  %v2257 = vrot.slane %v2256, 1
  %v2258 = vmax.f32 %v2256, %v2257
  %v2259 = vsel %vm1656, %v1523, -inf
  %v2260 = vrot.slane %v2259, 4
  %v2261 = vmax.f32 %v2259, %v2260
  %v2262 = vrot.slane %v2261, 2
  %v2263 = vmax.f32 %v2261, %v2262
  %v2264 = vrot.slane %v2263, 1
  %v2265 = vmax.f32 %v2263, %v2264
  %v2266 = vsel %vm1656, %v1525, -inf
  %v2267 = vrot.slane %v2266, 4
  %v2268 = vmax.f32 %v2266, %v2267
  %v2269 = vrot.slane %v2268, 2
  %v2270 = vmax.f32 %v2268, %v2269
  %v2271 = vrot.slane %v2270, 1
  %v2272 = vmax.f32 %v2270, %v2271
  %v2273 = vsel %vm1656, %v1533, -inf
  %v2274 = vrot.slane %v2273, 4
  %v2275 = vmax.f32 %v2273, %v2274
  %v2276 = vrot.slane %v2275, 2
  %v2277 = vmax.f32 %v2275, %v2276
  %v2278 = vrot.slane %v2277, 1
  %v2279 = vmax.f32 %v2277, %v2278
  %v2280 = vsel %vm1656, %v1541, -inf
  %v2281 = vrot.slane %v2280, 4
  %v2282 = vmax.f32 %v2280, %v2281
  %v2283 = vrot.slane %v2282, 2
  %v2284 = vmax.f32 %v2282, %v2283
  %v2285 = vrot.slane %v2284, 1
  %v2286 = vmax.f32 %v2284, %v2285
  %v2287 = vsel %vm1656, %v1540, -inf
  %v2288 = vrot.slane %v2287, 4
  %v2289 = vmax.f32 %v2287, %v2288
  %v2290 = vrot.slane %v2289, 2
  %v2291 = vmax.f32 %v2289, %v2290
  %v2292 = vrot.slane %v2291, 1
  %v2293 = vmax.f32 %v2291, %v2292
  %v2294 = vsel %vm1656, %v1542, -inf
  %v2295 = vrot.slane %v2294, 4
  %v2296 = vmax.f32 %v2294, %v2295
  %v2297 = vrot.slane %v2296, 2
  %v2298 = vmax.f32 %v2296, %v2297
  %v2299 = vrot.slane %v2298, 1
  %v2300 = vmax.f32 %v2298, %v2299
  %v2301 = vsel %vm1656, %v1550, -inf
  %v2302 = vrot.slane %v2301, 4
  %v2303 = vmax.f32 %v2301, %v2302
  %v2304 = vrot.slane %v2303, 2
  %v2305 = vmax.f32 %v2303, %v2304
  %v2306 = vrot.slane %v2305, 1
  %v2307 = vmax.f32 %v2305, %v2306
  %v2308 = vsel %vm1656, %v1558, -inf
  %v2309 = vrot.slane %v2308, 4
  %v2310 = vmax.f32 %v2308, %v2309
  %v2311 = vrot.slane %v2310, 2
  %v2312 = vmax.f32 %v2310, %v2311
  %v2313 = vrot.slane %v2312, 1
  %v2314 = vmax.f32 %v2312, %v2313
  %v2315 = vsel %vm1656, %v1557, -inf
  %v2316 = vrot.slane %v2315, 4
  %v2317 = vmax.f32 %v2315, %v2316
  %v2318 = vrot.slane %v2317, 2
  %v2319 = vmax.f32 %v2317, %v2318
  %v2320 = vrot.slane %v2319, 1
  %v2321 = vmax.f32 %v2319, %v2320
  %v2322 = vsel %vm1656, %v1559, -inf
  %v2323 = vrot.slane %v2322, 4
  %v2324 = vmax.f32 %v2322, %v2323
  %v2325 = vrot.slane %v2324, 2
  %v2326 = vmax.f32 %v2324, %v2325
  %v2327 = vrot.slane %v2326, 1
  %v2328 = vmax.f32 %v2326, %v2327
  %v2329 = vld [vmem:[%s3] sm:$0x1]
  %v2331 = vlaneseq
  %v2332 = vshrl.u32 %v2331, 7
  %v2333 = vsub.s32 0, %v2332
  %v2334 = vrot.slane %v2329, %v2333
  %v2336 = vadd.f32 %v1663, %v2334
  %v2337 = vadd.f32 %v1670, %v2334
  %v2338 = vadd.f32 %v1677, %v2334
  %v2339 = vadd.f32 %v1684, %v2334
  %v2340 = vadd.f32 %v1691, %v2334
  %v2341 = vadd.f32 %v1698, %v2334
  %v2342 = vadd.f32 %v1705, %v2334
  %v2343 = vadd.f32 %v1712, %v2334
  %v2344 = vadd.f32 %v1719, %v2334
  %v2345 = vadd.f32 %v1726, %v2334
  %v2346 = vadd.f32 %v1733, %v2334
  %v2347 = vadd.f32 %v1740, %v2334
  %v2348 = vadd.f32 %v1747, %v2334
  %v2349 = vadd.f32 %v1754, %v2334
  %v2350 = vadd.f32 %v1761, %v2334
  %v2351 = vadd.f32 %v1768, %v2334
  %v2352 = vadd.f32 %v1775, %v2334
  %v2353 = vadd.f32 %v1782, %v2334
  %v2354 = vadd.f32 %v1789, %v2334
  %v2355 = vadd.f32 %v1796, %v2334
  %v2356 = vadd.f32 %v1803, %v2334
  %v2357 = vadd.f32 %v1810, %v2334
  %v2358 = vadd.f32 %v1817, %v2334
  %v2359 = vadd.f32 %v1824, %v2334
  %v2360 = vadd.f32 %v1831, %v2334
  %v2361 = vadd.f32 %v1838, %v2334
  %v2362 = vadd.f32 %v1845, %v2334
  %v2363 = vadd.f32 %v1852, %v2334
  %v2364 = vadd.f32 %v1859, %v2334
  %v2365 = vadd.f32 %v1866, %v2334
  %v2366 = vadd.f32 %v1873, %v2334
  %v2367 = vadd.f32 %v1880, %v2334
  %v2368 = vadd.f32 %v1887, %v2334
  %v2369 = vadd.f32 %v1894, %v2334
  %v2370 = vadd.f32 %v1901, %v2334
  %v2371 = vadd.f32 %v1908, %v2334
  %v2372 = vadd.f32 %v1915, %v2334
  %v2373 = vadd.f32 %v1922, %v2334
  %v2374 = vadd.f32 %v1929, %v2334
  %v2375 = vadd.f32 %v1936, %v2334
  %v2376 = vadd.f32 %v1943, %v2334
  %v2377 = vadd.f32 %v1950, %v2334
  %v2378 = vadd.f32 %v1957, %v2334
  %v2379 = vadd.f32 %v1964, %v2334
  %v2380 = vadd.f32 %v1971, %v2334
  %v2381 = vadd.f32 %v1978, %v2334
  %v2382 = vadd.f32 %v1985, %v2334
  %v2383 = vadd.f32 %v1992, %v2334
  %v2384 = vadd.f32 %v1999, %v2334
  %v2385 = vadd.f32 %v2006, %v2334
  %v2386 = vadd.f32 %v2013, %v2334
  %v2387 = vadd.f32 %v2020, %v2334
  %v2388 = vadd.f32 %v2027, %v2334
  %v2389 = vadd.f32 %v2034, %v2334
  %v2390 = vadd.f32 %v2041, %v2334
  %v2391 = vadd.f32 %v2048, %v2334
  %v2392 = vadd.f32 %v2055, %v2334
  %v2393 = vadd.f32 %v2062, %v2334
  %v2394 = vadd.f32 %v2069, %v2334
  %v2395 = vadd.f32 %v2076, %v2334
  %v2396 = vadd.f32 %v2083, %v2334
  %v2397 = vadd.f32 %v2090, %v2334
  %v2398 = vadd.f32 %v2097, %v2334
  %v2399 = vadd.f32 %v2104, %v2334
  %v2400 = vadd.f32 %v2111, %v2334
  %v2401 = vadd.f32 %v2118, %v2334
  %v2402 = vadd.f32 %v2125, %v2334
  %v2403 = vadd.f32 %v2132, %v2334
  %v2404 = vadd.f32 %v2139, %v2334
  %v2405 = vadd.f32 %v2146, %v2334
  %v2406 = vadd.f32 %v2153, %v2334
  %v2407 = vadd.f32 %v2160, %v2334
  %v2408 = vadd.f32 %v2167, %v2334
  %v2409 = vadd.f32 %v2174, %v2334
  %v2410 = vadd.f32 %v2181, %v2334
  %v2411 = vadd.f32 %v2188, %v2334
  %v2412 = vadd.f32 %v2195, %v2334
  %v2413 = vadd.f32 %v2202, %v2334
  %v2414 = vadd.f32 %v2209, %v2334
  %v2415 = vadd.f32 %v2216, %v2334
  %v2416 = vadd.f32 %v2223, %v2334
  %v2417 = vadd.f32 %v2230, %v2334
  %v2418 = vadd.f32 %v2237, %v2334
  %v2419 = vadd.f32 %v2244, %v2334
  %v2420 = vadd.f32 %v2251, %v2334
  %v2421 = vadd.f32 %v2258, %v2334
  %v2422 = vadd.f32 %v2265, %v2334
  %v2423 = vadd.f32 %v2272, %v2334
  %v2424 = vadd.f32 %v2279, %v2334
  %v2425 = vadd.f32 %v2286, %v2334
  %v2426 = vadd.f32 %v2293, %v2334
  %v2427 = vadd.f32 %v2300, %v2334
  %v2428 = vadd.f32 %v2307, %v2334
  %v2429 = vadd.f32 %v2314, %v2334
  %v2430 = vadd.f32 %v2321, %v2334
  %v2431 = vadd.f32 %v2328, %v2334
  %v2432 = vmax.f32 %v2336, 0.0
  %v2433 = vmax.f32 %v2337, 0.0
  %v2434 = vmax.f32 %v2338, 0.0
  %v2435 = vmax.f32 %v2339, 0.0
  %v2436 = vmax.f32 %v2340, 0.0
  %v2437 = vmax.f32 %v2341, 0.0
  %v2438 = vmax.f32 %v2342, 0.0
  %v2439 = vmax.f32 %v2343, 0.0
  %v2440 = vmax.f32 %v2344, 0.0
  %v2441 = vmax.f32 %v2345, 0.0
  %v2442 = vmax.f32 %v2346, 0.0
  %v2443 = vmax.f32 %v2347, 0.0
  %v2444 = vmax.f32 %v2348, 0.0
  %v2445 = vmax.f32 %v2349, 0.0
  %v2446 = vmax.f32 %v2350, 0.0
  %v2447 = vmax.f32 %v2351, 0.0
  %v2448 = vmax.f32 %v2352, 0.0
  %v2449 = vmax.f32 %v2353, 0.0
  %v2450 = vmax.f32 %v2354, 0.0
  %v2451 = vmax.f32 %v2355, 0.0
  %v2452 = vmax.f32 %v2356, 0.0
  %v2453 = vmax.f32 %v2357, 0.0
  %v2454 = vmax.f32 %v2358, 0.0
  %v2455 = vmax.f32 %v2359, 0.0
  %v2456 = vmax.f32 %v2360, 0.0
  %v2457 = vmax.f32 %v2361, 0.0
  %v2458 = vmax.f32 %v2362, 0.0
  %v2459 = vmax.f32 %v2363, 0.0
  %v2460 = vmax.f32 %v2364, 0.0
  %v2461 = vmax.f32 %v2365, 0.0
  %v2462 = vmax.f32 %v2366, 0.0
  %v2463 = vmax.f32 %v2367, 0.0
  %v2464 = vmax.f32 %v2368, 0.0
  %v2465 = vmax.f32 %v2369, 0.0
  %v2466 = vmax.f32 %v2370, 0.0
  %v2467 = vmax.f32 %v2371, 0.0
  %v2468 = vmax.f32 %v2372, 0.0
  %v2469 = vmax.f32 %v2373, 0.0
  %v2470 = vmax.f32 %v2374, 0.0
  %v2471 = vmax.f32 %v2375, 0.0
  %v2472 = vmax.f32 %v2376, 0.0
  %v2473 = vmax.f32 %v2377, 0.0
  %v2474 = vmax.f32 %v2378, 0.0
  %v2475 = vmax.f32 %v2379, 0.0
  %v2476 = vmax.f32 %v2380, 0.0
  %v2477 = vmax.f32 %v2381, 0.0
  %v2478 = vmax.f32 %v2382, 0.0
  %v2479 = vmax.f32 %v2383, 0.0
  %v2480 = vmax.f32 %v2384, 0.0
  %v2481 = vmax.f32 %v2385, 0.0
  %v2482 = vmax.f32 %v2386, 0.0
  %v2483 = vmax.f32 %v2387, 0.0
  %v2484 = vmax.f32 %v2388, 0.0
  %v2485 = vmax.f32 %v2389, 0.0
  %v2486 = vmax.f32 %v2390, 0.0
  %v2487 = vmax.f32 %v2391, 0.0
  %v2488 = vmax.f32 %v2392, 0.0
  %v2489 = vmax.f32 %v2393, 0.0
  %v2490 = vmax.f32 %v2394, 0.0
  %v2491 = vmax.f32 %v2395, 0.0
  %v2492 = vmax.f32 %v2396, 0.0
  %v2493 = vmax.f32 %v2397, 0.0
  %v2494 = vmax.f32 %v2398, 0.0
  %v2495 = vmax.f32 %v2399, 0.0
  %v2496 = vmax.f32 %v2400, 0.0
  %v2497 = vmax.f32 %v2401, 0.0
  %v2498 = vmax.f32 %v2402, 0.0
  %v2499 = vmax.f32 %v2403, 0.0
  %v2500 = vmax.f32 %v2404, 0.0
  %v2501 = vmax.f32 %v2405, 0.0
  %v2502 = vmax.f32 %v2406, 0.0
  %v2503 = vmax.f32 %v2407, 0.0
  %v2504 = vmax.f32 %v2408, 0.0
  %v2505 = vmax.f32 %v2409, 0.0
  %v2506 = vmax.f32 %v2410, 0.0
  %v2507 = vmax.f32 %v2411, 0.0
  %v2508 = vmax.f32 %v2412, 0.0
  %v2509 = vmax.f32 %v2413, 0.0
  %v2510 = vmax.f32 %v2414, 0.0
  %v2511 = vmax.f32 %v2415, 0.0
  %v2512 = vmax.f32 %v2416, 0.0
  %v2513 = vmax.f32 %v2417, 0.0
  %v2514 = vmax.f32 %v2418, 0.0
  %v2515 = vmax.f32 %v2419, 0.0
  %v2516 = vmax.f32 %v2420, 0.0
  %v2517 = vmax.f32 %v2421, 0.0
  %v2518 = vmax.f32 %v2422, 0.0
  %v2519 = vmax.f32 %v2423, 0.0
  %v2520 = vmax.f32 %v2424, 0.0
  %v2521 = vmax.f32 %v2425, 0.0
  %v2522 = vmax.f32 %v2426, 0.0
  %v2523 = vmax.f32 %v2427, 0.0
  %v2524 = vmax.f32 %v2428, 0.0
  %v2525 = vmax.f32 %v2429, 0.0
  %v2526 = vmax.f32 %v2430, 0.0
  %v2527 = vmax.f32 %v2431, 0.0
  %v2592 = vrot.slane %v2433, 7
  %vm2593 = vcmask 1041409
  %v2594 = vsel %vm2593, %v2592, %v2432
  %v2595 = vrot.slane %v2434, 6
  %vm2596 = vcmask 1042434
  %v2597 = vsel %vm2596, %v2595, %v2594
  %v2598 = vrot.slane %v2435, 5
  %vm2599 = vcmask 1043459
  %v2600 = vsel %vm2599, %v2598, %v2597
  %v2601 = vrot.slane %v2436, 4
  %vm2602 = vcmask 1044484
  %v2603 = vsel %vm2602, %v2601, %v2600
  %v2604 = vrot.slane %v2437, 3
  %vm2605 = vcmask 1045509
  %v2606 = vsel %vm2605, %v2604, %v2603
  %v2607 = vrot.slane %v2438, 2
  %vm2608 = vcmask 1046534
  %v2609 = vsel %vm2608, %v2607, %v2606
  %v2610 = vrot.slane %v2439, 1
  %vm2611 = vcmask 1047559
  %v2612 = vsel %vm2611, %v2610, %v2609
  %v2613 = vrot.slane %v2445, 7
  %v2614 = vsel %vm2593, %v2613, %v2444
  %v2615 = vrot.slane %v2446, 6
  %v2616 = vsel %vm2596, %v2615, %v2614
  %v2617 = vrot.slane %v2447, 5
  %v2618 = vsel %vm2599, %v2617, %v2616
  %v2619 = vrot.slane %v2448, 4
  %v2620 = vsel %vm2602, %v2619, %v2618
  %v2621 = vrot.slane %v2449, 3
  %v2622 = vsel %vm2605, %v2621, %v2620
  %v2623 = vrot.slane %v2450, 2
  %v2624 = vsel %vm2608, %v2623, %v2622
  %v2625 = vrot.slane %v2451, 1
  %v2626 = vsel %vm2611, %v2625, %v2624
  %v2627 = vrot.slane %v2457, 7
  %v2628 = vsel %vm2593, %v2627, %v2456
  %v2629 = vrot.slane %v2458, 6
  %v2630 = vsel %vm2596, %v2629, %v2628
  %v2631 = vrot.slane %v2459, 5
  %v2632 = vsel %vm2599, %v2631, %v2630
  %v2633 = vrot.slane %v2460, 4
  %v2634 = vsel %vm2602, %v2633, %v2632
  %v2635 = vrot.slane %v2461, 3
  %v2636 = vsel %vm2605, %v2635, %v2634
  %v2637 = vrot.slane %v2462, 2
  %v2638 = vsel %vm2608, %v2637, %v2636
  %v2639 = vrot.slane %v2463, 1
  %v2640 = vsel %vm2611, %v2639, %v2638
  %v2641 = vrot.slane %v2469, 7
  %v2642 = vsel %vm2593, %v2641, %v2468
  %v2643 = vrot.slane %v2470, 6
  %v2644 = vsel %vm2596, %v2643, %v2642
  %v2645 = vrot.slane %v2471, 5
  %v2646 = vsel %vm2599, %v2645, %v2644
  %v2647 = vrot.slane %v2472, 4
  %v2648 = vsel %vm2602, %v2647, %v2646
  %v2649 = vrot.slane %v2473, 3
  %v2650 = vsel %vm2605, %v2649, %v2648
  %v2651 = vrot.slane %v2474, 2
  %v2652 = vsel %vm2608, %v2651, %v2650
  %v2653 = vrot.slane %v2475, 1
  %v2654 = vsel %vm2611, %v2653, %v2652
  %v2655 = vrot.slane %v2481, 7
  %v2656 = vsel %vm2593, %v2655, %v2480
  %v2657 = vrot.slane %v2482, 6
  %v2658 = vsel %vm2596, %v2657, %v2656
  %v2659 = vrot.slane %v2483, 5
  %v2660 = vsel %vm2599, %v2659, %v2658
  %v2661 = vrot.slane %v2484, 4
  %v2662 = vsel %vm2602, %v2661, %v2660
  %v2663 = vrot.slane %v2485, 3
  %v2664 = vsel %vm2605, %v2663, %v2662
  %v2665 = vrot.slane %v2486, 2
  %v2666 = vsel %vm2608, %v2665, %v2664
  %v2667 = vrot.slane %v2487, 1
  %v2668 = vsel %vm2611, %v2667, %v2666
  %v2669 = vrot.slane %v2493, 7
  %v2670 = vsel %vm2593, %v2669, %v2492
  %v2671 = vrot.slane %v2494, 6
  %v2672 = vsel %vm2596, %v2671, %v2670
  %v2673 = vrot.slane %v2495, 5
  %v2674 = vsel %vm2599, %v2673, %v2672
  %v2675 = vrot.slane %v2496, 4
  %v2676 = vsel %vm2602, %v2675, %v2674
  %v2677 = vrot.slane %v2497, 3
  %v2678 = vsel %vm2605, %v2677, %v2676
  %v2679 = vrot.slane %v2498, 2
  %v2680 = vsel %vm2608, %v2679, %v2678
  %v2681 = vrot.slane %v2499, 1
  %v2682 = vsel %vm2611, %v2681, %v2680
  %v2683 = vrot.slane %v2505, 7
  %v2684 = vsel %vm2593, %v2683, %v2504
  %v2685 = vrot.slane %v2506, 6
  %v2686 = vsel %vm2596, %v2685, %v2684
  %v2687 = vrot.slane %v2507, 5
  %v2688 = vsel %vm2599, %v2687, %v2686
  %v2689 = vrot.slane %v2508, 4
  %v2690 = vsel %vm2602, %v2689, %v2688
  %v2691 = vrot.slane %v2509, 3
  %v2692 = vsel %vm2605, %v2691, %v2690
  %v2693 = vrot.slane %v2510, 2
  %v2694 = vsel %vm2608, %v2693, %v2692
  %v2695 = vrot.slane %v2511, 1
  %v2696 = vsel %vm2611, %v2695, %v2694
  %v2697 = vrot.slane %v2517, 7
  %v2698 = vsel %vm2593, %v2697, %v2516
  %v2699 = vrot.slane %v2518, 6
  %v2700 = vsel %vm2596, %v2699, %v2698
  %v2701 = vrot.slane %v2519, 5
  %v2702 = vsel %vm2599, %v2701, %v2700
  %v2703 = vrot.slane %v2520, 4
  %v2704 = vsel %vm2602, %v2703, %v2702
  %v2705 = vrot.slane %v2521, 3
  %v2706 = vsel %vm2605, %v2705, %v2704
  %v2707 = vrot.slane %v2522, 2
  %v2708 = vsel %vm2608, %v2707, %v2706
  %v2709 = vrot.slane %v2523, 1
  %v2710 = vsel %vm2611, %v2709, %v2708
  %v2727 = vrot.slane %v2434, 7
  %v2728 = vsel %vm2593, %v2727, %v2433
  %v2729 = vrot.slane %v2435, 6
  %v2730 = vsel %vm2596, %v2729, %v2728
  %v2731 = vrot.slane %v2436, 5
  %v2732 = vsel %vm2599, %v2731, %v2730
  %v2733 = vrot.slane %v2437, 4
  %v2734 = vsel %vm2602, %v2733, %v2732
  %v2735 = vrot.slane %v2438, 3
  %v2736 = vsel %vm2605, %v2735, %v2734
  %v2737 = vrot.slane %v2439, 2
  %v2738 = vsel %vm2608, %v2737, %v2736
  %v2739 = vrot.slane %v2440, 1
  %v2740 = vsel %vm2611, %v2739, %v2738
  %v2741 = vrot.slane %v2446, 7
  %v2742 = vsel %vm2593, %v2741, %v2445
  %v2743 = vrot.slane %v2447, 6
  %v2744 = vsel %vm2596, %v2743, %v2742
  %v2745 = vrot.slane %v2448, 5
  %v2746 = vsel %vm2599, %v2745, %v2744
  %v2747 = vrot.slane %v2449, 4
  %v2748 = vsel %vm2602, %v2747, %v2746
  %v2749 = vrot.slane %v2450, 3
  %v2750 = vsel %vm2605, %v2749, %v2748
  %v2751 = vrot.slane %v2451, 2
  %v2752 = vsel %vm2608, %v2751, %v2750
  %v2753 = vrot.slane %v2452, 1
  %v2754 = vsel %vm2611, %v2753, %v2752
  %v2755 = vrot.slane %v2458, 7
  %v2756 = vsel %vm2593, %v2755, %v2457
  %v2757 = vrot.slane %v2459, 6
  %v2758 = vsel %vm2596, %v2757, %v2756
  %v2759 = vrot.slane %v2460, 5
  %v2760 = vsel %vm2599, %v2759, %v2758
  %v2761 = vrot.slane %v2461, 4
  %v2762 = vsel %vm2602, %v2761, %v2760
  %v2763 = vrot.slane %v2462, 3
  %v2764 = vsel %vm2605, %v2763, %v2762
  %v2765 = vrot.slane %v2463, 2
  %v2766 = vsel %vm2608, %v2765, %v2764
  %v2767 = vrot.slane %v2464, 1
  %v2768 = vsel %vm2611, %v2767, %v2766
  %v2769 = vrot.slane %v2470, 7
  %v2770 = vsel %vm2593, %v2769, %v2469
  %v2771 = vrot.slane %v2471, 6
  %v2772 = vsel %vm2596, %v2771, %v2770
  %v2773 = vrot.slane %v2472, 5
  %v2774 = vsel %vm2599, %v2773, %v2772
  %v2775 = vrot.slane %v2473, 4
  %v2776 = vsel %vm2602, %v2775, %v2774
  %v2777 = vrot.slane %v2474, 3
  %v2778 = vsel %vm2605, %v2777, %v2776
  %v2779 = vrot.slane %v2475, 2
  %v2780 = vsel %vm2608, %v2779, %v2778
  %v2781 = vrot.slane %v2476, 1
  %v2782 = vsel %vm2611, %v2781, %v2780
  %v2783 = vrot.slane %v2482, 7
  %v2784 = vsel %vm2593, %v2783, %v2481
  %v2785 = vrot.slane %v2483, 6
  %v2786 = vsel %vm2596, %v2785, %v2784
  %v2787 = vrot.slane %v2484, 5
  %v2788 = vsel %vm2599, %v2787, %v2786
  %v2789 = vrot.slane %v2485, 4
  %v2790 = vsel %vm2602, %v2789, %v2788
  %v2791 = vrot.slane %v2486, 3
  %v2792 = vsel %vm2605, %v2791, %v2790
  %v2793 = vrot.slane %v2487, 2
  %v2794 = vsel %vm2608, %v2793, %v2792
  %v2795 = vrot.slane %v2488, 1
  %v2796 = vsel %vm2611, %v2795, %v2794
  %v2797 = vrot.slane %v2494, 7
  %v2798 = vsel %vm2593, %v2797, %v2493
  %v2799 = vrot.slane %v2495, 6
  %v2800 = vsel %vm2596, %v2799, %v2798
  %v2801 = vrot.slane %v2496, 5
  %v2802 = vsel %vm2599, %v2801, %v2800
  %v2803 = vrot.slane %v2497, 4
  %v2804 = vsel %vm2602, %v2803, %v2802
  %v2805 = vrot.slane %v2498, 3
  %v2806 = vsel %vm2605, %v2805, %v2804
  %v2807 = vrot.slane %v2499, 2
  %v2808 = vsel %vm2608, %v2807, %v2806
  %v2809 = vrot.slane %v2500, 1
  %v2810 = vsel %vm2611, %v2809, %v2808
  %v2811 = vrot.slane %v2506, 7
  %v2812 = vsel %vm2593, %v2811, %v2505
  %v2813 = vrot.slane %v2507, 6
  %v2814 = vsel %vm2596, %v2813, %v2812
  %v2815 = vrot.slane %v2508, 5
  %v2816 = vsel %vm2599, %v2815, %v2814
  %v2817 = vrot.slane %v2509, 4
  %v2818 = vsel %vm2602, %v2817, %v2816
  %v2819 = vrot.slane %v2510, 3
  %v2820 = vsel %vm2605, %v2819, %v2818
  %v2821 = vrot.slane %v2511, 2
  %v2822 = vsel %vm2608, %v2821, %v2820
  %v2823 = vrot.slane %v2512, 1
  %v2824 = vsel %vm2611, %v2823, %v2822
  %v2825 = vrot.slane %v2518, 7
  %v2826 = vsel %vm2593, %v2825, %v2517
  %v2827 = vrot.slane %v2519, 6
  %v2828 = vsel %vm2596, %v2827, %v2826
  %v2829 = vrot.slane %v2520, 5
  %v2830 = vsel %vm2599, %v2829, %v2828
  %v2831 = vrot.slane %v2521, 4
  %v2832 = vsel %vm2602, %v2831, %v2830
  %v2833 = vrot.slane %v2522, 3
  %v2834 = vsel %vm2605, %v2833, %v2832
  %v2835 = vrot.slane %v2523, 2
  %v2836 = vsel %vm2608, %v2835, %v2834
  %v2837 = vrot.slane %v2524, 1
  %v2838 = vsel %vm2611, %v2837, %v2836
  %2839 = vrot.lane.b32.xlu0 %v2740, 120
  %v2840 = vpop.permute.xlu0 %2839
  %2841 = vrot.lane.b32.xlu0 %v2754, 120
  %v2842 = vpop.permute.xlu0 %2841
  %2843 = vrot.lane.b32.xlu0 %v2768, 120
  %v2844 = vpop.permute.xlu0 %2843
  %2845 = vrot.lane.b32.xlu0 %v2782, 120
  %v2846 = vpop.permute.xlu0 %2845
  %2847 = vrot.lane.b32.xlu0 %v2796, 120
  %v2848 = vpop.permute.xlu0 %2847
  %2849 = vrot.lane.b32.xlu0 %v2810, 120
  %v2850 = vpop.permute.xlu0 %2849
  %2851 = vrot.lane.b32.xlu0 %v2824, 120
  %v2852 = vpop.permute.xlu0 %2851
  %2853 = vrot.lane.b32.xlu0 %v2838, 120
  %v2854 = vpop.permute.xlu0 %2853
  %v2871 = vrot.slane %v2435, 7
  %v2872 = vsel %vm2593, %v2871, %v2434
  %v2873 = vrot.slane %v2436, 6
  %v2874 = vsel %vm2596, %v2873, %v2872
  %v2875 = vrot.slane %v2437, 5
  %v2876 = vsel %vm2599, %v2875, %v2874
  %v2877 = vrot.slane %v2438, 4
  %v2878 = vsel %vm2602, %v2877, %v2876
  %v2879 = vrot.slane %v2439, 3
  %v2880 = vsel %vm2605, %v2879, %v2878
  %v2881 = vrot.slane %v2440, 2
  %v2882 = vsel %vm2608, %v2881, %v2880
  %v2883 = vrot.slane %v2441, 1
  %v2884 = vsel %vm2611, %v2883, %v2882
  %v2885 = vrot.slane %v2447, 7
  %v2886 = vsel %vm2593, %v2885, %v2446
  %v2887 = vrot.slane %v2448, 6
  %v2888 = vsel %vm2596, %v2887, %v2886
  %v2889 = vrot.slane %v2449, 5
  %v2890 = vsel %vm2599, %v2889, %v2888
  %v2891 = vrot.slane %v2450, 4
  %v2892 = vsel %vm2602, %v2891, %v2890
  %v2893 = vrot.slane %v2451, 3
  %v2894 = vsel %vm2605, %v2893, %v2892
  %v2895 = vrot.slane %v2452, 2
  %v2896 = vsel %vm2608, %v2895, %v2894
  %v2897 = vrot.slane %v2453, 1
  %v2898 = vsel %vm2611, %v2897, %v2896
  %v2899 = vrot.slane %v2459, 7
  %v2900 = vsel %vm2593, %v2899, %v2458
  %v2901 = vrot.slane %v2460, 6
  %v2902 = vsel %vm2596, %v2901, %v2900
  %v2903 = vrot.slane %v2461, 5
  %v2904 = vsel %vm2599, %v2903, %v2902
  %v2905 = vrot.slane %v2462, 4
  %v2906 = vsel %vm2602, %v2905, %v2904
  %v2907 = vrot.slane %v2463, 3
  %v2908 = vsel %vm2605, %v2907, %v2906
  %v2909 = vrot.slane %v2464, 2
  %v2910 = vsel %vm2608, %v2909, %v2908
  %v2911 = vrot.slane %v2465, 1
  %v2912 = vsel %vm2611, %v2911, %v2910
  %v2913 = vrot.slane %v2471, 7
  %v2914 = vsel %vm2593, %v2913, %v2470
  %v2915 = vrot.slane %v2472, 6
  %v2916 = vsel %vm2596, %v2915, %v2914
  %v2917 = vrot.slane %v2473, 5
  %v2918 = vsel %vm2599, %v2917, %v2916
  %v2919 = vrot.slane %v2474, 4
  %v2920 = vsel %vm2602, %v2919, %v2918
  %v2921 = vrot.slane %v2475, 3
  %v2922 = vsel %vm2605, %v2921, %v2920
  %v2923 = vrot.slane %v2476, 2
  %v2924 = vsel %vm2608, %v2923, %v2922
  %v2925 = vrot.slane %v2477, 1
  %v2926 = vsel %vm2611, %v2925, %v2924
  %v2927 = vrot.slane %v2483, 7
  %v2928 = vsel %vm2593, %v2927, %v2482
  %v2929 = vrot.slane %v2484, 6
  %v2930 = vsel %vm2596, %v2929, %v2928
  %v2931 = vrot.slane %v2485, 5
  %v2932 = vsel %vm2599, %v2931, %v2930
  %v2933 = vrot.slane %v2486, 4
  %v2934 = vsel %vm2602, %v2933, %v2932
  %v2935 = vrot.slane %v2487, 3
  %v2936 = vsel %vm2605, %v2935, %v2934
  %v2937 = vrot.slane %v2488, 2
  %v2938 = vsel %vm2608, %v2937, %v2936
  %v2939 = vrot.slane %v2489, 1
  %v2940 = vsel %vm2611, %v2939, %v2938
  %v2941 = vrot.slane %v2495, 7
  %v2942 = vsel %vm2593, %v2941, %v2494
  %v2943 = vrot.slane %v2496, 6
  %v2944 = vsel %vm2596, %v2943, %v2942
  %v2945 = vrot.slane %v2497, 5
  %v2946 = vsel %vm2599, %v2945, %v2944
  %v2947 = vrot.slane %v2498, 4
  %v2948 = vsel %vm2602, %v2947, %v2946
  %v2949 = vrot.slane %v2499, 3
  %v2950 = vsel %vm2605, %v2949, %v2948
  %v2951 = vrot.slane %v2500, 2
  %v2952 = vsel %vm2608, %v2951, %v2950
  %v2953 = vrot.slane %v2501, 1
  %v2954 = vsel %vm2611, %v2953, %v2952
  %v2955 = vrot.slane %v2507, 7
  %v2956 = vsel %vm2593, %v2955, %v2506
  %v2957 = vrot.slane %v2508, 6
  %v2958 = vsel %vm2596, %v2957, %v2956
  %v2959 = vrot.slane %v2509, 5
  %v2960 = vsel %vm2599, %v2959, %v2958
  %v2961 = vrot.slane %v2510, 4
  %v2962 = vsel %vm2602, %v2961, %v2960
  %v2963 = vrot.slane %v2511, 3
  %v2964 = vsel %vm2605, %v2963, %v2962
  %v2965 = vrot.slane %v2512, 2
  %v2966 = vsel %vm2608, %v2965, %v2964
  %v2967 = vrot.slane %v2513, 1
  %v2968 = vsel %vm2611, %v2967, %v2966
  %v2969 = vrot.slane %v2519, 7
  %v2970 = vsel %vm2593, %v2969, %v2518
  %v2971 = vrot.slane %v2520, 6
  %v2972 = vsel %vm2596, %v2971, %v2970
  %v2973 = vrot.slane %v2521, 5
  %v2974 = vsel %vm2599, %v2973, %v2972
  %v2975 = vrot.slane %v2522, 4
  %v2976 = vsel %vm2602, %v2975, %v2974
  %v2977 = vrot.slane %v2523, 3
  %v2978 = vsel %vm2605, %v2977, %v2976
  %v2979 = vrot.slane %v2524, 2
  %v2980 = vsel %vm2608, %v2979, %v2978
  %v2981 = vrot.slane %v2525, 1
  %v2982 = vsel %vm2611, %v2981, %v2980
  %2983 = vrot.lane.b32.xlu0 %v2884, 112
  %v2984 = vpop.permute.xlu0 %2983
  %2985 = vrot.lane.b32.xlu0 %v2898, 112
  %v2986 = vpop.permute.xlu0 %2985
  %2987 = vrot.lane.b32.xlu0 %v2912, 112
  %v2988 = vpop.permute.xlu0 %2987
  %2989 = vrot.lane.b32.xlu0 %v2926, 112
  %v2990 = vpop.permute.xlu0 %2989
  %2991 = vrot.lane.b32.xlu0 %v2940, 112
  %v2992 = vpop.permute.xlu0 %2991
  %2993 = vrot.lane.b32.xlu0 %v2954, 112
  %v2994 = vpop.permute.xlu0 %2993
  %2995 = vrot.lane.b32.xlu0 %v2968, 112
  %v2996 = vpop.permute.xlu0 %2995
  %2997 = vrot.lane.b32.xlu0 %v2982, 112
  %v2998 = vpop.permute.xlu0 %2997
  %v3015 = vrot.slane %v2436, 7
  %v3016 = vsel %vm2593, %v3015, %v2435
  %v3017 = vrot.slane %v2437, 6
  %v3018 = vsel %vm2596, %v3017, %v3016
  %v3019 = vrot.slane %v2438, 5
  %v3020 = vsel %vm2599, %v3019, %v3018
  %v3021 = vrot.slane %v2439, 4
  %v3022 = vsel %vm2602, %v3021, %v3020
  %v3023 = vrot.slane %v2440, 3
  %v3024 = vsel %vm2605, %v3023, %v3022
  %v3025 = vrot.slane %v2441, 2
  %v3026 = vsel %vm2608, %v3025, %v3024
  %v3027 = vrot.slane %v2442, 1
  %v3028 = vsel %vm2611, %v3027, %v3026
  %v3029 = vrot.slane %v2448, 7
  %v3030 = vsel %vm2593, %v3029, %v2447
  %v3031 = vrot.slane %v2449, 6
  %v3032 = vsel %vm2596, %v3031, %v3030
  %v3033 = vrot.slane %v2450, 5
  %v3034 = vsel %vm2599, %v3033, %v3032
  %v3035 = vrot.slane %v2451, 4
  %v3036 = vsel %vm2602, %v3035, %v3034
  %v3037 = vrot.slane %v2452, 3
  %v3038 = vsel %vm2605, %v3037, %v3036
  %v3039 = vrot.slane %v2453, 2
  %v3040 = vsel %vm2608, %v3039, %v3038
  %v3041 = vrot.slane %v2454, 1
  %v3042 = vsel %vm2611, %v3041, %v3040
  %v3043 = vrot.slane %v2460, 7
  %v3044 = vsel %vm2593, %v3043, %v2459
  %v3045 = vrot.slane %v2461, 6
  %v3046 = vsel %vm2596, %v3045, %v3044
  %v3047 = vrot.slane %v2462, 5
  %v3048 = vsel %vm2599, %v3047, %v3046
  %v3049 = vrot.slane %v2463, 4
  %v3050 = vsel %vm2602, %v3049, %v3048
  %v3051 = vrot.slane %v2464, 3
  %v3052 = vsel %vm2605, %v3051, %v3050
  %v3053 = vrot.slane %v2465, 2
  %v3054 = vsel %vm2608, %v3053, %v3052
  %v3055 = vrot.slane %v2466, 1
  %v3056 = vsel %vm2611, %v3055, %v3054
  %v3057 = vrot.slane %v2472, 7
  %v3058 = vsel %vm2593, %v3057, %v2471
  %v3059 = vrot.slane %v2473, 6
  %v3060 = vsel %vm2596, %v3059, %v3058
  %v3061 = vrot.slane %v2474, 5
  %v3062 = vsel %vm2599, %v3061, %v3060
  %v3063 = vrot.slane %v2475, 4
  %v3064 = vsel %vm2602, %v3063, %v3062
  %v3065 = vrot.slane %v2476, 3
  %v3066 = vsel %vm2605, %v3065, %v3064
  %v3067 = vrot.slane %v2477, 2
  %v3068 = vsel %vm2608, %v3067, %v3066
  %v3069 = vrot.slane %v2478, 1
  %v3070 = vsel %vm2611, %v3069, %v3068
  %v3071 = vrot.slane %v2484, 7
  %v3072 = vsel %vm2593, %v3071, %v2483
  %v3073 = vrot.slane %v2485, 6
  %v3074 = vsel %vm2596, %v3073, %v3072
  %v3075 = vrot.slane %v2486, 5
  %v3076 = vsel %vm2599, %v3075, %v3074
  %v3077 = vrot.slane %v2487, 4
  %v3078 = vsel %vm2602, %v3077, %v3076
  %v3079 = vrot.slane %v2488, 3
  %v3080 = vsel %vm2605, %v3079, %v3078
  %v3081 = vrot.slane %v2489, 2
  %v3082 = vsel %vm2608, %v3081, %v3080
  %v3083 = vrot.slane %v2490, 1
  %v3084 = vsel %vm2611, %v3083, %v3082
  %v3085 = vrot.slane %v2496, 7
  %v3086 = vsel %vm2593, %v3085, %v2495
  %v3087 = vrot.slane %v2497, 6
  %v3088 = vsel %vm2596, %v3087, %v3086
  %v3089 = vrot.slane %v2498, 5
  %v3090 = vsel %vm2599, %v3089, %v3088
  %v3091 = vrot.slane %v2499, 4
  %v3092 = vsel %vm2602, %v3091, %v3090
  %v3093 = vrot.slane %v2500, 3
  %v3094 = vsel %vm2605, %v3093, %v3092
  %v3095 = vrot.slane %v2501, 2
  %v3096 = vsel %vm2608, %v3095, %v3094
  %v3097 = vrot.slane %v2502, 1
  %v3098 = vsel %vm2611, %v3097, %v3096
  %v3099 = vrot.slane %v2508, 7
  %v3100 = vsel %vm2593, %v3099, %v2507
  %v3101 = vrot.slane %v2509, 6
  %v3102 = vsel %vm2596, %v3101, %v3100
  %v3103 = vrot.slane %v2510, 5
  %v3104 = vsel %vm2599, %v3103, %v3102
  %v3105 = vrot.slane %v2511, 4
  %v3106 = vsel %vm2602, %v3105, %v3104
  %v3107 = vrot.slane %v2512, 3
  %v3108 = vsel %vm2605, %v3107, %v3106
  %v3109 = vrot.slane %v2513, 2
  %v3110 = vsel %vm2608, %v3109, %v3108
  %v3111 = vrot.slane %v2514, 1
  %v3112 = vsel %vm2611, %v3111, %v3110
  %v3113 = vrot.slane %v2520, 7
  %v3114 = vsel %vm2593, %v3113, %v2519
  %v3115 = vrot.slane %v2521, 6
  %v3116 = vsel %vm2596, %v3115, %v3114
  %v3117 = vrot.slane %v2522, 5
  %v3118 = vsel %vm2599, %v3117, %v3116
  %v3119 = vrot.slane %v2523, 4
  %v3120 = vsel %vm2602, %v3119, %v3118
  %v3121 = vrot.slane %v2524, 3
  %v3122 = vsel %vm2605, %v3121, %v3120
  %v3123 = vrot.slane %v2525, 2
  %v3124 = vsel %vm2608, %v3123, %v3122
  %v3125 = vrot.slane %v2526, 1
  %v3126 = vsel %vm2611, %v3125, %v3124
  %3127 = vrot.lane.b32.xlu0 %v3028, 104
  %v3128 = vpop.permute.xlu0 %3127
  %3129 = vrot.lane.b32.xlu0 %v3042, 104
  %v3130 = vpop.permute.xlu0 %3129
  %3131 = vrot.lane.b32.xlu0 %v3056, 104
  %v3132 = vpop.permute.xlu0 %3131
  %3133 = vrot.lane.b32.xlu0 %v3070, 104
  %v3134 = vpop.permute.xlu0 %3133
  %3135 = vrot.lane.b32.xlu0 %v3084, 104
  %v3136 = vpop.permute.xlu0 %3135
  %3137 = vrot.lane.b32.xlu0 %v3098, 104
  %v3138 = vpop.permute.xlu0 %3137
  %3139 = vrot.lane.b32.xlu0 %v3112, 104
  %v3140 = vpop.permute.xlu0 %3139
  %3141 = vrot.lane.b32.xlu0 %v3126, 104
  %v3142 = vpop.permute.xlu0 %3141
  %v3159 = vrot.slane %v2437, 7
  %v3160 = vsel %vm2593, %v3159, %v2436
  %v3161 = vrot.slane %v2438, 6
  %v3162 = vsel %vm2596, %v3161, %v3160
  %v3163 = vrot.slane %v2439, 5
  %v3164 = vsel %vm2599, %v3163, %v3162
  %v3165 = vrot.slane %v2440, 4
  %v3166 = vsel %vm2602, %v3165, %v3164
  %v3167 = vrot.slane %v2441, 3
  %v3168 = vsel %vm2605, %v3167, %v3166
  %v3169 = vrot.slane %v2442, 2
  %v3170 = vsel %vm2608, %v3169, %v3168
  %v3171 = vrot.slane %v2443, 1
  %v3172 = vsel %vm2611, %v3171, %v3170
  %v3173 = vrot.slane %v2449, 7
  %v3174 = vsel %vm2593, %v3173, %v2448
  %v3175 = vrot.slane %v2450, 6
  %v3176 = vsel %vm2596, %v3175, %v3174
  %v3177 = vrot.slane %v2451, 5
  %v3178 = vsel %vm2599, %v3177, %v3176
  %v3179 = vrot.slane %v2452, 4
  %v3180 = vsel %vm2602, %v3179, %v3178
  %v3181 = vrot.slane %v2453, 3
  %v3182 = vsel %vm2605, %v3181, %v3180
  %v3183 = vrot.slane %v2454, 2
  %v3184 = vsel %vm2608, %v3183, %v3182
  %v3185 = vrot.slane %v2455, 1
  %v3186 = vsel %vm2611, %v3185, %v3184
  %v3187 = vrot.slane %v2461, 7
  %v3188 = vsel %vm2593, %v3187, %v2460
  %v3189 = vrot.slane %v2462, 6
  %v3190 = vsel %vm2596, %v3189, %v3188
  %v3191 = vrot.slane %v2463, 5
  %v3192 = vsel %vm2599, %v3191, %v3190
  %v3193 = vrot.slane %v2464, 4
  %v3194 = vsel %vm2602, %v3193, %v3192
  %v3195 = vrot.slane %v2465, 3
  %v3196 = vsel %vm2605, %v3195, %v3194
  %v3197 = vrot.slane %v2466, 2
  %v3198 = vsel %vm2608, %v3197, %v3196
  %v3199 = vrot.slane %v2467, 1
  %v3200 = vsel %vm2611, %v3199, %v3198
  %v3201 = vrot.slane %v2473, 7
  %v3202 = vsel %vm2593, %v3201, %v2472
  %v3203 = vrot.slane %v2474, 6
  %v3204 = vsel %vm2596, %v3203, %v3202
  %v3205 = vrot.slane %v2475, 5
  %v3206 = vsel %vm2599, %v3205, %v3204
  %v3207 = vrot.slane %v2476, 4
  %v3208 = vsel %vm2602, %v3207, %v3206
  %v3209 = vrot.slane %v2477, 3
  %v3210 = vsel %vm2605, %v3209, %v3208
  %v3211 = vrot.slane %v2478, 2
  %v3212 = vsel %vm2608, %v3211, %v3210
  %v3213 = vrot.slane %v2479, 1
  %v3214 = vsel %vm2611, %v3213, %v3212
  %v3215 = vrot.slane %v2485, 7
  %v3216 = vsel %vm2593, %v3215, %v2484
  %v3217 = vrot.slane %v2486, 6
  %v3218 = vsel %vm2596, %v3217, %v3216
  %v3219 = vrot.slane %v2487, 5
  %v3220 = vsel %vm2599, %v3219, %v3218
  %v3221 = vrot.slane %v2488, 4
  %v3222 = vsel %vm2602, %v3221, %v3220
  %v3223 = vrot.slane %v2489, 3
  %v3224 = vsel %vm2605, %v3223, %v3222
  %v3225 = vrot.slane %v2490, 2
  %v3226 = vsel %vm2608, %v3225, %v3224
  %v3227 = vrot.slane %v2491, 1
  %v3228 = vsel %vm2611, %v3227, %v3226
  %v3229 = vrot.slane %v2497, 7
  %v3230 = vsel %vm2593, %v3229, %v2496
  %v3231 = vrot.slane %v2498, 6
  %v3232 = vsel %vm2596, %v3231, %v3230
  %v3233 = vrot.slane %v2499, 5
  %v3234 = vsel %vm2599, %v3233, %v3232
  %v3235 = vrot.slane %v2500, 4
  %v3236 = vsel %vm2602, %v3235, %v3234
  %v3237 = vrot.slane %v2501, 3
  %v3238 = vsel %vm2605, %v3237, %v3236
  %v3239 = vrot.slane %v2502, 2
  %v3240 = vsel %vm2608, %v3239, %v3238
  %v3241 = vrot.slane %v2503, 1
  %v3242 = vsel %vm2611, %v3241, %v3240
  %v3243 = vrot.slane %v2509, 7
  %v3244 = vsel %vm2593, %v3243, %v2508
  %v3245 = vrot.slane %v2510, 6
  %v3246 = vsel %vm2596, %v3245, %v3244
  %v3247 = vrot.slane %v2511, 5
  %v3248 = vsel %vm2599, %v3247, %v3246
  %v3249 = vrot.slane %v2512, 4
  %v3250 = vsel %vm2602, %v3249, %v3248
  %v3251 = vrot.slane %v2513, 3
  %v3252 = vsel %vm2605, %v3251, %v3250
  %v3253 = vrot.slane %v2514, 2
  %v3254 = vsel %vm2608, %v3253, %v3252
  %v3255 = vrot.slane %v2515, 1
  %v3256 = vsel %vm2611, %v3255, %v3254
  %v3257 = vrot.slane %v2521, 7
  %v3258 = vsel %vm2593, %v3257, %v2520
  %v3259 = vrot.slane %v2522, 6
  %v3260 = vsel %vm2596, %v3259, %v3258
  %v3261 = vrot.slane %v2523, 5
  %v3262 = vsel %vm2599, %v3261, %v3260
  %v3263 = vrot.slane %v2524, 4
  %v3264 = vsel %vm2602, %v3263, %v3262
  %v3265 = vrot.slane %v2525, 3
  %v3266 = vsel %vm2605, %v3265, %v3264
  %v3267 = vrot.slane %v2526, 2
  %v3268 = vsel %vm2608, %v3267, %v3266
  %v3269 = vrot.slane %v2527, 1
  %v3270 = vsel %vm2611, %v3269, %v3268
  %3271 = vrot.lane.b32.xlu0 %v3172, 96
  %v3272 = vpop.permute.xlu0 %3271
  %3273 = vrot.lane.b32.xlu0 %v3186, 96
  %v3274 = vpop.permute.xlu0 %3273
  %3275 = vrot.lane.b32.xlu0 %v3200, 96
  %v3276 = vpop.permute.xlu0 %3275
  %3277 = vrot.lane.b32.xlu0 %v3214, 96
  %v3278 = vpop.permute.xlu0 %3277
  %3279 = vrot.lane.b32.xlu0 %v3228, 96
  %v3280 = vpop.permute.xlu0 %3279
  %3281 = vrot.lane.b32.xlu0 %v3242, 96
  %v3282 = vpop.permute.xlu0 %3281
  %3283 = vrot.lane.b32.xlu0 %v3256, 96
  %v3284 = vpop.permute.xlu0 %3283
  %3285 = vrot.lane.b32.xlu0 %v3270, 96
  %v3286 = vpop.permute.xlu0 %3285
  %vm3295 = vcmask 982016
  %v3296 = vsel %vm3295, %v2612, %v2840
  %v3297 = vsel %vm3295, %v2626, %v2842
  %v3298 = vsel %vm3295, %v2640, %v2844
  %v3299 = vsel %vm3295, %v2654, %v2846
  %v3300 = vsel %vm3295, %v2668, %v2848
  %v3301 = vsel %vm3295, %v2682, %v2850
  %v3302 = vsel %vm3295, %v2696, %v2852
  %v3303 = vsel %vm3295, %v2710, %v2854
  %v3304 = vsel %vm617, %v2840, %v2984
  %v3305 = vsel %vm617, %v2842, %v2986
  %v3306 = vsel %vm617, %v2844, %v2988
  %v3307 = vsel %vm617, %v2846, %v2990
  %v3308 = vsel %vm617, %v2848, %v2992
  %v3309 = vsel %vm617, %v2850, %v2994
  %v3310 = vsel %vm617, %v2852, %v2996
  %v3311 = vsel %vm617, %v2854, %v2998
  %vm3312 = vcmask 850944
  %v3313 = vsel %vm3312, %v2984, %v3128
  %v3314 = vsel %vm3312, %v2986, %v3130
  %v3315 = vsel %vm3312, %v2988, %v3132
  %v3316 = vsel %vm3312, %v2990, %v3134
  %v3317 = vsel %vm3312, %v2992, %v3136
  %v3318 = vsel %vm3312, %v2994, %v3138
  %v3319 = vsel %vm3312, %v2996, %v3140
  %v3320 = vsel %vm3312, %v2998, %v3142
  %vm3321 = vcmask 785408
  %v3322 = vsel %vm3321, %v3128, %v3272
  %v3323 = vsel %vm3321, %v3130, %v3274
  %v3324 = vsel %vm3321, %v3132, %v3276
  %v3325 = vsel %vm3321, %v3134, %v3278
  %v3326 = vsel %vm3321, %v3136, %v3280
  %v3327 = vsel %vm3321, %v3138, %v3282
  %v3328 = vsel %vm3321, %v3140, %v3284
  %v3329 = vsel %vm3321, %v3142, %v3286
  %v3330 = vld [vmem:[%s4] sm:$0xff]
  %v3331 = vld [vmem:[%s4 + $0x8] sm:$0xff]
  %v3332 = vld [vmem:[%s4 + $0x10] sm:$0xff]
  %v3333 = vld [vmem:[%s4 + $0x18] sm:$0xff]
  %v3334 = vld [vmem:[%s4 + $0x20] sm:$0xff]
  %v3335 = vld [vmem:[%s4 + $0x28] sm:$0xff]
  %v3336 = vld [vmem:[%s4 + $0x30] sm:$0xff]
  %v3337 = vld [vmem:[%s4 + $0x38] sm:$0xff]
  %v3338 = vld [vmem:[%s4 + $0x40] sm:$0xff]
  %v3339 = vld [vmem:[%s4 + $0x48] sm:$0xff]
  %v3340 = vld [vmem:[%s4 + $0x50] sm:$0xff]
  %v3341 = vld [vmem:[%s4 + $0x58] sm:$0xff]
  %v3342 = vld [vmem:[%s4 + $0x60] sm:$0xff]
  %v3343 = vld [vmem:[%s4 + $0x68] sm:$0xff]
  %v3344 = vld [vmem:[%s4 + $0x70] sm:$0xff]
  %v3345 = vld [vmem:[%s4 + $0x78] sm:$0xff]
  %v3346 = vld [vmem:[%s4 + $0x80] sm:$0xff]
  %v3347 = vld [vmem:[%s4 + $0x88] sm:$0xff]
  %v3348 = vld [vmem:[%s4 + $0x90] sm:$0xff]
  %v3349 = vld [vmem:[%s4 + $0x98] sm:$0xff]
  %v3350 = vld [vmem:[%s4 + $0xa0] sm:$0xff]
  %v3351 = vld [vmem:[%s4 + $0xa8] sm:$0xff]
  %v3352 = vld [vmem:[%s4 + $0xb0] sm:$0xff]
  %v3353 = vld [vmem:[%s4 + $0xb8] sm:$0xff]
  %v3354 = vld [vmem:[%s4 + $0xc0] sm:$0xff]
  %v3355 = vld [vmem:[%s4 + $0xc8] sm:$0xff]
  %v3356 = vld [vmem:[%s4 + $0xd0] sm:$0xff]
  %v3357 = vld [vmem:[%s4 + $0xd8] sm:$0xff]
  %v3358 = vld [vmem:[%s4 + $0xe0] sm:$0xff]
  %v3359 = vld [vmem:[%s4 + $0xe8] sm:$0xff]
  %v3360 = vld [vmem:[%s4 + $0xf0] sm:$0xff]
  %v3361 = vld [vmem:[%s4 + $0xf8] sm:$0xff]
  %v3362 = vld [vmem:[%s4 + $0x100] sm:$0xff]
  %v3363 = vld [vmem:[%s4 + $0x108] sm:$0xff]
  %v3364 = vld [vmem:[%s4 + $0x110] sm:$0xff]
  %v3365 = vld [vmem:[%s4 + $0x118] sm:$0xff]
  %v3366 = vld [vmem:[%s4 + $0x120] sm:$0xff]
  %v3367 = vld [vmem:[%s4 + $0x128] sm:$0xff]
  %v3368 = vld [vmem:[%s4 + $0x130] sm:$0xff]
  %v3369 = vld [vmem:[%s4 + $0x138] sm:$0xff]
  %v3370 = vld [vmem:[%s4 + $0x140] sm:$0xff]
  %v3371 = vld [vmem:[%s4 + $0x148] sm:$0xff]
  %v3372 = vld [vmem:[%s4 + $0x150] sm:$0xff]
  %v3373 = vld [vmem:[%s4 + $0x158] sm:$0xff]
  %v3374 = vld [vmem:[%s4 + $0x160] sm:$0xff]
  %v3375 = vld [vmem:[%s4 + $0x168] sm:$0xff]
  %v3376 = vld [vmem:[%s4 + $0x170] sm:$0xff]
  %v3377 = vld [vmem:[%s4 + $0x178] sm:$0xff]
  %v3378 = vld [vmem:[%s4 + $0x180] sm:$0xff]
  %v3379 = vld [vmem:[%s4 + $0x188] sm:$0xff]
  %v3380 = vld [vmem:[%s4 + $0x190] sm:$0xff]
  %v3381 = vld [vmem:[%s4 + $0x198] sm:$0xff]
  %v3382 = vld [vmem:[%s4 + $0x1a0] sm:$0xff]
  %v3383 = vld [vmem:[%s4 + $0x1a8] sm:$0xff]
  %v3384 = vld [vmem:[%s4 + $0x1b0] sm:$0xff]
  %v3385 = vld [vmem:[%s4 + $0x1b8] sm:$0xff]
  %v3386 = vld [vmem:[%s4 + $0x1c0] sm:$0xff]
  %v3387 = vld [vmem:[%s4 + $0x1c8] sm:$0xff]
  %v3388 = vld [vmem:[%s4 + $0x1d0] sm:$0xff]
  %v3389 = vld [vmem:[%s4 + $0x1d8] sm:$0xff]
  %v3390 = vld [vmem:[%s4 + $0x1e0] sm:$0xff]
  %v3391 = vld [vmem:[%s4 + $0x1e8] sm:$0xff]
  %v3392 = vld [vmem:[%s4 + $0x1f0] sm:$0xff]
  %v3393 = vld [vmem:[%s4 + $0x1f8] sm:$0xff]
  %v3394 = vld [vmem:[%s4 + $0x200] sm:$0xff]
  %v3395 = vld [vmem:[%s4 + $0x208] sm:$0xff]
  %v3396 = vld [vmem:[%s4 + $0x210] sm:$0xff]
  %v3397 = vld [vmem:[%s4 + $0x218] sm:$0xff]
  %v3398 = vld [vmem:[%s4 + $0x220] sm:$0xff]
  %v3399 = vld [vmem:[%s4 + $0x228] sm:$0xff]
  %v3400 = vld [vmem:[%s4 + $0x230] sm:$0xff]
  %v3401 = vld [vmem:[%s4 + $0x238] sm:$0xff]
  %v3402 = vld [vmem:[%s4 + $0x240] sm:$0xff]
  %v3403 = vld [vmem:[%s4 + $0x248] sm:$0xff]
  %v3404 = vld [vmem:[%s4 + $0x250] sm:$0xff]
  %vm3405 = vcmask 719872
  %v3406 = vsel %vm3405, %v3272, 0
  %v3408 = vsel %vm3405, %v3274, 0
  %v3410 = vsel %vm3405, %v3276, 0
  %v3412 = vsel %vm3405, %v3278, 0
  %v3414 = vsel %vm3405, %v3280, 0
  %v3416 = vsel %vm3405, %v3282, 0
  %v3418 = vsel %vm3405, %v3284, 0
  %v3420 = vsel %vm3405, %v3286, 0
  %3422 = vmatprep.subr.mxu0 0.0
  %3423 = vmatpush1.msra.mxu0 %v3330
  %3424 = vmatprep.subr.mxu0 0.0
  %3425 = vmatpush1.msra.mxu0 %v3331
  %3426 = vmatprep.subr.mxu0 0.0
  %3427 = vmatpush1.msra.mxu0 %v3332
  %3428 = vmatprep.subr.mxu0 0.0
  %3429 = vmatpush1.msra.mxu0 %v3333
  %3430 = vmatprep.subr.mxu0 0.0
  %3431 = vmatpush1.msra.mxu0 %v3334
  %3432 = vmatprep.subr.mxu0 0.0
  %3433 = vmatpush1.msra.mxu0 %v3335
  %3434 = vmatprep.subr.mxu0 0.0
  %3435 = vmatpush1.msra.mxu0 %v3336
  %3436 = vmatprep.subr.mxu0 0.0
  %3437 = vmatpush1.msra.mxu0 %v3337
  %3438 = vmatprep.subr.mxu0 0.0
  %3439 = vmatpush1.msra.mxu0 %v3338
  %3440 = vmatprep.subr.mxu0 0.0
  %3441 = vmatpush1.msra.mxu0 %v3339
  %3442 = vmatprep.subr.mxu0 0.0
  %3443 = vmatpush1.msra.mxu0 %v3340
  %3444 = vmatprep.subr.mxu0 0.0
  %3445 = vmatpush1.msra.mxu0 %v3341
  %3446 = vmatprep.subr.mxu0 0.0
  %3447 = vmatpush1.msra.mxu0 %v3342
  %3448 = vmatprep.subr.mxu0 0.0
  %3449 = vmatpush1.msra.mxu0 %v3343
  %3450 = vmatprep.subr.mxu0 0.0
  %3451 = vmatpush1.msra.mxu0 %v3344
  %3452 = vmatprep.subr.mxu0 0.0
  %3453 = vmatpush1.msra.mxu0 %v3345
  %3454 = vmatprep.subr.mxu0 0.0
  %3455 = vmatpush1.msra.mxu0 %v3346
  %3456 = vmatprep.subr.mxu0 0.0
  %3457 = vmatpush1.msra.mxu0 %v3347
  %3458 = vmatprep.subr.mxu0 0.0
  %3459 = vmatpush1.msra.mxu0 %v3348
  %3460 = vmatprep.subr.mxu0 0.0
  %3461 = vmatpush1.msra.mxu0 %v3349
  %3462 = vmatprep.subr.mxu0 0.0
  %3463 = vmatpush1.msra.mxu0 %v3350
  %3464 = vmatprep.subr.mxu0 0.0
  %3465 = vmatpush1.msra.mxu0 %v3351
  %3466 = vmatprep.subr.mxu0 0.0
  %3467 = vmatpush1.msra.mxu0 %v3352
  %3468 = vmatprep.subr.mxu0 0.0
  %3469 = vmatpush1.msra.mxu0 %v3353
  %3470 = vmatprep.subr.mxu0 0.0
  %3471 = vmatpush1.msra.mxu0 %v3354
  %3472 = vmatprep.subr.mxu0 0.0
  %3473 = vmatpush1.msra.mxu0 %v3355
  %3474 = vmatprep.subr.mxu0 0.0
  %3475 = vmatpush1.msra.mxu0 %v3356
  %3476 = vmatprep.subr.mxu0 0.0
  %3477 = vmatpush1.msra.mxu0 %v3357
  %3478 = vmatprep.subr.mxu0 0.0
  %3479 = vmatpush1.msra.mxu0 %v3358
  %3480 = vmatprep.subr.mxu0 0.0
  %3481 = vmatpush1.msra.mxu0 %v3359
  %3482 = vmatprep.subr.mxu0 0.0
  %3483 = vmatpush1.msra.mxu0 %v3360
  %3484 = vmatprep.subr.mxu0 0.0
  %3485 = vmatpush1.msra.mxu0 %v3361
  %3486 = vmatprep.mubr.f32.mxu0 %v3304
  %3487 = vmatmul.mubr.f32.gmra.mrb[0].mxu0 %v3296
  %v3488 = vpop.f32.mrb[0].mxu0
  %v3489 = vadd.f32 0.0, %v3488
  %v3490 = vpop.f32.mrb[0].mxu0
  %3491 = vmatprep.mubr.f32.mxu0 %v3305
  %3492 = vmatmul.mubr.f32.gmra.mrb[0].mxu0 %v3297
  %v3493 = vpop.f32.mrb[0].mxu0
  %v3494 = vadd.f32 0.0, %v3493
  %v3495 = vpop.f32.mrb[0].mxu0
  %3496 = vmatprep.mubr.f32.mxu0 %v3306
  %3497 = vmatmul.mubr.f32.gmra.mrb[0].mxu0 %v3298
  %v3498 = vpop.f32.mrb[0].mxu0
  %v3499 = vadd.f32 0.0, %v3498
  %v3500 = vpop.f32.mrb[0].mxu0
  %3501 = vmatprep.mubr.f32.mxu0 %v3307
  %3502 = vmatmul.mubr.f32.gmra.mrb[0].mxu0 %v3299
  %v3503 = vpop.f32.mrb[0].mxu0
  %v3504 = vadd.f32 0.0, %v3503
  %v3505 = vpop.f32.mrb[0].mxu0
  %3506 = vmatprep.mubr.f32.mxu0 %v3308
  %3507 = vmatmul.mubr.f32.gmra.mrb[0].mxu0 %v3300
  %v3508 = vpop.f32.mrb[0].mxu0
  %v3509 = vadd.f32 0.0, %v3508
  %v3510 = vpop.f32.mrb[0].mxu0
  %3511 = vmatprep.mubr.f32.mxu0 %v3309
  %3512 = vmatmul.mubr.f32.gmra.mrb[0].mxu0 %v3301
  %v3513 = vpop.f32.mrb[0].mxu0
  %v3514 = vadd.f32 0.0, %v3513
  %v3515 = vpop.f32.mrb[0].mxu0
  %3516 = vmatprep.mubr.f32.mxu0 %v3310
  %3517 = vmatmul.mubr.f32.gmra.mrb[0].mxu0 %v3302
  %v3518 = vpop.f32.mrb[0].mxu0
  %v3519 = vadd.f32 0.0, %v3518
  %v3520 = vpop.f32.mrb[0].mxu0
  %3521 = vmatprep.mubr.f32.mxu0 %v3311
  %3522 = vmatmul.mubr.f32.gmra.mrb[0].mxu0 %v3303
  %v3523 = vpop.f32.mrb[0].mxu0
  %v3524 = vadd.f32 0.0, %v3523
  %v3525 = vpop.f32.mrb[0].mxu0
  %3526 = vdwg.mxu0
  %3527 = vmatprep.subr.mxu0 0.0
  %3528 = vmatpush1.msra.mxu0 %v3362
  %3529 = vmatprep.subr.mxu0 0.0
  %3530 = vmatpush1.msra.mxu0 %v3363
  %3531 = vmatprep.subr.mxu0 0.0
  %3532 = vmatpush1.msra.mxu0 %v3364
  %3533 = vmatprep.subr.mxu0 0.0
  %3534 = vmatpush1.msra.mxu0 %v3365
  %3535 = vmatprep.subr.mxu0 0.0
  %3536 = vmatpush1.msra.mxu0 %v3366
  %3537 = vmatprep.subr.mxu0 0.0
  %3538 = vmatpush1.msra.mxu0 %v3367
  %3539 = vmatprep.subr.mxu0 0.0
  %3540 = vmatpush1.msra.mxu0 %v3368
  %3541 = vmatprep.subr.mxu0 0.0
  %3542 = vmatpush1.msra.mxu0 %v3369
  %3543 = vmatprep.subr.mxu0 0.0
  %3544 = vmatpush1.msra.mxu0 %v3370
  %3545 = vmatprep.subr.mxu0 0.0
  %3546 = vmatpush1.msra.mxu0 %v3371
  %3547 = vmatprep.subr.mxu0 0.0
  %3548 = vmatpush1.msra.mxu0 %v3372
  %3549 = vmatprep.subr.mxu0 0.0
  %3550 = vmatpush1.msra.mxu0 %v3373
  %3551 = vmatprep.subr.mxu0 0.0
  %3552 = vmatpush1.msra.mxu0 %v3374
  %3553 = vmatprep.subr.mxu0 0.0
  %3554 = vmatpush1.msra.mxu0 %v3375
  %3555 = vmatprep.subr.mxu0 0.0
  %3556 = vmatpush1.msra.mxu0 %v3376
  %3557 = vmatprep.subr.mxu0 0.0
  %3558 = vmatpush1.msra.mxu0 %v3377
  %3559 = vmatprep.subr.mxu0 0.0
  %3560 = vmatpush1.msra.mxu0 %v3378
  %3561 = vmatprep.subr.mxu0 0.0
  %3562 = vmatpush1.msra.mxu0 %v3379
  %3563 = vmatprep.subr.mxu0 0.0
  %3564 = vmatpush1.msra.mxu0 %v3380
  %3565 = vmatprep.subr.mxu0 0.0
  %3566 = vmatpush1.msra.mxu0 %v3381
  %3567 = vmatprep.subr.mxu0 0.0
  %3568 = vmatpush1.msra.mxu0 %v3382
  %3569 = vmatprep.subr.mxu0 0.0
  %3570 = vmatpush1.msra.mxu0 %v3383
  %3571 = vmatprep.subr.mxu0 0.0
  %3572 = vmatpush1.msra.mxu0 %v3384
  %3573 = vmatprep.subr.mxu0 0.0
  %3574 = vmatpush1.msra.mxu0 %v3385
  %3575 = vmatprep.subr.mxu0 0.0
  %3576 = vmatpush1.msra.mxu0 %v3386
  %3577 = vmatprep.subr.mxu0 0.0
  %3578 = vmatpush1.msra.mxu0 %v3387
  %3579 = vmatprep.subr.mxu0 0.0
  %3580 = vmatpush1.msra.mxu0 %v3388
  %3581 = vmatprep.subr.mxu0 0.0
  %3582 = vmatpush1.msra.mxu0 %v3389
  %3583 = vmatprep.subr.mxu0 0.0
  %3584 = vmatpush1.msra.mxu0 %v3390
  %3585 = vmatprep.subr.mxu0 0.0
  %3586 = vmatpush1.msra.mxu0 %v3391
  %3587 = vmatprep.subr.mxu0 0.0
  %3588 = vmatpush1.msra.mxu0 %v3392
  %3589 = vmatprep.subr.mxu0 0.0
  %3590 = vmatpush1.msra.mxu0 %v3393
  %3591 = vmatprep.mubr.f32.mxu0 %v3322
  %3592 = vmatmul.mubr.f32.gmra.mrb[0].mxu0 %v3313
  %v3593 = vpop.f32.mrb[0].mxu0
  %v3594 = vadd.f32 %v3489, %v3593
  %v3595 = vpop.f32.mrb[0].mxu0
  %3596 = vmatprep.mubr.f32.mxu0 %v3323
  %3597 = vmatmul.mubr.f32.gmra.mrb[0].mxu0 %v3314
  %v3598 = vpop.f32.mrb[0].mxu0
  %v3599 = vadd.f32 %v3494, %v3598
  %v3600 = vpop.f32.mrb[0].mxu0
  %3601 = vmatprep.mubr.f32.mxu0 %v3324
  %3602 = vmatmul.mubr.f32.gmra.mrb[0].mxu0 %v3315
  %v3603 = vpop.f32.mrb[0].mxu0
  %v3604 = vadd.f32 %v3499, %v3603
  %v3605 = vpop.f32.mrb[0].mxu0
  %3606 = vmatprep.mubr.f32.mxu0 %v3325
  %3607 = vmatmul.mubr.f32.gmra.mrb[0].mxu0 %v3316
  %v3608 = vpop.f32.mrb[0].mxu0
  %v3609 = vadd.f32 %v3504, %v3608
  %v3610 = vpop.f32.mrb[0].mxu0
  %3611 = vmatprep.mubr.f32.mxu0 %v3326
  %3612 = vmatmul.mubr.f32.gmra.mrb[0].mxu0 %v3317
  %v3613 = vpop.f32.mrb[0].mxu0
  %v3614 = vadd.f32 %v3509, %v3613
  %v3615 = vpop.f32.mrb[0].mxu0
  %3616 = vmatprep.mubr.f32.mxu0 %v3327
  %3617 = vmatmul.mubr.f32.gmra.mrb[0].mxu0 %v3318
  %v3618 = vpop.f32.mrb[0].mxu0
  %v3619 = vadd.f32 %v3514, %v3618
  %v3620 = vpop.f32.mrb[0].mxu0
  %3621 = vmatprep.mubr.f32.mxu0 %v3328
  %3622 = vmatmul.mubr.f32.gmra.mrb[0].mxu0 %v3319
  %v3623 = vpop.f32.mrb[0].mxu0
  %v3624 = vadd.f32 %v3519, %v3623
  %v3625 = vpop.f32.mrb[0].mxu0
  %3626 = vmatprep.mubr.f32.mxu0 %v3329
  %3627 = vmatmul.mubr.f32.gmra.mrb[0].mxu0 %v3320
  %v3628 = vpop.f32.mrb[0].mxu0
  %v3629 = vadd.f32 %v3524, %v3628
  %v3630 = vpop.f32.mrb[0].mxu0
  %3631 = vdwg.mxu0
  %3632 = vmatprep.subr.mxu0 0.0
  %3633 = vmatpush1.msra.mxu0 %v3394
  %3634 = vmatprep.subr.mxu0 0.0
  %3635 = vmatpush1.msra.mxu0 %v3395
  %3636 = vmatprep.subr.mxu0 0.0
  %3637 = vmatpush1.msra.mxu0 %v3396
  %3638 = vmatprep.subr.mxu0 0.0
  %3639 = vmatpush1.msra.mxu0 %v3397
  %3640 = vmatprep.subr.mxu0 0.0
  %3641 = vmatpush1.msra.mxu0 %v3398
  %3642 = vmatprep.subr.mxu0 0.0
  %3643 = vmatpush1.msra.mxu0 %v3399
  %3644 = vmatprep.subr.mxu0 0.0
  %3645 = vmatpush1.msra.mxu0 %v3400
  %3646 = vmatprep.subr.mxu0 0.0
  %3647 = vmatpush1.msra.mxu0 %v3401
  %3648 = vmatprep.subr.mxu0 0.0
  %3649 = vmatpush1.msra.mxu0 %v3402
  %3650 = vmatprep.subr.mxu0 0.0
  %3651 = vmatpush1.msra.mxu0 %v3403
  %3652 = vmatprep.subr.mxu0 0.0
  %3653 = vmatpush1.msra.mxu0 %v3404
  %3654 = vmatprep.subr.mxu0 0.0
  %3655 = vmatpush1.msra.mxu0 0.0
  %3656 = vmatprep.subr.mxu0 0.0
  %3657 = vmatpush1.msra.mxu0 0.0
  %3658 = vmatprep.subr.mxu0 0.0
  %3659 = vmatpush1.msra.mxu0 0.0
  %3660 = vmatprep.subr.mxu0 0.0
  %3661 = vmatpush1.msra.mxu0 0.0
  %3662 = vmatprep.subr.mxu0 0.0
  %3663 = vmatpush1.msra.mxu0 0.0
  %3664 = vmatprep.subr.mxu0 0.0
  %3665 = vmatpush1.msra.mxu0 0.0
  %3666 = vmatprep.subr.mxu0 0.0
  %3667 = vmatpush1.msra.mxu0 0.0
  %3668 = vmatprep.subr.mxu0 0.0
  %3669 = vmatpush1.msra.mxu0 0.0
  %3670 = vmatprep.subr.mxu0 0.0
  %3671 = vmatpush1.msra.mxu0 0.0
  %3672 = vmatprep.subr.mxu0 0.0
  %3673 = vmatpush1.msra.mxu0 0.0
  %3674 = vmatprep.subr.mxu0 0.0
  %3675 = vmatpush1.msra.mxu0 0.0
  %3676 = vmatprep.subr.mxu0 0.0
  %3677 = vmatpush1.msra.mxu0 0.0
  %3678 = vmatprep.subr.mxu0 0.0
  %3679 = vmatpush1.msra.mxu0 0.0
  %3680 = vmatprep.subr.mxu0 0.0
  %3681 = vmatpush1.msra.mxu0 0.0
  %3682 = vmatprep.subr.mxu0 0.0
  %3683 = vmatpush1.msra.mxu0 0.0
  %3684 = vmatprep.subr.mxu0 0.0
  %3685 = vmatpush1.msra.mxu0 0.0
  %3686 = vmatprep.subr.mxu0 0.0
  %3687 = vmatpush1.msra.mxu0 0.0
  %3688 = vmatprep.subr.mxu0 0.0
  %3689 = vmatpush1.msra.mxu0 0.0
  %3690 = vmatprep.subr.mxu0 0.0
  %3691 = vmatpush1.msra.mxu0 0.0
  %3692 = vmatprep.subr.mxu0 0.0
  %3693 = vmatpush1.msra.mxu0 0.0
  %3694 = vmatprep.subr.mxu0 0.0
  %3695 = vmatpush1.msra.mxu0 0.0
  %3696 = vmatprep.mubr.f32.mxu0 0.0
  %3697 = vmatmul.mubr.f32.gmra.mrb[0].mxu0 %v3406
  %v3698 = vpop.f32.mrb[0].mxu0
  %v3699 = vadd.f32 %v3594, %v3698
  %v3700 = vpop.f32.mrb[0].mxu0
  %3701 = vmatprep.mubr.f32.mxu0 0.0
  %3702 = vmatmul.mubr.f32.gmra.mrb[0].mxu0 %v3408
  %v3703 = vpop.f32.mrb[0].mxu0
  %v3704 = vadd.f32 %v3599, %v3703
  %v3705 = vpop.f32.mrb[0].mxu0
  %3706 = vmatprep.mubr.f32.mxu0 0.0
  %3707 = vmatmul.mubr.f32.gmra.mrb[0].mxu0 %v3410
  %v3708 = vpop.f32.mrb[0].mxu0
  %v3709 = vadd.f32 %v3604, %v3708
  %v3710 = vpop.f32.mrb[0].mxu0
  %3711 = vmatprep.mubr.f32.mxu0 0.0
  %3712 = vmatmul.mubr.f32.gmra.mrb[0].mxu0 %v3412
  %v3713 = vpop.f32.mrb[0].mxu0
  %v3714 = vadd.f32 %v3609, %v3713
  %v3715 = vpop.f32.mrb[0].mxu0
  %3716 = vmatprep.mubr.f32.mxu0 0.0
  %3717 = vmatmul.mubr.f32.gmra.mrb[0].mxu0 %v3414
  %v3718 = vpop.f32.mrb[0].mxu0
  %v3719 = vadd.f32 %v3614, %v3718
  %v3720 = vpop.f32.mrb[0].mxu0
  %3721 = vmatprep.mubr.f32.mxu0 0.0
  %3722 = vmatmul.mubr.f32.gmra.mrb[0].mxu0 %v3416
  %v3723 = vpop.f32.mrb[0].mxu0
  %v3724 = vadd.f32 %v3619, %v3723
  %v3725 = vpop.f32.mrb[0].mxu0
  %3726 = vmatprep.mubr.f32.mxu0 0.0
  %3727 = vmatmul.mubr.f32.gmra.mrb[0].mxu0 %v3418
  %v3728 = vpop.f32.mrb[0].mxu0
  %v3729 = vadd.f32 %v3624, %v3728
  %v3730 = vpop.f32.mrb[0].mxu0
  %3731 = vmatprep.mubr.f32.mxu0 0.0
  %3732 = vmatmul.mubr.f32.gmra.mrb[0].mxu0 %v3420
  %v3733 = vpop.f32.mrb[0].mxu0
  %v3734 = vadd.f32 %v3629, %v3733
  %v3735 = vpop.f32.mrb[0].mxu0
  %3736 = vdwg.mxu0
  %v3737 = vld [vmem:[%s5] sm:$0xff]
  %v3738 = vld [vmem:[%s5 + $0x8] sm:$0xff]
  %v3739 = vld [vmem:[%s5 + $0x10] sm:$0xff]
  %v3740 = vld [vmem:[%s5 + $0x18] sm:$0xff]
  %v3741 = vld [vmem:[%s5 + $0x20] sm:$0xff]
  %v3742 = vld [vmem:[%s5 + $0x28] sm:$0xff]
  %v3743 = vld [vmem:[%s5 + $0x30] sm:$0xff]
  %v3744 = vld [vmem:[%s5 + $0x38] sm:$0xff]
  %v3745 = vld [vmem:[%s5 + $0x40] sm:$0xff]
  %v3746 = vld [vmem:[%s5 + $0x48] sm:$0xff]
  %v3747 = vld [vmem:[%s5 + $0x50] sm:$0xff]
  %v3748 = vld [vmem:[%s5 + $0x58] sm:$0xff]
  %v3749 = vld [vmem:[%s5 + $0x60] sm:$0xff]
  %v3750 = vld [vmem:[%s5 + $0x68] sm:$0xff]
  %v3751 = vld [vmem:[%s5 + $0x70] sm:$0xff]
  %v3752 = vld [vmem:[%s5 + $0x78] sm:$0xff]
  %v3753 = vld [vmem:[%s5 + $0x80] sm:$0xff]
  %v3754 = vld [vmem:[%s5 + $0x88] sm:$0xff]
  %v3755 = vld [vmem:[%s5 + $0x90] sm:$0xff]
  %v3756 = vld [vmem:[%s5 + $0x98] sm:$0xff]
  %v3757 = vld [vmem:[%s5 + $0xa0] sm:$0xff]
  %v3758 = vld [vmem:[%s5 + $0xa8] sm:$0xff]
  %v3759 = vld [vmem:[%s5 + $0xb0] sm:$0xff]
  %v3760 = vld [vmem:[%s5 + $0xb8] sm:$0xff]
  %v3761 = vld [vmem:[%s5 + $0xc0] sm:$0xff]
  %v3762 = vld [vmem:[%s5 + $0xc8] sm:$0xff]
  %v3763 = vld [vmem:[%s5 + $0xd0] sm:$0xff]
  %v3764 = vld [vmem:[%s5 + $0xd8] sm:$0xff]
  %v3765 = vld [vmem:[%s5 + $0xe0] sm:$0xff]
  %v3766 = vld [vmem:[%s5 + $0xe8] sm:$0xff]
  %v3767 = vld [vmem:[%s5 + $0xf0] sm:$0xff]
  %v3768 = vld [vmem:[%s5 + $0xf8] sm:$0xff]
  %v3769 = vld [vmem:[%s5 + $0x100] sm:$0xff]
  %v3770 = vld [vmem:[%s5 + $0x108] sm:$0xff]
  %v3771 = vld [vmem:[%s5 + $0x110] sm:$0xff]
  %v3772 = vld [vmem:[%s5 + $0x118] sm:$0xff]
  %v3773 = vld [vmem:[%s5 + $0x120] sm:$0xff]
  %v3774 = vld [vmem:[%s5 + $0x128] sm:$0xff]
  %v3775 = vld [vmem:[%s5 + $0x130] sm:$0xff]
  %v3776 = vld [vmem:[%s5 + $0x138] sm:$0xff]
  %v3777 = vld [vmem:[%s5 + $0x140] sm:$0xff]
  %v3778 = vld [vmem:[%s5 + $0x148] sm:$0xff]
  %v3779 = vld [vmem:[%s5 + $0x150] sm:$0xff]
  %v3780 = vld [vmem:[%s5 + $0x158] sm:$0xff]
  %v3781 = vld [vmem:[%s5 + $0x160] sm:$0xff]
  %v3782 = vld [vmem:[%s5 + $0x168] sm:$0xff]
  %v3783 = vld [vmem:[%s5 + $0x170] sm:$0xff]
  %v3784 = vld [vmem:[%s5 + $0x178] sm:$0xff]
  %v3785 = vld [vmem:[%s5 + $0x180] sm:$0xff]
  %v3786 = vld [vmem:[%s5 + $0x188] sm:$0xff]
  %v3787 = vld [vmem:[%s5 + $0x190] sm:$0xff]
  %v3788 = vld [vmem:[%s5 + $0x198] sm:$0xff]
  %v3789 = vld [vmem:[%s5 + $0x1a0] sm:$0xff]
  %v3790 = vld [vmem:[%s5 + $0x1a8] sm:$0xff]
  %v3791 = vld [vmem:[%s5 + $0x1b0] sm:$0xff]
  %v3792 = vld [vmem:[%s5 + $0x1b8] sm:$0xff]
  %v3793 = vld [vmem:[%s5 + $0x1c0] sm:$0xff]
  %v3794 = vld [vmem:[%s5 + $0x1c8] sm:$0xff]
  %v3795 = vld [vmem:[%s5 + $0x1d0] sm:$0xff]
  %v3796 = vld [vmem:[%s5 + $0x1d8] sm:$0xff]
  %v3797 = vld [vmem:[%s5 + $0x1e0] sm:$0xff]
  %v3798 = vld [vmem:[%s5 + $0x1e8] sm:$0xff]
  %v3799 = vld [vmem:[%s5 + $0x1f0] sm:$0xff]
  %v3800 = vld [vmem:[%s5 + $0x1f8] sm:$0xff]
  %v3801 = vld [vmem:[%s5 + $0x200] sm:$0xff]
  %v3802 = vld [vmem:[%s5 + $0x208] sm:$0xff]
  %v3803 = vld [vmem:[%s5 + $0x210] sm:$0xff]
  %v3804 = vld [vmem:[%s5 + $0x218] sm:$0xff]
  %v3805 = vld [vmem:[%s5 + $0x220] sm:$0xff]
  %v3806 = vld [vmem:[%s5 + $0x228] sm:$0xff]
  %v3807 = vld [vmem:[%s5 + $0x230] sm:$0xff]
  %v3808 = vld [vmem:[%s5 + $0x238] sm:$0xff]
  %v3809 = vld [vmem:[%s5 + $0x240] sm:$0xff]
  %v3810 = vld [vmem:[%s5 + $0x248] sm:$0xff]
  %v3811 = vld [vmem:[%s5 + $0x250] sm:$0xff]
  %3812 = vmatprep.subr.mxu0 0.0
  %3813 = vmatpush1.msra.mxu0 %v3737
  %3814 = vmatprep.subr.mxu0 0.0
  %3815 = vmatpush1.msra.mxu0 %v3738
  %3816 = vmatprep.subr.mxu0 0.0
  %3817 = vmatpush1.msra.mxu0 %v3739
  %3818 = vmatprep.subr.mxu0 0.0
  %3819 = vmatpush1.msra.mxu0 %v3740
  %3820 = vmatprep.subr.mxu0 0.0
  %3821 = vmatpush1.msra.mxu0 %v3741
  %3822 = vmatprep.subr.mxu0 0.0
  %3823 = vmatpush1.msra.mxu0 %v3742
  %3824 = vmatprep.subr.mxu0 0.0
  %3825 = vmatpush1.msra.mxu0 %v3743
  %3826 = vmatprep.subr.mxu0 0.0
  %3827 = vmatpush1.msra.mxu0 %v3744
  %3828 = vmatprep.subr.mxu0 0.0
  %3829 = vmatpush1.msra.mxu0 %v3745
  %3830 = vmatprep.subr.mxu0 0.0
  %3831 = vmatpush1.msra.mxu0 %v3746
  %3832 = vmatprep.subr.mxu0 0.0
  %3833 = vmatpush1.msra.mxu0 %v3747
  %3834 = vmatprep.subr.mxu0 0.0
  %3835 = vmatpush1.msra.mxu0 %v3748
  %3836 = vmatprep.subr.mxu0 0.0
  %3837 = vmatpush1.msra.mxu0 %v3749
  %3838 = vmatprep.subr.mxu0 0.0
  %3839 = vmatpush1.msra.mxu0 %v3750
  %3840 = vmatprep.subr.mxu0 0.0
  %3841 = vmatpush1.msra.mxu0 %v3751
  %3842 = vmatprep.subr.mxu0 0.0
  %3843 = vmatpush1.msra.mxu0 %v3752
  %3844 = vmatprep.subr.mxu0 0.0
  %3845 = vmatpush1.msra.mxu0 %v3753
  %3846 = vmatprep.subr.mxu0 0.0
  %3847 = vmatpush1.msra.mxu0 %v3754
  %3848 = vmatprep.subr.mxu0 0.0
  %3849 = vmatpush1.msra.mxu0 %v3755
  %3850 = vmatprep.subr.mxu0 0.0
  %3851 = vmatpush1.msra.mxu0 %v3756
  %3852 = vmatprep.subr.mxu0 0.0
  %3853 = vmatpush1.msra.mxu0 %v3757
  %3854 = vmatprep.subr.mxu0 0.0
  %3855 = vmatpush1.msra.mxu0 %v3758
  %3856 = vmatprep.subr.mxu0 0.0
  %3857 = vmatpush1.msra.mxu0 %v3759
  %3858 = vmatprep.subr.mxu0 0.0
  %3859 = vmatpush1.msra.mxu0 %v3760
  %3860 = vmatprep.subr.mxu0 0.0
  %3861 = vmatpush1.msra.mxu0 %v3761
  %3862 = vmatprep.subr.mxu0 0.0
  %3863 = vmatpush1.msra.mxu0 %v3762
  %3864 = vmatprep.subr.mxu0 0.0
  %3865 = vmatpush1.msra.mxu0 %v3763
  %3866 = vmatprep.subr.mxu0 0.0
  %3867 = vmatpush1.msra.mxu0 %v3764
  %3868 = vmatprep.subr.mxu0 0.0
  %3869 = vmatpush1.msra.mxu0 %v3765
  %3870 = vmatprep.subr.mxu0 0.0
  %3871 = vmatpush1.msra.mxu0 %v3766
  %3872 = vmatprep.subr.mxu0 0.0
  %3873 = vmatpush1.msra.mxu0 %v3767
  %3874 = vmatprep.subr.mxu0 0.0
  %3875 = vmatpush1.msra.mxu0 %v3768
  %3876 = vmatprep.mubr.f32.mxu0 %v3304
  %3877 = vmatmul.mubr.f32.gmra.mrb[0].mxu0 %v3296
  %v3878 = vpop.f32.mrb[0].mxu0
  %v3879 = vadd.f32 0.0, %v3878
  %v3880 = vpop.f32.mrb[0].mxu0
  %3881 = vmatprep.mubr.f32.mxu0 %v3305
  %3882 = vmatmul.mubr.f32.gmra.mrb[0].mxu0 %v3297
  %v3883 = vpop.f32.mrb[0].mxu0
  %v3884 = vadd.f32 0.0, %v3883
  %v3885 = vpop.f32.mrb[0].mxu0
  %3886 = vmatprep.mubr.f32.mxu0 %v3306
  %3887 = vmatmul.mubr.f32.gmra.mrb[0].mxu0 %v3298
  %v3888 = vpop.f32.mrb[0].mxu0
  %v3889 = vadd.f32 0.0, %v3888
  %v3890 = vpop.f32.mrb[0].mxu0
  %3891 = vmatprep.mubr.f32.mxu0 %v3307
  %3892 = vmatmul.mubr.f32.gmra.mrb[0].mxu0 %v3299
  %v3893 = vpop.f32.mrb[0].mxu0
  %v3894 = vadd.f32 0.0, %v3893
  %v3895 = vpop.f32.mrb[0].mxu0
  %3896 = vmatprep.mubr.f32.mxu0 %v3308
  %3897 = vmatmul.mubr.f32.gmra.mrb[0].mxu0 %v3300
  %v3898 = vpop.f32.mrb[0].mxu0
  %v3899 = vadd.f32 0.0, %v3898
  %v3900 = vpop.f32.mrb[0].mxu0
  %3901 = vmatprep.mubr.f32.mxu0 %v3309
  %3902 = vmatmul.mubr.f32.gmra.mrb[0].mxu0 %v3301
  %v3903 = vpop.f32.mrb[0].mxu0
  %v3904 = vadd.f32 0.0, %v3903
  %v3905 = vpop.f32.mrb[0].mxu0
  %3906 = vmatprep.mubr.f32.mxu0 %v3310
  %3907 = vmatmul.mubr.f32.gmra.mrb[0].mxu0 %v3302
  %v3908 = vpop.f32.mrb[0].mxu0
  %v3909 = vadd.f32 0.0, %v3908
  %v3910 = vpop.f32.mrb[0].mxu0
  %3911 = vmatprep.mubr.f32.mxu0 %v3311
  %3912 = vmatmul.mubr.f32.gmra.mrb[0].mxu0 %v3303
  %v3913 = vpop.f32.mrb[0].mxu0
  %v3914 = vadd.f32 0.0, %v3913
  %v3915 = vpop.f32.mrb[0].mxu0
  %3916 = vdwg.mxu0
  %3917 = vmatprep.subr.mxu0 0.0
  %3918 = vmatpush1.msra.mxu0 %v3769
  %3919 = vmatprep.subr.mxu0 0.0
  %3920 = vmatpush1.msra.mxu0 %v3770
  %3921 = vmatprep.subr.mxu0 0.0
  %3922 = vmatpush1.msra.mxu0 %v3771
  %3923 = vmatprep.subr.mxu0 0.0
  %3924 = vmatpush1.msra.mxu0 %v3772
  %3925 = vmatprep.subr.mxu0 0.0
  %3926 = vmatpush1.msra.mxu0 %v3773
  %3927 = vmatprep.subr.mxu0 0.0
  %3928 = vmatpush1.msra.mxu0 %v3774
  %3929 = vmatprep.subr.mxu0 0.0
  %3930 = vmatpush1.msra.mxu0 %v3775
  %3931 = vmatprep.subr.mxu0 0.0
  %3932 = vmatpush1.msra.mxu0 %v3776
  %3933 = vmatprep.subr.mxu0 0.0
  %3934 = vmatpush1.msra.mxu0 %v3777
  %3935 = vmatprep.subr.mxu0 0.0
  %3936 = vmatpush1.msra.mxu0 %v3778
  %3937 = vmatprep.subr.mxu0 0.0
  %3938 = vmatpush1.msra.mxu0 %v3779
  %3939 = vmatprep.subr.mxu0 0.0
  %3940 = vmatpush1.msra.mxu0 %v3780
  %3941 = vmatprep.subr.mxu0 0.0
  %3942 = vmatpush1.msra.mxu0 %v3781
  %3943 = vmatprep.subr.mxu0 0.0
  %3944 = vmatpush1.msra.mxu0 %v3782
  %3945 = vmatprep.subr.mxu0 0.0
  %3946 = vmatpush1.msra.mxu0 %v3783
  %3947 = vmatprep.subr.mxu0 0.0
  %3948 = vmatpush1.msra.mxu0 %v3784
  %3949 = vmatprep.subr.mxu0 0.0
  %3950 = vmatpush1.msra.mxu0 %v3785
  %3951 = vmatprep.subr.mxu0 0.0
  %3952 = vmatpush1.msra.mxu0 %v3786
  %3953 = vmatprep.subr.mxu0 0.0
  %3954 = vmatpush1.msra.mxu0 %v3787
  %3955 = vmatprep.subr.mxu0 0.0
  %3956 = vmatpush1.msra.mxu0 %v3788
  %3957 = vmatprep.subr.mxu0 0.0
  %3958 = vmatpush1.msra.mxu0 %v3789
  %3959 = vmatprep.subr.mxu0 0.0
  %3960 = vmatpush1.msra.mxu0 %v3790
  %3961 = vmatprep.subr.mxu0 0.0
  %3962 = vmatpush1.msra.mxu0 %v3791
  %3963 = vmatprep.subr.mxu0 0.0
  %3964 = vmatpush1.msra.mxu0 %v3792
  %3965 = vmatprep.subr.mxu0 0.0
  %3966 = vmatpush1.msra.mxu0 %v3793
  %3967 = vmatprep.subr.mxu0 0.0
  %3968 = vmatpush1.msra.mxu0 %v3794
  %3969 = vmatprep.subr.mxu0 0.0
  %3970 = vmatpush1.msra.mxu0 %v3795
  %3971 = vmatprep.subr.mxu0 0.0
  %3972 = vmatpush1.msra.mxu0 %v3796
  %3973 = vmatprep.subr.mxu0 0.0
  %3974 = vmatpush1.msra.mxu0 %v3797
  %3975 = vmatprep.subr.mxu0 0.0
  %3976 = vmatpush1.msra.mxu0 %v3798
  %3977 = vmatprep.subr.mxu0 0.0
  %3978 = vmatpush1.msra.mxu0 %v3799
  %3979 = vmatprep.subr.mxu0 0.0
  %3980 = vmatpush1.msra.mxu0 %v3800
  %3981 = vmatprep.mubr.f32.mxu0 %v3322
  %3982 = vmatmul.mubr.f32.gmra.mrb[0].mxu0 %v3313
  %v3983 = vpop.f32.mrb[0].mxu0
  %v3984 = vadd.f32 %v3879, %v3983
  %v3985 = vpop.f32.mrb[0].mxu0
  %3986 = vmatprep.mubr.f32.mxu0 %v3323
  %3987 = vmatmul.mubr.f32.gmra.mrb[0].mxu0 %v3314
  %v3988 = vpop.f32.mrb[0].mxu0
  %v3989 = vadd.f32 %v3884, %v3988
  %v3990 = vpop.f32.mrb[0].mxu0
  %3991 = vmatprep.mubr.f32.mxu0 %v3324
  %3992 = vmatmul.mubr.f32.gmra.mrb[0].mxu0 %v3315
  %v3993 = vpop.f32.mrb[0].mxu0
  %v3994 = vadd.f32 %v3889, %v3993
  %v3995 = vpop.f32.mrb[0].mxu0
  %3996 = vmatprep.mubr.f32.mxu0 %v3325
  %3997 = vmatmul.mubr.f32.gmra.mrb[0].mxu0 %v3316
  %v3998 = vpop.f32.mrb[0].mxu0
  %v3999 = vadd.f32 %v3894, %v3998
  %v4000 = vpop.f32.mrb[0].mxu0
  %4001 = vmatprep.mubr.f32.mxu0 %v3326
  %4002 = vmatmul.mubr.f32.gmra.mrb[0].mxu0 %v3317
  %v4003 = vpop.f32.mrb[0].mxu0
  %v4004 = vadd.f32 %v3899, %v4003
  %v4005 = vpop.f32.mrb[0].mxu0
  %4006 = vmatprep.mubr.f32.mxu0 %v3327
  %4007 = vmatmul.mubr.f32.gmra.mrb[0].mxu0 %v3318
  %v4008 = vpop.f32.mrb[0].mxu0
  %v4009 = vadd.f32 %v3904, %v4008
  %v4010 = vpop.f32.mrb[0].mxu0
  %4011 = vmatprep.mubr.f32.mxu0 %v3328
  %4012 = vmatmul.mubr.f32.gmra.mrb[0].mxu0 %v3319
  %v4013 = vpop.f32.mrb[0].mxu0
  %v4014 = vadd.f32 %v3909, %v4013
  %v4015 = vpop.f32.mrb[0].mxu0
  %4016 = vmatprep.mubr.f32.mxu0 %v3329
  %4017 = vmatmul.mubr.f32.gmra.mrb[0].mxu0 %v3320
  %v4018 = vpop.f32.mrb[0].mxu0
  %v4019 = vadd.f32 %v3914, %v4018
  %v4020 = vpop.f32.mrb[0].mxu0
  %4021 = vdwg.mxu0
  %4022 = vmatprep.subr.mxu0 0.0
  %4023 = vmatpush1.msra.mxu0 %v3801
  %4024 = vmatprep.subr.mxu0 0.0
  %4025 = vmatpush1.msra.mxu0 %v3802
  %4026 = vmatprep.subr.mxu0 0.0
  %4027 = vmatpush1.msra.mxu0 %v3803
  %4028 = vmatprep.subr.mxu0 0.0
  %4029 = vmatpush1.msra.mxu0 %v3804
  %4030 = vmatprep.subr.mxu0 0.0
  %4031 = vmatpush1.msra.mxu0 %v3805
  %4032 = vmatprep.subr.mxu0 0.0
  %4033 = vmatpush1.msra.mxu0 %v3806
  %4034 = vmatprep.subr.mxu0 0.0
  %4035 = vmatpush1.msra.mxu0 %v3807
  %4036 = vmatprep.subr.mxu0 0.0
  %4037 = vmatpush1.msra.mxu0 %v3808
  %4038 = vmatprep.subr.mxu0 0.0
  %4039 = vmatpush1.msra.mxu0 %v3809
  %4040 = vmatprep.subr.mxu0 0.0
  %4041 = vmatpush1.msra.mxu0 %v3810
  %4042 = vmatprep.subr.mxu0 0.0
  %4043 = vmatpush1.msra.mxu0 %v3811
  %4044 = vmatprep.subr.mxu0 0.0
  %4045 = vmatpush1.msra.mxu0 0.0
  %4046 = vmatprep.subr.mxu0 0.0
  %4047 = vmatpush1.msra.mxu0 0.0
  %4048 = vmatprep.subr.mxu0 0.0
  %4049 = vmatpush1.msra.mxu0 0.0
  %4050 = vmatprep.subr.mxu0 0.0
  %4051 = vmatpush1.msra.mxu0 0.0
  %4052 = vmatprep.subr.mxu0 0.0
  %4053 = vmatpush1.msra.mxu0 0.0
  %4054 = vmatprep.subr.mxu0 0.0
  %4055 = vmatpush1.msra.mxu0 0.0
  %4056 = vmatprep.subr.mxu0 0.0
  %4057 = vmatpush1.msra.mxu0 0.0
  %4058 = vmatprep.subr.mxu0 0.0
  %4059 = vmatpush1.msra.mxu0 0.0
  %4060 = vmatprep.subr.mxu0 0.0
  %4061 = vmatpush1.msra.mxu0 0.0
  %4062 = vmatprep.subr.mxu0 0.0
  %4063 = vmatpush1.msra.mxu0 0.0
  %4064 = vmatprep.subr.mxu0 0.0
  %4065 = vmatpush1.msra.mxu0 0.0
  %4066 = vmatprep.subr.mxu0 0.0
  %4067 = vmatpush1.msra.mxu0 0.0
  %4068 = vmatprep.subr.mxu0 0.0
  %4069 = vmatpush1.msra.mxu0 0.0
  %4070 = vmatprep.subr.mxu0 0.0
  %4071 = vmatpush1.msra.mxu0 0.0
  %4072 = vmatprep.subr.mxu0 0.0
  %4073 = vmatpush1.msra.mxu0 0.0
  %4074 = vmatprep.subr.mxu0 0.0
  %4075 = vmatpush1.msra.mxu0 0.0
  %4076 = vmatprep.subr.mxu0 0.0
  %4077 = vmatpush1.msra.mxu0 0.0
  %4078 = vmatprep.subr.mxu0 0.0
  %4079 = vmatpush1.msra.mxu0 0.0
  %4080 = vmatprep.subr.mxu0 0.0
  %4081 = vmatpush1.msra.mxu0 0.0
  %4082 = vmatprep.subr.mxu0 0.0
  %4083 = vmatpush1.msra.mxu0 0.0
  %4084 = vmatprep.subr.mxu0 0.0
  %4085 = vmatpush1.msra.mxu0 0.0
  %4086 = vmatprep.mubr.f32.mxu0 0.0
  %4087 = vmatmul.mubr.f32.gmra.mrb[0].mxu0 %v3406
  %v4088 = vpop.f32.mrb[0].mxu0
  %v4089 = vadd.f32 %v3984, %v4088
  %v4090 = vpop.f32.mrb[0].mxu0
  %4091 = vmatprep.mubr.f32.mxu0 0.0
  %4092 = vmatmul.mubr.f32.gmra.mrb[0].mxu0 %v3408
  %v4093 = vpop.f32.mrb[0].mxu0
  %v4094 = vadd.f32 %v3989, %v4093
  %v4095 = vpop.f32.mrb[0].mxu0
  %4096 = vmatprep.mubr.f32.mxu0 0.0
  %4097 = vmatmul.mubr.f32.gmra.mrb[0].mxu0 %v3410
  %v4098 = vpop.f32.mrb[0].mxu0
  %v4099 = vadd.f32 %v3994, %v4098
  %v4100 = vpop.f32.mrb[0].mxu0
  %4101 = vmatprep.mubr.f32.mxu0 0.0
  %4102 = vmatmul.mubr.f32.gmra.mrb[0].mxu0 %v3412
  %v4103 = vpop.f32.mrb[0].mxu0
  %v4104 = vadd.f32 %v3999, %v4103
  %v4105 = vpop.f32.mrb[0].mxu0
  %4106 = vmatprep.mubr.f32.mxu0 0.0
  %4107 = vmatmul.mubr.f32.gmra.mrb[0].mxu0 %v3414
  %v4108 = vpop.f32.mrb[0].mxu0
  %v4109 = vadd.f32 %v4004, %v4108
  %v4110 = vpop.f32.mrb[0].mxu0
  %4111 = vmatprep.mubr.f32.mxu0 0.0
  %4112 = vmatmul.mubr.f32.gmra.mrb[0].mxu0 %v3416
  %v4113 = vpop.f32.mrb[0].mxu0
  %v4114 = vadd.f32 %v4009, %v4113
  %v4115 = vpop.f32.mrb[0].mxu0
  %4116 = vmatprep.mubr.f32.mxu0 0.0
  %4117 = vmatmul.mubr.f32.gmra.mrb[0].mxu0 %v3418
  %v4118 = vpop.f32.mrb[0].mxu0
  %v4119 = vadd.f32 %v4014, %v4118
  %v4120 = vpop.f32.mrb[0].mxu0
  %4121 = vmatprep.mubr.f32.mxu0 0.0
  %4122 = vmatmul.mubr.f32.gmra.mrb[0].mxu0 %v3420
  %v4123 = vpop.f32.mrb[0].mxu0
  %v4124 = vadd.f32 %v4019, %v4123
  %v4125 = vpop.f32.mrb[0].mxu0
  %4126 = vdwg.mxu0
  %v4127 = vmax.f32 %v3699, %v4089
  %v4128 = vmax.f32 %v3704, %v4094
  %v4129 = vmax.f32 %v3709, %v4099
  %v4130 = vmax.f32 %v3714, %v4104
  %v4131 = vmax.f32 %v3719, %v4109
  %v4132 = vmax.f32 %v3724, %v4114
  %v4133 = vmax.f32 %v3729, %v4119
  %v4134 = vmax.f32 %v3734, %v4124
  %v4143 = vcombine.high %v4127, %v4127
  %v4145 = vunpack.c.l.s4 1983009808
  %v4146 = vunpack.c.0.s8 %v4145
  %v4147 = vlaneseq
  %v4148 = vshrl.u32 %v4147, 7
  %v4149 = vsub.s32 %v4146, %v4148
  %v4150 = vrot.slane %v4127, %v4149
  %v4152 = vunpack.c.l.s4 1983009808
  %v4153 = vunpack.c.0.s8 %v4152
  %v4154 = vlaneseq
  %v4155 = vshrl.u32 %v4154, 7
  %v4156 = vsub.s32 %v4153, %v4155
  %v4157 = vrot.slane %v4143, %v4156
  %v4158 = vcombine.high %v4150, %v4150
  %v4159 = vcombine.high %v4157, %v4157
  %v4160 = vcombine.high %v4128, %v4128
  %v4162 = vunpack.c.l.s4 1983009808
  %v4163 = vunpack.c.0.s8 %v4162
  %v4164 = vlaneseq
  %v4165 = vshrl.u32 %v4164, 7
  %v4166 = vsub.s32 %v4163, %v4165
  %v4167 = vrot.slane %v4128, %v4166
  %v4169 = vunpack.c.l.s4 1983009808
  %v4170 = vunpack.c.0.s8 %v4169
  %v4171 = vlaneseq
  %v4172 = vshrl.u32 %v4171, 7
  %v4173 = vsub.s32 %v4170, %v4172
  %v4174 = vrot.slane %v4160, %v4173
  %v4175 = vcombine.high %v4167, %v4167
  %v4176 = vcombine.high %v4174, %v4174
  %v4177 = vcombine.high %v4129, %v4129
  %v4179 = vunpack.c.l.s4 1983009808
  %v4180 = vunpack.c.0.s8 %v4179
  %v4181 = vlaneseq
  %v4182 = vshrl.u32 %v4181, 7
  %v4183 = vsub.s32 %v4180, %v4182
  %v4184 = vrot.slane %v4129, %v4183
  %v4186 = vunpack.c.l.s4 1983009808
  %v4187 = vunpack.c.0.s8 %v4186
  %v4188 = vlaneseq
  %v4189 = vshrl.u32 %v4188, 7
  %v4190 = vsub.s32 %v4187, %v4189
  %v4191 = vrot.slane %v4177, %v4190
  %v4192 = vcombine.high %v4184, %v4184
  %v4193 = vcombine.high %v4191, %v4191
  %v4194 = vcombine.high %v4130, %v4130
  %v4196 = vunpack.c.l.s4 1983009808
  %v4197 = vunpack.c.0.s8 %v4196
  %v4198 = vlaneseq
  %v4199 = vshrl.u32 %v4198, 7
  %v4200 = vsub.s32 %v4197, %v4199
  %v4201 = vrot.slane %v4130, %v4200
  %v4203 = vunpack.c.l.s4 1983009808
  %v4204 = vunpack.c.0.s8 %v4203
  %v4205 = vlaneseq
  %v4206 = vshrl.u32 %v4205, 7
  %v4207 = vsub.s32 %v4204, %v4206
  %v4208 = vrot.slane %v4194, %v4207
  %v4209 = vcombine.high %v4201, %v4201
  %v4210 = vcombine.high %v4208, %v4208
  %v4211 = vcombine.high %v4131, %v4131
  %v4213 = vunpack.c.l.s4 1983009808
  %v4214 = vunpack.c.0.s8 %v4213
  %v4215 = vlaneseq
  %v4216 = vshrl.u32 %v4215, 7
  %v4217 = vsub.s32 %v4214, %v4216
  %v4218 = vrot.slane %v4131, %v4217
  %v4220 = vunpack.c.l.s4 1983009808
  %v4221 = vunpack.c.0.s8 %v4220
  %v4222 = vlaneseq
  %v4223 = vshrl.u32 %v4222, 7
  %v4224 = vsub.s32 %v4221, %v4223
  %v4225 = vrot.slane %v4211, %v4224
  %v4226 = vcombine.high %v4218, %v4218
  %v4227 = vcombine.high %v4225, %v4225
  %v4228 = vcombine.high %v4132, %v4132
  %v4230 = vunpack.c.l.s4 1983009808
  %v4231 = vunpack.c.0.s8 %v4230
  %v4232 = vlaneseq
  %v4233 = vshrl.u32 %v4232, 7
  %v4234 = vsub.s32 %v4231, %v4233
  %v4235 = vrot.slane %v4132, %v4234
  %v4237 = vunpack.c.l.s4 1983009808
  %v4238 = vunpack.c.0.s8 %v4237
  %v4239 = vlaneseq
  %v4240 = vshrl.u32 %v4239, 7
  %v4241 = vsub.s32 %v4238, %v4240
  %v4242 = vrot.slane %v4228, %v4241
  %v4243 = vcombine.high %v4235, %v4235
  %v4244 = vcombine.high %v4242, %v4242
  %v4245 = vcombine.high %v4133, %v4133
  %v4247 = vunpack.c.l.s4 1983009808
  %v4248 = vunpack.c.0.s8 %v4247
  %v4249 = vlaneseq
  %v4250 = vshrl.u32 %v4249, 7
  %v4251 = vsub.s32 %v4248, %v4250
  %v4252 = vrot.slane %v4133, %v4251
  %v4254 = vunpack.c.l.s4 1983009808
  %v4255 = vunpack.c.0.s8 %v4254
  %v4256 = vlaneseq
  %v4257 = vshrl.u32 %v4256, 7
  %v4258 = vsub.s32 %v4255, %v4257
  %v4259 = vrot.slane %v4245, %v4258
  %v4260 = vcombine.high %v4252, %v4252
  %v4261 = vcombine.high %v4259, %v4259
  %v4262 = vcombine.high %v4134, %v4134
  %v4264 = vunpack.c.l.s4 1983009808
  %v4265 = vunpack.c.0.s8 %v4264
  %v4266 = vlaneseq
  %v4267 = vshrl.u32 %v4266, 7
  %v4268 = vsub.s32 %v4265, %v4267
  %v4269 = vrot.slane %v4134, %v4268
  %v4271 = vunpack.c.l.s4 1983009808
  %v4272 = vunpack.c.0.s8 %v4271
  %v4273 = vlaneseq
  %v4274 = vshrl.u32 %v4273, 7
  %v4275 = vsub.s32 %v4272, %v4274
  %v4276 = vrot.slane %v4262, %v4275
  %v4277 = vcombine.high %v4269, %v4269
  %v4278 = vcombine.high %v4276, %v4276
  %vm4311 = vcmask 648192
  %v4312 = vsel %vm4311, %v4150, -inf
  %v4313 = vrot.slane %v4312, 4
  %v4314 = vmax.f32 %v4312, %v4313
  %v4315 = vrot.slane %v4314, 2
  %v4316 = vmax.f32 %v4314, %v4315
  %v4317 = vrot.slane %v4316, 1
  %v4318 = vmax.f32 %v4316, %v4317
  %v4319 = vsel %vm4311, %v4158, -inf
  %v4320 = vrot.slane %v4319, 4
  %v4321 = vmax.f32 %v4319, %v4320
  %v4322 = vrot.slane %v4321, 2
  %v4323 = vmax.f32 %v4321, %v4322
  %v4324 = vrot.slane %v4323, 1
  %v4325 = vmax.f32 %v4323, %v4324
  %v4326 = vsel %vm4311, %v4157, -inf
  %v4327 = vrot.slane %v4326, 4
  %v4328 = vmax.f32 %v4326, %v4327
  %v4329 = vrot.slane %v4328, 2
  %v4330 = vmax.f32 %v4328, %v4329
  %v4331 = vrot.slane %v4330, 1
  %v4332 = vmax.f32 %v4330, %v4331
  %v4333 = vsel %vm4311, %v4159, -inf
  %v4334 = vrot.slane %v4333, 4
  %v4335 = vmax.f32 %v4333, %v4334
  %v4336 = vrot.slane %v4335, 2
  %v4337 = vmax.f32 %v4335, %v4336
  %v4338 = vrot.slane %v4337, 1
  %v4339 = vmax.f32 %v4337, %v4338
  %v4340 = vsel %vm4311, %v4167, -inf
  %v4341 = vrot.slane %v4340, 4
  %v4342 = vmax.f32 %v4340, %v4341
  %v4343 = vrot.slane %v4342, 2
  %v4344 = vmax.f32 %v4342, %v4343
  %v4345 = vrot.slane %v4344, 1
  %v4346 = vmax.f32 %v4344, %v4345
  %v4347 = vsel %vm4311, %v4175, -inf
  %v4348 = vrot.slane %v4347, 4
  %v4349 = vmax.f32 %v4347, %v4348
  %v4350 = vrot.slane %v4349, 2
  %v4351 = vmax.f32 %v4349, %v4350
  %v4352 = vrot.slane %v4351, 1
  %v4353 = vmax.f32 %v4351, %v4352
  %v4354 = vsel %vm4311, %v4174, -inf
  %v4355 = vrot.slane %v4354, 4
  %v4356 = vmax.f32 %v4354, %v4355
  %v4357 = vrot.slane %v4356, 2
  %v4358 = vmax.f32 %v4356, %v4357
  %v4359 = vrot.slane %v4358, 1
  %v4360 = vmax.f32 %v4358, %v4359
  %v4361 = vsel %vm4311, %v4176, -inf
  %v4362 = vrot.slane %v4361, 4
  %v4363 = vmax.f32 %v4361, %v4362
  %v4364 = vrot.slane %v4363, 2
  %v4365 = vmax.f32 %v4363, %v4364
  %v4366 = vrot.slane %v4365, 1
  %v4367 = vmax.f32 %v4365, %v4366
  %v4368 = vsel %vm4311, %v4184, -inf
  %v4369 = vrot.slane %v4368, 4
  %v4370 = vmax.f32 %v4368, %v4369
  %v4371 = vrot.slane %v4370, 2
  %v4372 = vmax.f32 %v4370, %v4371
  %v4373 = vrot.slane %v4372, 1
  %v4374 = vmax.f32 %v4372, %v4373
  %v4375 = vsel %vm4311, %v4192, -inf
  %v4376 = vrot.slane %v4375, 4
  %v4377 = vmax.f32 %v4375, %v4376
  %v4378 = vrot.slane %v4377, 2
  %v4379 = vmax.f32 %v4377, %v4378
  %v4380 = vrot.slane %v4379, 1
  %v4381 = vmax.f32 %v4379, %v4380
  %v4382 = vsel %vm4311, %v4191, -inf
  %v4383 = vrot.slane %v4382, 4
  %v4384 = vmax.f32 %v4382, %v4383
  %v4385 = vrot.slane %v4384, 2
  %v4386 = vmax.f32 %v4384, %v4385
  %v4387 = vrot.slane %v4386, 1
  %v4388 = vmax.f32 %v4386, %v4387
  %v4389 = vsel %vm4311, %v4193, -inf
  %v4390 = vrot.slane %v4389, 4
  %v4391 = vmax.f32 %v4389, %v4390
  %v4392 = vrot.slane %v4391, 2
  %v4393 = vmax.f32 %v4391, %v4392
  %v4394 = vrot.slane %v4393, 1
  %v4395 = vmax.f32 %v4393, %v4394
  %v4396 = vsel %vm4311, %v4201, -inf
  %v4397 = vrot.slane %v4396, 4
  %v4398 = vmax.f32 %v4396, %v4397
  %v4399 = vrot.slane %v4398, 2
  %v4400 = vmax.f32 %v4398, %v4399
  %v4401 = vrot.slane %v4400, 1
  %v4402 = vmax.f32 %v4400, %v4401
  %v4403 = vsel %vm4311, %v4209, -inf
  %v4404 = vrot.slane %v4403, 4
  %v4405 = vmax.f32 %v4403, %v4404
  %v4406 = vrot.slane %v4405, 2
  %v4407 = vmax.f32 %v4405, %v4406
  %v4408 = vrot.slane %v4407, 1
  %v4409 = vmax.f32 %v4407, %v4408
  %v4410 = vsel %vm4311, %v4208, -inf
  %v4411 = vrot.slane %v4410, 4
  %v4412 = vmax.f32 %v4410, %v4411
  %v4413 = vrot.slane %v4412, 2
  %v4414 = vmax.f32 %v4412, %v4413
  %v4415 = vrot.slane %v4414, 1
  %v4416 = vmax.f32 %v4414, %v4415
  %v4417 = vsel %vm4311, %v4210, -inf
  %v4418 = vrot.slane %v4417, 4
  %v4419 = vmax.f32 %v4417, %v4418
  %v4420 = vrot.slane %v4419, 2
  %v4421 = vmax.f32 %v4419, %v4420
  %v4422 = vrot.slane %v4421, 1
  %v4423 = vmax.f32 %v4421, %v4422
  %v4424 = vsel %vm4311, %v4218, -inf
  %v4425 = vrot.slane %v4424, 4
  %v4426 = vmax.f32 %v4424, %v4425
  %v4427 = vrot.slane %v4426, 2
  %v4428 = vmax.f32 %v4426, %v4427
  %v4429 = vrot.slane %v4428, 1
  %v4430 = vmax.f32 %v4428, %v4429
  %v4431 = vsel %vm4311, %v4226, -inf
  %v4432 = vrot.slane %v4431, 4
  %v4433 = vmax.f32 %v4431, %v4432
  %v4434 = vrot.slane %v4433, 2
  %v4435 = vmax.f32 %v4433, %v4434
  %v4436 = vrot.slane %v4435, 1
  %v4437 = vmax.f32 %v4435, %v4436
  %v4438 = vsel %vm4311, %v4225, -inf
  %v4439 = vrot.slane %v4438, 4
  %v4440 = vmax.f32 %v4438, %v4439
  %v4441 = vrot.slane %v4440, 2
  %v4442 = vmax.f32 %v4440, %v4441
  %v4443 = vrot.slane %v4442, 1
  %v4444 = vmax.f32 %v4442, %v4443
  %v4445 = vsel %vm4311, %v4227, -inf
  %v4446 = vrot.slane %v4445, 4
  %v4447 = vmax.f32 %v4445, %v4446
  %v4448 = vrot.slane %v4447, 2
  %v4449 = vmax.f32 %v4447, %v4448
  %v4450 = vrot.slane %v4449, 1
  %v4451 = vmax.f32 %v4449, %v4450
  %v4452 = vsel %vm4311, %v4235, -inf
  %v4453 = vrot.slane %v4452, 4
  %v4454 = vmax.f32 %v4452, %v4453
  %v4455 = vrot.slane %v4454, 2
  %v4456 = vmax.f32 %v4454, %v4455
  %v4457 = vrot.slane %v4456, 1
  %v4458 = vmax.f32 %v4456, %v4457
  %v4459 = vsel %vm4311, %v4243, -inf
  %v4460 = vrot.slane %v4459, 4
  %v4461 = vmax.f32 %v4459, %v4460
  %v4462 = vrot.slane %v4461, 2
  %v4463 = vmax.f32 %v4461, %v4462
  %v4464 = vrot.slane %v4463, 1
  %v4465 = vmax.f32 %v4463, %v4464
  %v4466 = vsel %vm4311, %v4242, -inf
  %v4467 = vrot.slane %v4466, 4
  %v4468 = vmax.f32 %v4466, %v4467
  %v4469 = vrot.slane %v4468, 2
  %v4470 = vmax.f32 %v4468, %v4469
  %v4471 = vrot.slane %v4470, 1
  %v4472 = vmax.f32 %v4470, %v4471
  %v4473 = vsel %vm4311, %v4244, -inf
  %v4474 = vrot.slane %v4473, 4
  %v4475 = vmax.f32 %v4473, %v4474
  %v4476 = vrot.slane %v4475, 2
  %v4477 = vmax.f32 %v4475, %v4476
  %v4478 = vrot.slane %v4477, 1
  %v4479 = vmax.f32 %v4477, %v4478
  %v4480 = vsel %vm4311, %v4252, -inf
  %v4481 = vrot.slane %v4480, 4
  %v4482 = vmax.f32 %v4480, %v4481
  %v4483 = vrot.slane %v4482, 2
  %v4484 = vmax.f32 %v4482, %v4483
  %v4485 = vrot.slane %v4484, 1
  %v4486 = vmax.f32 %v4484, %v4485
  %v4487 = vsel %vm4311, %v4260, -inf
  %v4488 = vrot.slane %v4487, 4
  %v4489 = vmax.f32 %v4487, %v4488
  %v4490 = vrot.slane %v4489, 2
  %v4491 = vmax.f32 %v4489, %v4490
  %v4492 = vrot.slane %v4491, 1
  %v4493 = vmax.f32 %v4491, %v4492
  %v4494 = vsel %vm4311, %v4259, -inf
  %v4495 = vrot.slane %v4494, 4
  %v4496 = vmax.f32 %v4494, %v4495
  %v4497 = vrot.slane %v4496, 2
  %v4498 = vmax.f32 %v4496, %v4497
  %v4499 = vrot.slane %v4498, 1
  %v4500 = vmax.f32 %v4498, %v4499
  %v4501 = vsel %vm4311, %v4261, -inf
  %v4502 = vrot.slane %v4501, 4
  %v4503 = vmax.f32 %v4501, %v4502
  %v4504 = vrot.slane %v4503, 2
  %v4505 = vmax.f32 %v4503, %v4504
  %v4506 = vrot.slane %v4505, 1
  %v4507 = vmax.f32 %v4505, %v4506
  %v4508 = vsel %vm4311, %v4269, -inf
  %v4509 = vrot.slane %v4508, 4
  %v4510 = vmax.f32 %v4508, %v4509
  %v4511 = vrot.slane %v4510, 2
  %v4512 = vmax.f32 %v4510, %v4511
  %v4513 = vrot.slane %v4512, 1
  %v4514 = vmax.f32 %v4512, %v4513
  %v4515 = vsel %vm4311, %v4277, -inf
  %v4516 = vrot.slane %v4515, 4
  %v4517 = vmax.f32 %v4515, %v4516
  %v4518 = vrot.slane %v4517, 2
  %v4519 = vmax.f32 %v4517, %v4518
  %v4520 = vrot.slane %v4519, 1
  %v4521 = vmax.f32 %v4519, %v4520
  %v4522 = vsel %vm4311, %v4276, -inf
  %v4523 = vrot.slane %v4522, 4
  %v4524 = vmax.f32 %v4522, %v4523
  %v4525 = vrot.slane %v4524, 2
  %v4526 = vmax.f32 %v4524, %v4525
  %v4527 = vrot.slane %v4526, 1
  %v4528 = vmax.f32 %v4526, %v4527
  %v4529 = vsel %vm4311, %v4278, -inf
  %v4530 = vrot.slane %v4529, 4
  %v4531 = vmax.f32 %v4529, %v4530
  %v4532 = vrot.slane %v4531, 2
  %v4533 = vmax.f32 %v4531, %v4532
  %v4534 = vrot.slane %v4533, 1
  %v4535 = vmax.f32 %v4533, %v4534
  %v4536 = vld [vmem:[%s6] sm:$0x1]
  %v4538 = vlaneseq
  %v4539 = vshrl.u32 %v4538, 7
  %v4540 = vsub.s32 0, %v4539
  %v4541 = vrot.slane %v4536, %v4540
  %v4543 = vadd.f32 %v4318, %v4541
  %v4544 = vadd.f32 %v4325, %v4541
  %v4545 = vadd.f32 %v4332, %v4541
  %v4546 = vadd.f32 %v4339, %v4541
  %v4547 = vadd.f32 %v4346, %v4541
  %v4548 = vadd.f32 %v4353, %v4541
  %v4549 = vadd.f32 %v4360, %v4541
  %v4550 = vadd.f32 %v4367, %v4541
  %v4551 = vadd.f32 %v4374, %v4541
  %v4552 = vadd.f32 %v4381, %v4541
  %v4553 = vadd.f32 %v4388, %v4541
  %v4554 = vadd.f32 %v4395, %v4541
  %v4555 = vadd.f32 %v4402, %v4541
  %v4556 = vadd.f32 %v4409, %v4541
  %v4557 = vadd.f32 %v4416, %v4541
  %v4558 = vadd.f32 %v4423, %v4541
  %v4559 = vadd.f32 %v4430, %v4541
  %v4560 = vadd.f32 %v4437, %v4541
  %v4561 = vadd.f32 %v4444, %v4541
  %v4562 = vadd.f32 %v4451, %v4541
  %v4563 = vadd.f32 %v4458, %v4541
  %v4564 = vadd.f32 %v4465, %v4541
  %v4565 = vadd.f32 %v4472, %v4541
  %v4566 = vadd.f32 %v4479, %v4541
  %v4567 = vadd.f32 %v4486, %v4541
  %v4568 = vadd.f32 %v4493, %v4541
  %v4569 = vadd.f32 %v4500, %v4541
  %v4570 = vadd.f32 %v4507, %v4541
  %v4571 = vadd.f32 %v4514, %v4541
  %v4572 = vadd.f32 %v4521, %v4541
  %v4573 = vadd.f32 %v4528, %v4541
  %v4574 = vadd.f32 %v4535, %v4541
  %v4575 = vmax.f32 %v4543, 0.0
  %v4576 = vmax.f32 %v4544, 0.0
  %v4577 = vmax.f32 %v4545, 0.0
  %v4578 = vmax.f32 %v4546, 0.0
  %v4579 = vmax.f32 %v4547, 0.0
  %v4580 = vmax.f32 %v4548, 0.0
  %v4581 = vmax.f32 %v4549, 0.0
  %v4582 = vmax.f32 %v4550, 0.0
  %v4583 = vmax.f32 %v4551, 0.0
  %v4584 = vmax.f32 %v4552, 0.0
  %v4585 = vmax.f32 %v4553, 0.0
  %v4586 = vmax.f32 %v4554, 0.0
  %v4587 = vmax.f32 %v4555, 0.0
  %v4588 = vmax.f32 %v4556, 0.0
  %v4589 = vmax.f32 %v4557, 0.0
  %v4590 = vmax.f32 %v4558, 0.0
  %v4591 = vmax.f32 %v4559, 0.0
  %v4592 = vmax.f32 %v4560, 0.0
  %v4593 = vmax.f32 %v4561, 0.0
  %v4594 = vmax.f32 %v4562, 0.0
  %v4595 = vmax.f32 %v4563, 0.0
  %v4596 = vmax.f32 %v4564, 0.0
  %v4597 = vmax.f32 %v4565, 0.0
  %v4598 = vmax.f32 %v4566, 0.0
  %v4599 = vmax.f32 %v4567, 0.0
  %v4600 = vmax.f32 %v4568, 0.0
  %v4601 = vmax.f32 %v4569, 0.0
  %v4602 = vmax.f32 %v4570, 0.0
  %v4603 = vmax.f32 %v4571, 0.0
  %v4604 = vmax.f32 %v4572, 0.0
  %v4605 = vmax.f32 %v4573, 0.0
  %v4606 = vmax.f32 %v4574, 0.0
  %v4607 = vld [vmem:[%s7] sm:$0xff]
  %v4608 = vld [vmem:[%s7 + $0x8] sm:$0xff]
  %v4609 = vld [vmem:[%s7 + $0x10] sm:$0xff]
  %v4610 = vld [vmem:[%s7 + $0x18] sm:$0xff]
  %v4611 = vld [vmem:[%s7 + $0x20] sm:$0xff]
  %v4612 = vld [vmem:[%s7 + $0x28] sm:$0xff]
  %v4613 = vld [vmem:[%s7 + $0x30] sm:$0xff]
  %v4614 = vld [vmem:[%s7 + $0x38] sm:$0xff]
  %v4615 = vld [vmem:[%s7 + $0x40] sm:$0xff]
  %v4616 = vld [vmem:[%s7 + $0x48] sm:$0xff]
  %v4617 = vld [vmem:[%s8] sm:$0x1]
  %v4619 = vlaneseq
  %v4620 = vshrl.u32 %v4619, 7
  %v4621 = vsub.s32 0, %v4620
  %v4622 = vrot.slane %v4617, %v4621
  %v4632 = vrot.slane %v4579, 7
  %v4633 = vsel %vm2593, %v4632, %v4575
  %v4634 = vrot.slane %v4583, 6
  %v4635 = vsel %vm2596, %v4634, %v4633
  %v4636 = vrot.slane %v4587, 5
  %v4637 = vsel %vm2599, %v4636, %v4635
  %v4638 = vrot.slane %v4591, 4
  %v4639 = vsel %vm2602, %v4638, %v4637
  %v4640 = vrot.slane %v4595, 3
  %v4641 = vsel %vm2605, %v4640, %v4639
  %v4642 = vrot.slane %v4599, 2
  %v4643 = vsel %vm2608, %v4642, %v4641
  %v4644 = vrot.slane %v4603, 1
  %v4645 = vsel %vm2611, %v4644, %v4643
  %vm4646 = vcmask 654336
  %v4647 = vsel %vm4646, %v4645, 0
  %4649 = vmatprep.subr.mxu0 0.0
  %4650 = vmatpush1.msra.mxu0 %v4607
  %4651 = vmatprep.subr.mxu0 0.0
  %4652 = vmatpush1.msra.mxu0 %v4608
  %4653 = vmatprep.subr.mxu0 0.0
  %4654 = vmatpush1.msra.mxu0 %v4609
  %4655 = vmatprep.subr.mxu0 0.0
  %4656 = vmatpush1.msra.mxu0 %v4610
  %4657 = vmatprep.subr.mxu0 0.0
  %4658 = vmatpush1.msra.mxu0 %v4611
  %4659 = vmatprep.subr.mxu0 0.0
  %4660 = vmatpush1.msra.mxu0 %v4612
  %4661 = vmatprep.subr.mxu0 0.0
  %4662 = vmatpush1.msra.mxu0 %v4613
  %4663 = vmatprep.subr.mxu0 0.0
  %4664 = vmatpush1.msra.mxu0 %v4614
  %4665 = vmatprep.subr.mxu0 0.0
  %4666 = vmatpush1.msra.mxu0 %v4615
  %4667 = vmatprep.subr.mxu0 0.0
  %4668 = vmatpush1.msra.mxu0 %v4616
  %4669 = vmatprep.subr.mxu0 0.0
  %4670 = vmatpush1.msra.mxu0 0.0
  %4671 = vmatprep.subr.mxu0 0.0
  %4672 = vmatpush1.msra.mxu0 0.0
  %4673 = vmatprep.subr.mxu0 0.0
  %4674 = vmatpush1.msra.mxu0 0.0
  %4675 = vmatprep.subr.mxu0 0.0
  %4676 = vmatpush1.msra.mxu0 0.0
  %4677 = vmatprep.subr.mxu0 0.0
  %4678 = vmatpush1.msra.mxu0 0.0
  %4679 = vmatprep.subr.mxu0 0.0
  %4680 = vmatpush1.msra.mxu0 0.0
  %4681 = vmatprep.subr.mxu0 0.0
  %4682 = vmatpush1.msra.mxu0 0.0
  %4683 = vmatprep.subr.mxu0 0.0
  %4684 = vmatpush1.msra.mxu0 0.0
  %4685 = vmatprep.subr.mxu0 0.0
  %4686 = vmatpush1.msra.mxu0 0.0
  %4687 = vmatprep.subr.mxu0 0.0
  %4688 = vmatpush1.msra.mxu0 0.0
  %4689 = vmatprep.subr.mxu0 0.0
  %4690 = vmatpush1.msra.mxu0 0.0
  %4691 = vmatprep.subr.mxu0 0.0
  %4692 = vmatpush1.msra.mxu0 0.0
  %4693 = vmatprep.subr.mxu0 0.0
  %4694 = vmatpush1.msra.mxu0 0.0
  %4695 = vmatprep.subr.mxu0 0.0
  %4696 = vmatpush1.msra.mxu0 0.0
  %4697 = vmatprep.subr.mxu0 0.0
  %4698 = vmatpush1.msra.mxu0 0.0
  %4699 = vmatprep.subr.mxu0 0.0
  %4700 = vmatpush1.msra.mxu0 0.0
  %4701 = vmatprep.subr.mxu0 0.0
  %4702 = vmatpush1.msra.mxu0 0.0
  %4703 = vmatprep.subr.mxu0 0.0
  %4704 = vmatpush1.msra.mxu0 0.0
  %4705 = vmatprep.subr.mxu0 0.0
  %4706 = vmatpush1.msra.mxu0 0.0
  %4707 = vmatprep.subr.mxu0 0.0
  %4708 = vmatpush1.msra.mxu0 0.0
  %4709 = vmatprep.subr.mxu0 0.0
  %4710 = vmatpush1.msra.mxu0 0.0
  %4711 = vmatprep.subr.mxu0 0.0
  %4712 = vmatpush1.msra.mxu0 0.0
  %4713 = vmatprep.mubr.f32.mxu0 0.0
  %4714 = vmatmul.mubr.f32.gmra.mrb[0].mxu0 %v4647
  %v4715 = vpop.f32.mrb[0].mxu0
  %v4716 = vadd.f32 %v4622, %v4715
  %v4717 = vpop.f32.mrb[0].mxu0
  %4718 = vdwg.mxu0
  %s4719 = scalar_lea.vmem %s7, 80
  %v4720 = vld [vmem:[%s4719] sm:$0xff]
  %v4721 = vld [vmem:[%s4719 + $0x8] sm:$0xff]
  %v4722 = vld [vmem:[%s4719 + $0x10] sm:$0xff]
  %v4723 = vld [vmem:[%s4719 + $0x18] sm:$0xff]
  %v4724 = vld [vmem:[%s4719 + $0x20] sm:$0xff]
  %v4725 = vld [vmem:[%s4719 + $0x28] sm:$0xff]
  %v4726 = vld [vmem:[%s4719 + $0x30] sm:$0xff]
  %v4727 = vld [vmem:[%s4719 + $0x38] sm:$0xff]
  %v4728 = vld [vmem:[%s4719 + $0x40] sm:$0xff]
  %v4729 = vld [vmem:[%s4719 + $0x48] sm:$0xff]
  %v4738 = vrot.slane %v4580, 7
  %v4739 = vsel %vm2593, %v4738, %v4576
  %v4740 = vrot.slane %v4584, 6
  %v4741 = vsel %vm2596, %v4740, %v4739
  %v4742 = vrot.slane %v4588, 5
  %v4743 = vsel %vm2599, %v4742, %v4741
  %v4744 = vrot.slane %v4592, 4
  %v4745 = vsel %vm2602, %v4744, %v4743
  %v4746 = vrot.slane %v4596, 3
  %v4747 = vsel %vm2605, %v4746, %v4745
  %v4748 = vrot.slane %v4600, 2
  %v4749 = vsel %vm2608, %v4748, %v4747
  %v4750 = vrot.slane %v4604, 1
  %v4751 = vsel %vm2611, %v4750, %v4749
  %v4752 = vsel %vm4646, %v4751, 0
  %4754 = vmatprep.subr.mxu0 0.0
  %4755 = vmatpush1.msra.mxu0 %v4720
  %4756 = vmatprep.subr.mxu0 0.0
  %4757 = vmatpush1.msra.mxu0 %v4721
  %4758 = vmatprep.subr.mxu0 0.0
  %4759 = vmatpush1.msra.mxu0 %v4722
  %4760 = vmatprep.subr.mxu0 0.0
  %4761 = vmatpush1.msra.mxu0 %v4723
  %4762 = vmatprep.subr.mxu0 0.0
  %4763 = vmatpush1.msra.mxu0 %v4724
  %4764 = vmatprep.subr.mxu0 0.0
  %4765 = vmatpush1.msra.mxu0 %v4725
  %4766 = vmatprep.subr.mxu0 0.0
  %4767 = vmatpush1.msra.mxu0 %v4726
  %4768 = vmatprep.subr.mxu0 0.0
  %4769 = vmatpush1.msra.mxu0 %v4727
  %4770 = vmatprep.subr.mxu0 0.0
  %4771 = vmatpush1.msra.mxu0 %v4728
  %4772 = vmatprep.subr.mxu0 0.0
  %4773 = vmatpush1.msra.mxu0 %v4729
  %4774 = vmatprep.subr.mxu0 0.0
  %4775 = vmatpush1.msra.mxu0 0.0
  %4776 = vmatprep.subr.mxu0 0.0
  %4777 = vmatpush1.msra.mxu0 0.0
  %4778 = vmatprep.subr.mxu0 0.0
  %4779 = vmatpush1.msra.mxu0 0.0
  %4780 = vmatprep.subr.mxu0 0.0
  %4781 = vmatpush1.msra.mxu0 0.0
  %4782 = vmatprep.subr.mxu0 0.0
  %4783 = vmatpush1.msra.mxu0 0.0
  %4784 = vmatprep.subr.mxu0 0.0
  %4785 = vmatpush1.msra.mxu0 0.0
  %4786 = vmatprep.subr.mxu0 0.0
  %4787 = vmatpush1.msra.mxu0 0.0
  %4788 = vmatprep.subr.mxu0 0.0
  %4789 = vmatpush1.msra.mxu0 0.0
  %4790 = vmatprep.subr.mxu0 0.0
  %4791 = vmatpush1.msra.mxu0 0.0
  %4792 = vmatprep.subr.mxu0 0.0
  %4793 = vmatpush1.msra.mxu0 0.0
  %4794 = vmatprep.subr.mxu0 0.0
  %4795 = vmatpush1.msra.mxu0 0.0
  %4796 = vmatprep.subr.mxu0 0.0
  %4797 = vmatpush1.msra.mxu0 0.0
  %4798 = vmatprep.subr.mxu0 0.0
  %4799 = vmatpush1.msra.mxu0 0.0
  %4800 = vmatprep.subr.mxu0 0.0
  %4801 = vmatpush1.msra.mxu0 0.0
  %4802 = vmatprep.subr.mxu0 0.0
  %4803 = vmatpush1.msra.mxu0 0.0
  %4804 = vmatprep.subr.mxu0 0.0
  %4805 = vmatpush1.msra.mxu0 0.0
  %4806 = vmatprep.subr.mxu0 0.0
  %4807 = vmatpush1.msra.mxu0 0.0
  %4808 = vmatprep.subr.mxu0 0.0
  %4809 = vmatpush1.msra.mxu0 0.0
  %4810 = vmatprep.subr.mxu0 0.0
  %4811 = vmatpush1.msra.mxu0 0.0
  %4812 = vmatprep.subr.mxu0 0.0
  %4813 = vmatpush1.msra.mxu0 0.0
  %4814 = vmatprep.subr.mxu0 0.0
  %4815 = vmatpush1.msra.mxu0 0.0
  %4816 = vmatprep.subr.mxu0 0.0
  %4817 = vmatpush1.msra.mxu0 0.0
  %4818 = vmatprep.mubr.f32.mxu0 0.0
  %4819 = vmatmul.mubr.f32.gmra.mrb[0].mxu0 %v4752
  %v4820 = vpop.f32.mrb[0].mxu0
  %v4821 = vadd.f32 0.0, %v4820
  %v4822 = vpop.f32.mrb[0].mxu0
  %4823 = vdwg.mxu0
  %v4824 = vadd.f32 %v4716, %v4821
  %s4825 = scalar_lea.vmem %s7, 160
  %v4826 = vld [vmem:[%s4825] sm:$0xff]
  %v4827 = vld [vmem:[%s4825 + $0x8] sm:$0xff]
  %v4828 = vld [vmem:[%s4825 + $0x10] sm:$0xff]
  %v4829 = vld [vmem:[%s4825 + $0x18] sm:$0xff]
  %v4830 = vld [vmem:[%s4825 + $0x20] sm:$0xff]
  %v4831 = vld [vmem:[%s4825 + $0x28] sm:$0xff]
  %v4832 = vld [vmem:[%s4825 + $0x30] sm:$0xff]
  %v4833 = vld [vmem:[%s4825 + $0x38] sm:$0xff]
  %v4834 = vld [vmem:[%s4825 + $0x40] sm:$0xff]
  %v4835 = vld [vmem:[%s4825 + $0x48] sm:$0xff]
  %v4844 = vrot.slane %v4581, 7
  %v4845 = vsel %vm2593, %v4844, %v4577
  %v4846 = vrot.slane %v4585, 6
  %v4847 = vsel %vm2596, %v4846, %v4845
  %v4848 = vrot.slane %v4589, 5
  %v4849 = vsel %vm2599, %v4848, %v4847
  %v4850 = vrot.slane %v4593, 4
  %v4851 = vsel %vm2602, %v4850, %v4849
  %v4852 = vrot.slane %v4597, 3
  %v4853 = vsel %vm2605, %v4852, %v4851
  %v4854 = vrot.slane %v4601, 2
  %v4855 = vsel %vm2608, %v4854, %v4853
  %v4856 = vrot.slane %v4605, 1
  %v4857 = vsel %vm2611, %v4856, %v4855
  %v4858 = vsel %vm4646, %v4857, 0
  %4860 = vmatprep.subr.mxu0 0.0
  %4861 = vmatpush1.msra.mxu0 %v4826
  %4862 = vmatprep.subr.mxu0 0.0
  %4863 = vmatpush1.msra.mxu0 %v4827
  %4864 = vmatprep.subr.mxu0 0.0
  %4865 = vmatpush1.msra.mxu0 %v4828
  %4866 = vmatprep.subr.mxu0 0.0
  %4867 = vmatpush1.msra.mxu0 %v4829
  %4868 = vmatprep.subr.mxu0 0.0
  %4869 = vmatpush1.msra.mxu0 %v4830
  %4870 = vmatprep.subr.mxu0 0.0
  %4871 = vmatpush1.msra.mxu0 %v4831
  %4872 = vmatprep.subr.mxu0 0.0
  %4873 = vmatpush1.msra.mxu0 %v4832
  %4874 = vmatprep.subr.mxu0 0.0
  %4875 = vmatpush1.msra.mxu0 %v4833
  %4876 = vmatprep.subr.mxu0 0.0
  %4877 = vmatpush1.msra.mxu0 %v4834
  %4878 = vmatprep.subr.mxu0 0.0
  %4879 = vmatpush1.msra.mxu0 %v4835
  %4880 = vmatprep.subr.mxu0 0.0
  %4881 = vmatpush1.msra.mxu0 0.0
  %4882 = vmatprep.subr.mxu0 0.0
  %4883 = vmatpush1.msra.mxu0 0.0
  %4884 = vmatprep.subr.mxu0 0.0
  %4885 = vmatpush1.msra.mxu0 0.0
  %4886 = vmatprep.subr.mxu0 0.0
  %4887 = vmatpush1.msra.mxu0 0.0
  %4888 = vmatprep.subr.mxu0 0.0
  %4889 = vmatpush1.msra.mxu0 0.0
  %4890 = vmatprep.subr.mxu0 0.0
  %4891 = vmatpush1.msra.mxu0 0.0
  %4892 = vmatprep.subr.mxu0 0.0
  %4893 = vmatpush1.msra.mxu0 0.0
  %4894 = vmatprep.subr.mxu0 0.0
  %4895 = vmatpush1.msra.mxu0 0.0
  %4896 = vmatprep.subr.mxu0 0.0
  %4897 = vmatpush1.msra.mxu0 0.0
  %4898 = vmatprep.subr.mxu0 0.0
  %4899 = vmatpush1.msra.mxu0 0.0
  %4900 = vmatprep.subr.mxu0 0.0
  %4901 = vmatpush1.msra.mxu0 0.0
  %4902 = vmatprep.subr.mxu0 0.0
  %4903 = vmatpush1.msra.mxu0 0.0
  %4904 = vmatprep.subr.mxu0 0.0
  %4905 = vmatpush1.msra.mxu0 0.0
  %4906 = vmatprep.subr.mxu0 0.0
  %4907 = vmatpush1.msra.mxu0 0.0
  %4908 = vmatprep.subr.mxu0 0.0
  %4909 = vmatpush1.msra.mxu0 0.0
  %4910 = vmatprep.subr.mxu0 0.0
  %4911 = vmatpush1.msra.mxu0 0.0
  %4912 = vmatprep.subr.mxu0 0.0
  %4913 = vmatpush1.msra.mxu0 0.0
  %4914 = vmatprep.subr.mxu0 0.0
  %4915 = vmatpush1.msra.mxu0 0.0
  %4916 = vmatprep.subr.mxu0 0.0
  %4917 = vmatpush1.msra.mxu0 0.0
  %4918 = vmatprep.subr.mxu0 0.0
  %4919 = vmatpush1.msra.mxu0 0.0
  %4920 = vmatprep.subr.mxu0 0.0
  %4921 = vmatpush1.msra.mxu0 0.0
  %4922 = vmatprep.subr.mxu0 0.0
  %4923 = vmatpush1.msra.mxu0 0.0
  %4924 = vmatprep.mubr.f32.mxu0 0.0
  %4925 = vmatmul.mubr.f32.gmra.mrb[0].mxu0 %v4858
  %v4926 = vpop.f32.mrb[0].mxu0
  %v4927 = vadd.f32 0.0, %v4926
  %v4928 = vpop.f32.mrb[0].mxu0
  %4929 = vdwg.mxu0
  %v4930 = vadd.f32 %v4824, %v4927
  %s4931 = scalar_lea.vmem %s7, 240
  %v4932 = vld [vmem:[%s4931] sm:$0xff]
  %v4933 = vld [vmem:[%s4931 + $0x8] sm:$0xff]
  %v4934 = vld [vmem:[%s4931 + $0x10] sm:$0xff]
  %v4935 = vld [vmem:[%s4931 + $0x18] sm:$0xff]
  %v4936 = vld [vmem:[%s4931 + $0x20] sm:$0xff]
  %v4937 = vld [vmem:[%s4931 + $0x28] sm:$0xff]
  %v4938 = vld [vmem:[%s4931 + $0x30] sm:$0xff]
  %v4939 = vld [vmem:[%s4931 + $0x38] sm:$0xff]
  %v4940 = vld [vmem:[%s4931 + $0x40] sm:$0xff]
  %v4941 = vld [vmem:[%s4931 + $0x48] sm:$0xff]
  %v4950 = vrot.slane %v4582, 7
  %v4951 = vsel %vm2593, %v4950, %v4578
  %v4952 = vrot.slane %v4586, 6
  %v4953 = vsel %vm2596, %v4952, %v4951
  %v4954 = vrot.slane %v4590, 5
  %v4955 = vsel %vm2599, %v4954, %v4953
  %v4956 = vrot.slane %v4594, 4
  %v4957 = vsel %vm2602, %v4956, %v4955
  %v4958 = vrot.slane %v4598, 3
  %v4959 = vsel %vm2605, %v4958, %v4957
  %v4960 = vrot.slane %v4602, 2
  %v4961 = vsel %vm2608, %v4960, %v4959
  %v4962 = vrot.slane %v4606, 1
  %v4963 = vsel %vm2611, %v4962, %v4961
  %v4964 = vsel %vm4646, %v4963, 0
  %4966 = vmatprep.subr.mxu0 0.0
  %4967 = vmatpush1.msra.mxu0 %v4932
  %4968 = vmatprep.subr.mxu0 0.0
  %4969 = vmatpush1.msra.mxu0 %v4933
  %4970 = vmatprep.subr.mxu0 0.0
  %4971 = vmatpush1.msra.mxu0 %v4934
  %4972 = vmatprep.subr.mxu0 0.0
  %4973 = vmatpush1.msra.mxu0 %v4935
  %4974 = vmatprep.subr.mxu0 0.0
  %4975 = vmatpush1.msra.mxu0 %v4936
  %4976 = vmatprep.subr.mxu0 0.0
  %4977 = vmatpush1.msra.mxu0 %v4937
  %4978 = vmatprep.subr.mxu0 0.0
  %4979 = vmatpush1.msra.mxu0 %v4938
  %4980 = vmatprep.subr.mxu0 0.0
  %4981 = vmatpush1.msra.mxu0 %v4939
  %4982 = vmatprep.subr.mxu0 0.0
  %4983 = vmatpush1.msra.mxu0 %v4940
  %4984 = vmatprep.subr.mxu0 0.0
  %4985 = vmatpush1.msra.mxu0 %v4941
  %4986 = vmatprep.subr.mxu0 0.0
  %4987 = vmatpush1.msra.mxu0 0.0
  %4988 = vmatprep.subr.mxu0 0.0
  %4989 = vmatpush1.msra.mxu0 0.0
  %4990 = vmatprep.subr.mxu0 0.0
  %4991 = vmatpush1.msra.mxu0 0.0
  %4992 = vmatprep.subr.mxu0 0.0
  %4993 = vmatpush1.msra.mxu0 0.0
  %4994 = vmatprep.subr.mxu0 0.0
  %4995 = vmatpush1.msra.mxu0 0.0
  %4996 = vmatprep.subr.mxu0 0.0
  %4997 = vmatpush1.msra.mxu0 0.0
  %4998 = vmatprep.subr.mxu0 0.0
  %4999 = vmatpush1.msra.mxu0 0.0
  %5000 = vmatprep.subr.mxu0 0.0
  %5001 = vmatpush1.msra.mxu0 0.0
  %5002 = vmatprep.subr.mxu0 0.0
  %5003 = vmatpush1.msra.mxu0 0.0
  %5004 = vmatprep.subr.mxu0 0.0
  %5005 = vmatpush1.msra.mxu0 0.0
  %5006 = vmatprep.subr.mxu0 0.0
  %5007 = vmatpush1.msra.mxu0 0.0
  %5008 = vmatprep.subr.mxu0 0.0
  %5009 = vmatpush1.msra.mxu0 0.0
  %5010 = vmatprep.subr.mxu0 0.0
  %5011 = vmatpush1.msra.mxu0 0.0
  %5012 = vmatprep.subr.mxu0 0.0
  %5013 = vmatpush1.msra.mxu0 0.0
  %5014 = vmatprep.subr.mxu0 0.0
  %5015 = vmatpush1.msra.mxu0 0.0
  %5016 = vmatprep.subr.mxu0 0.0
  %5017 = vmatpush1.msra.mxu0 0.0
  %5018 = vmatprep.subr.mxu0 0.0
  %5019 = vmatpush1.msra.mxu0 0.0
  %5020 = vmatprep.subr.mxu0 0.0
  %5021 = vmatpush1.msra.mxu0 0.0
  %5022 = vmatprep.subr.mxu0 0.0
  %5023 = vmatpush1.msra.mxu0 0.0
  %5024 = vmatprep.subr.mxu0 0.0
  %5025 = vmatpush1.msra.mxu0 0.0
  %5026 = vmatprep.subr.mxu0 0.0
  %5027 = vmatpush1.msra.mxu0 0.0
  %5028 = vmatprep.subr.mxu0 0.0
  %5029 = vmatpush1.msra.mxu0 0.0
  %5030 = vmatprep.mubr.f32.mxu0 0.0
  %5031 = vmatmul.mubr.f32.gmra.mrb[0].mxu0 %v4964
  %v5032 = vpop.f32.mrb[0].mxu0
  %v5033 = vadd.f32 0.0, %v5032
  %v5034 = vpop.f32.mrb[0].mxu0
  %5035 = vdwg.mxu0
  %v5036 = vadd.f32 %v4930, %v5033
  %v5037 = vmax.f32 %v5036, 0.0
  %v5038 = vld [vmem:[%s9] sm:$0xff]
  %v5039 = vld [vmem:[%s9 + $0x8] sm:$0xff]
  %v5040 = vld [vmem:[%s9 + $0x10] sm:$0xff]
  %v5041 = vld [vmem:[%s9 + $0x18] sm:$0xff]
  %v5042 = vld [vmem:[%s9 + $0x20] sm:$0xff]
  %v5043 = vld [vmem:[%s9 + $0x28] sm:$0xff]
  %v5044 = vld [vmem:[%s9 + $0x30] sm:$0xff]
  %v5045 = vld [vmem:[%s9 + $0x38] sm:$0xff]
  %v5046 = vld [vmem:[%s9 + $0x40] sm:$0xff]
  %v5047 = vld [vmem:[%s9 + $0x48] sm:$0xff]
  %v5048 = vld [vmem:[%s9 + $0x50] sm:$0xff]
  %v5049 = vld [vmem:[%s9 + $0x58] sm:$0xff]
  %v5050 = vld [vmem:[%s9 + $0x60] sm:$0xff]
  %v5051 = vld [vmem:[%s9 + $0x68] sm:$0xff]
  %v5052 = vld [vmem:[%s9 + $0x70] sm:$0xff]
  %v5053 = vld [vmem:[%s9 + $0x78] sm:$0xff]
  %v5054 = vld [vmem:[%s10] sm:$0x1]
  %v5056 = vlaneseq
  %v5057 = vshrl.u32 %v5056, 7
  %v5058 = vsub.s32 0, %v5057
  %v5059 = vrot.slane %v5054, %v5058
  %5061 = vmatprep.subr.mxu0 0.0
  %5062 = vmatpush1.msra.mxu0 %v5038
  %5063 = vmatprep.subr.mxu0 0.0
  %5064 = vmatpush1.msra.mxu0 %v5039
  %5065 = vmatprep.subr.mxu0 0.0
  %5066 = vmatpush1.msra.mxu0 %v5040
  %5067 = vmatprep.subr.mxu0 0.0
  %5068 = vmatpush1.msra.mxu0 %v5041
  %5069 = vmatprep.subr.mxu0 0.0
  %5070 = vmatpush1.msra.mxu0 %v5042
  %5071 = vmatprep.subr.mxu0 0.0
  %5072 = vmatpush1.msra.mxu0 %v5043
  %5073 = vmatprep.subr.mxu0 0.0
  %5074 = vmatpush1.msra.mxu0 %v5044
  %5075 = vmatprep.subr.mxu0 0.0
  %5076 = vmatpush1.msra.mxu0 %v5045
  %5077 = vmatprep.subr.mxu0 0.0
  %5078 = vmatpush1.msra.mxu0 %v5046
  %5079 = vmatprep.subr.mxu0 0.0
  %5080 = vmatpush1.msra.mxu0 %v5047
  %5081 = vmatprep.subr.mxu0 0.0
  %5082 = vmatpush1.msra.mxu0 %v5048
  %5083 = vmatprep.subr.mxu0 0.0
  %5084 = vmatpush1.msra.mxu0 %v5049
  %5085 = vmatprep.subr.mxu0 0.0
  %5086 = vmatpush1.msra.mxu0 %v5050
  %5087 = vmatprep.subr.mxu0 0.0
  %5088 = vmatpush1.msra.mxu0 %v5051
  %5089 = vmatprep.subr.mxu0 0.0
  %5090 = vmatpush1.msra.mxu0 %v5052
  %5091 = vmatprep.subr.mxu0 0.0
  %5092 = vmatpush1.msra.mxu0 %v5053
  %5093 = vmatprep.subr.mxu0 0.0
  %5094 = vmatpush1.msra.mxu0 0.0
  %5095 = vmatprep.subr.mxu0 0.0
  %5096 = vmatpush1.msra.mxu0 0.0
  %5097 = vmatprep.subr.mxu0 0.0
  %5098 = vmatpush1.msra.mxu0 0.0
  %5099 = vmatprep.subr.mxu0 0.0
  %5100 = vmatpush1.msra.mxu0 0.0
  %5101 = vmatprep.subr.mxu0 0.0
  %5102 = vmatpush1.msra.mxu0 0.0
  %5103 = vmatprep.subr.mxu0 0.0
  %5104 = vmatpush1.msra.mxu0 0.0
  %5105 = vmatprep.subr.mxu0 0.0
  %5106 = vmatpush1.msra.mxu0 0.0
  %5107 = vmatprep.subr.mxu0 0.0
  %5108 = vmatpush1.msra.mxu0 0.0
  %5109 = vmatprep.subr.mxu0 0.0
  %5110 = vmatpush1.msra.mxu0 0.0
  %5111 = vmatprep.subr.mxu0 0.0
  %5112 = vmatpush1.msra.mxu0 0.0
  %5113 = vmatprep.subr.mxu0 0.0
  %5114 = vmatpush1.msra.mxu0 0.0
  %5115 = vmatprep.subr.mxu0 0.0
  %5116 = vmatpush1.msra.mxu0 0.0
  %5117 = vmatprep.subr.mxu0 0.0
  %5118 = vmatpush1.msra.mxu0 0.0
  %5119 = vmatprep.subr.mxu0 0.0
  %5120 = vmatpush1.msra.mxu0 0.0
  %5121 = vmatprep.subr.mxu0 0.0
  %5122 = vmatpush1.msra.mxu0 0.0
  %5123 = vmatprep.subr.mxu0 0.0
  %5124 = vmatpush1.msra.mxu0 0.0
  %5125 = vmatprep.mubr.f32.mxu0 0.0
  %5126 = vmatmul.mubr.f32.gmra.mrb[0].mxu0 %v5037
  %v5127 = vpop.f32.mrb[0].mxu0
  %v5128 = vadd.f32 %v5059, %v5127
  %v5129 = vpop.f32.mrb[0].mxu0
  %5130 = vdwg.mxu0
  %v5131 = vmax.f32 %v5128, -10.0
  %v5132 = vmin.f32 %v5131, 10.0
  %v5133 = vmul.f32 %v5132, 1.442695
  %v5134 = vpow.pop %v5133
  %vm5135 = vcmask 80896
  %5136 = vst.msk [vmem:[%s11] sm:$0xff] %vm5135, %v5134
  // Predicated region
  $region46: #{model_diri_forward.1} parent=0 // pred_check
    _
  $region47: #{model_diri_forward.1} parent=0 // pred_check_branch
    %5138 = sbr.rel (0) target = $region49
  $region48: #{model_diri_forward.1} parent=0 // pred_region
    _
  $region49: #{model_diri_forward.1} parent=0 // pred_fallthru
    _
  // Predicated region
  $region50: #{model_diri_forward.1} parent=0 // pred_check
    _
  $region51: #{model_diri_forward.1} parent=0 // pred_check_branch
    %5140 = sbr.rel (0) target = $region53
  $region52: #{model_diri_forward.1} parent=0 // pred_region
    _
  $region53: #{model_diri_forward.1} parent=0 // pred_fallthru
    _

</llo_original>
